<compile_context>
chip_gen: v6e
topology: v6e:2x2x1
jax: 0.10.0
libtpu: 0.0.40
codegen_flags: <defaults>
</compile_context>

<pallas_src>
import jax
import jax.numpy as jnp
import numpy as np
from jax.experimental import pallas as pl
from jax.experimental.pallas import tpu as pltpu

# ---------------- model hyper-parameters (GRGNCell defaults where applicable) ---------
INPUT_SIZE = 1                                   # input_size (D)
HIDDEN = 32                                      # hidden_size
MIX = 4                                          # mixture_size
KERNEL_K = 2                                     # kernel_size (DCGRNN diffusion order)
DEC_ORDER = 1                                    # decoder_order
N_LAYERS = 1                                     # n_layers
GMM_OUT = MIX * (2 * INPUT_SIZE + 1)             # GMMCell.calculate_output_shape = 12
RNN_IN = HIDDEN + GMM_OUT                        # rnn_input_size of layer 0 = 44
DEC_IN = INPUT_SIZE + GMM_OUT + HIDDEN           # decoder lin_in input channels = 45
S_GRU = 2 * KERNEL_K + 1                         # identity + k fwd + k bwd supports = 5
S_DEC = 2 * DEC_ORDER + 1                        # = 3

# packed output slab: [gc | h | h_new | xs1 | xs2 | pad] along lanes, 128-aligned.
_USED = 3 * HIDDEN + 2 * GMM_OUT                 # 120
OUT_PACK = ((_USED + 127) // 128) * 128          # 128

# MXU operand dtype.  jnp.float32 keeps exact parity with the f32 reference (and is the
# right choice on v5e); set to jnp.bfloat16 on v6e/v7x at scale -- elementwise gate math
# stays f32 either way.
MXU_DTYPE = jnp.float32


# ---------------- small helpers --------------------------------------------------------
def _dot(a, b):
    return jnp.dot(a.astype(MXU_DTYPE), b.astype(MXU_DTYPE),
                   preferred_element_type=jnp.float32)


def _tree_sum(parts):
    """Sum a list of arrays as a balanced tree (independent MXU partials)."""
    while len(parts) > 1:
        nxt = [parts[i] + parts[i + 1] for i in range(0, len(parts) - 1, 2)]
        if len(parts) % 2:
            nxt.append(parts[-1])
        parts = nxt
    return parts[0]


def _gmm_activate(raw):
    """Reference form: raw (..., 3*M*D) -> [means, stds=exp, weights=softmax] (packed)."""
    md = MIX * INPUT_SIZE
    means = raw[..., :md]
    stds = jnp.exp(raw[..., md:2 * md])
    weights = jax.nn.softmax(raw[..., 2 * md:], axis=-1)
    return jnp.concatenate([means, stds, weights], axis=-1)


def _gmm_activate_masked(raw, is_std, is_wgt):
    """Kernel form: identical math via a lane mask; EUP reciprocal for the softmax."""
    out = jnp.where(is_std, jnp.exp(raw), raw)                       # means | exp(stds)
    wmax = jnp.max(jnp.where(is_wgt, raw, jnp.float32(-1e30)),
                   axis=-1, keepdims=True)
    wexp = jnp.where(is_wgt, jnp.exp(raw - wmax), 0.0)
    inv = pl.reciprocal(jnp.sum(wexp, axis=-1, keepdims=True), approx=True)
    return jnp.where(is_wgt, wexp * inv, out)                        # softmax lanes


# ---------------- Pallas kernel: one (batch, time) grid step ---------------------------
def grgn_step_kernel(x_ref, h0_ref, a_gru_ref, a_dec_ref,
                     w_gmm_ref, b_gmm_ref,
                     w_din_x_ref, w_din_xs_ref, w_din_h_ref, b_din_ref,
                     w_dgc_ref, b_dgc_ref,
                     w_ro_gc_ref, w_ro_h_ref, b_ro_ref,
                     w_ruc_xs_ref, w_ruc_gc_ref, w_ru_h_ref, w_c_h_ref, b_ruc_ref,
                     out_ref, h_ref):
    t = pl.program_id(1)
    N = x_ref.shape[0]
    H = HIDDEN

    @pl.when(t == 0)
    def _():                                            # fresh state for each batch elem
        h_ref[...] = h0_ref[...]

    h = h_ref[...]                                      # (N, H) carried hidden state
    x_t = x_ref[...]                                    # (N, D)

    # GMM-head lane masks, built once and shared by both activations this step.
    md = MIX * INPUT_SIZE
    lane = jax.lax.broadcasted_iota(jnp.int32, (N, GMM_OUT), 1)
    is_std = jnp.logical_and(lane >= md, lane < 2 * md)
    is_wgt = lane >= 2 * md

    # ---------- first stage: GMMCell(h) -> xs1 ----------
    raw1 = _dot(h, w_gmm_ref[...]) + b_gmm_ref[...]
    xs1 = _gmm_activate_masked(raw1, is_std, is_wgt)    # (N, GMM_OUT)

    # ---------- spatial decoder lin_in: split-weight partial sums (no concat) ----------
    if INPUT_SIZE == 1:
        zx = x_t * w_din_x_ref[...]                     # (N,1)*(1,H) broadcast
    else:
        zx = _dot(x_t, w_din_x_ref[...])
    z = (zx + _dot(xs1, w_din_xs_ref[...])
         + _dot(h, w_din_h_ref[...]) + b_din_ref[...])  # (N, H)

    # diffusion conv: one hop-stacked support matmul, tree-summed per-hop weights
    pd = _dot(a_dec_ref[...], z)                        # (S_DEC*N, H)
    gc_parts = [_dot(pd[s * N:(s + 1) * N], w_dgc_ref[s]) for s in range(S_DEC)]
    gc = jax.nn.relu(_tree_sum(gc_parts) + b_dgc_ref[...])          # (N, H)

    # read-out: split weights instead of concat([gc, h]) @ W
    raw2 = _dot(gc, w_ro_gc_ref[...]) + _dot(h, w_ro_h_ref[...]) + b_ro_ref[...]
    xs2 = _gmm_activate_masked(raw2, is_std, is_wgt)    # (N, GMM_OUT)

    # ---------- DCGRNN GRU update (1 layer, LayerNorm = Identity) ----------
    # Propagate xs2 / gc / h separately (no in-loop concat); r|u|c gate columns fused.
    a_gru = a_gru_ref[...]                              # (S_GRU*N, N)
    p_xs = _dot(a_gru, xs2)                             # (S_GRU*N, GMM_OUT)
    p_gc = _dot(a_gru, gc)                              # (S_GRU*N, H)
    p_h = _dot(a_gru, h)                                # (S_GRU*N, H)

    ruc_parts = [_dot(p_xs[s * N:(s + 1) * N], w_ruc_xs_ref[s])
                 + _dot(p_gc[s * N:(s + 1) * N], w_ruc_gc_ref[s])
                 for s in range(S_GRU)]
    ruc = _tree_sum(ruc_parts) + b_ruc_ref[...]         # (N, 3H) columns [r | u | c]
    ruh_parts = [_dot(p_h[s * N:(s + 1) * N], w_ru_h_ref[s]) for s in range(S_GRU)]
    ru_h = _tree_sum(ruh_parts)                         # (N, 2H) columns [r | u]

    r = jax.nn.sigmoid(ruc[:, 0:H] + ru_h[:, 0:H])
    u = jax.nn.sigmoid(ruc[:, H:2 * H] + ru_h[:, H:2 * H])

    p_rh = _dot(a_gru, r * h)                           # only r*h is re-propagated
    c_parts = [_dot(p_rh[s * N:(s + 1) * N], w_c_h_ref[s]) for s in range(S_GRU)]
    c = jnp.tanh(ruc[:, 2 * H:3 * H] + _tree_sum(c_parts))

    h_new = u * h + (1.0 - u) * c
    h_ref[...] = h_new                                  # carry to next time step

    # ---------- packed 128-lane output row: one unmasked store, one writeback DMA -----
    pad = jnp.zeros((N, OUT_PACK - _USED), jnp.float32)
    out_ref[...] = jnp.concatenate([gc, h, h_new, xs1, xs2, pad], axis=-1)


# ---------------- wrapper --------------------------------------------------------------
def grgn_cell_forward(x, params, sup_gru, sup_dec):
    B, T, N, D = x.shape
    assert N_LAYERS == 1, "kernel implements the single-layer recurrence only"
    f32 = jnp.float32
    H = HIDDEN

    x_f = x.astype(f32)
    h0 = params['h0'][0, 0].astype(f32)                 # (N, H), shared across batch

    # hop-stacked per-graph supports (no block-diagonal batch replication)
    a_gru = sup_gru.astype(MXU_DTYPE).reshape(S_GRU * N, N)
    a_dec = sup_dec.astype(MXU_DTYPE).reshape(S_DEC * N, N)

    # split / stack weights once, wrapper-side
    w_din = params['w_din'].astype(MXU_DTYPE)
    w_din_x = w_din[:D]                                 # (D, H)
    w_din_xs = w_din[D:D + GMM_OUT]                     # (GMM_OUT, H)
    w_din_h = w_din[D + GMM_OUT:]                       # (H, H)

    w_ro = params['w_ro'].astype(MXU_DTYPE)
    w_ro_gc = w_ro[:H]                                  # (H, GMM_OUT)
    w_ro_h = w_ro[H:]                                   # (H, GMM_OUT)

    w_gru = params['w_gru'].astype(MXU_DTYPE)           # (3, S, RNN_IN + H, H)
    w_in_xs = w_gru[:, :, :GMM_OUT, :]                  # rows for xs2
    w_in_gc = w_gru[:, :, GMM_OUT:RNN_IN, :]            # rows for gc
    w_hh = w_gru[:, :, RNN_IN:, :]                      # rows for h
    w_ruc_xs = jnp.concatenate([w_in_xs[0], w_in_xs[1], w_in_xs[2]], axis=-1)  # (S,12,3H)
    w_ruc_gc = jnp.concatenate([w_in_gc[0], w_in_gc[1], w_in_gc[2]], axis=-1)  # (S,H,3H)
    w_ru_h = jnp.concatenate([w_hh[0], w_hh[1]], axis=-1)                      # (S,H,2H)
    w_c_h = w_hh[2]                                                            # (S,H,H)
    b_ruc = params['b_gru'].reshape(1, 3 * H).astype(f32)                      # [r|u|c]

    args = (x_f, h0, a_gru, a_dec,
            params['w_gmm'].astype(MXU_DTYPE), params['b_gmm'].astype(f32),
            w_din_x, w_din_xs, w_din_h, params['b_din'].astype(f32),
            params['w_dgc'].astype(MXU_DTYPE), params['b_dgc'].astype(f32),
            w_ro_gc, w_ro_h, params['b_ro'].astype(f32),
            w_ruc_xs, w_ruc_gc, w_ru_h, w_c_h, b_ruc)

    def const_spec(a):                                  # full-array block, VMEM-resident
        zeros = (0,) * a.ndim
        return pl.BlockSpec(a.shape, lambda b, t: zeros)

    in_specs = [pl.BlockSpec((None, None, N, D), lambda b, t: (b, t, 0, 0))]
    in_specs += [const_spec(a) for a in args[1:]]
    out_spec = pl.BlockSpec((None, None, N, OUT_PACK), lambda b, t: (b, t, 0, 0))

    out = pl.pallas_call(
        grgn_step_kernel,
        out_shape=jax.ShapeDtypeStruct((B, T, N, OUT_PACK), f32),
        grid_spec=pltpu.PrefetchScalarGridSpec(
            num_scalar_prefetch=0,
            grid=(B, T),
            in_specs=in_specs,
            out_specs=out_spec,
            scratch_shapes=[pltpu.VMEM((N, H), f32)],   # carried hidden state
        ),
        compiler_params=pltpu.CompilerParams(
            dimension_semantics=("parallel", "arbitrary")),
    )(*args)

    # unpack the lane-dense slab (wrapper-side layout plumbing, free)
    reprs = out[..., 0:2 * H]                           # (B, T, N, 2H) = [gc | h_prev]
    states = out[..., 2 * H:3 * H][None]                # (L=1, B, T, N, H)
    preds = out[..., 3 * H:3 * H + GMM_OUT]             # xs1
    gens = out[..., 3 * H + GMM_OUT:3 * H + 2 * GMM_OUT]  # xs2
    return gens, preds, reprs, states


# ---------------- pure-JAX reference (for correctness check) --------------------------
def grgn_reference(x, params, sup_gru, sup_dec):
    B, T, N, D = x.shape
    h = jnp.broadcast_to(params['h0'], (N_LAYERS, B, N, HIDDEN))

    def diff_conv(xx, supports, w, b):
        out = None
        for s in range(w.shape[0]):
            xw = jnp.einsum('bnc,ch->bnh', xx, w[s])
            y = jnp.einsum('nm,bmh->bnh', supports[s], xw)
            out = y if out is None else out + y
        return out + b[None]

    gens, preds, reprs, states = [], [], [], []
    for t in range(T):
        x_s = x[:, t]
        h_s = h[-1]
        raw1 = jnp.einsum('bnh,hk->bnk', h_s, params['w_gmm']) + params['b_gmm'][None]
        xs1 = _gmm_activate(raw1)
        dec_in = jnp.concatenate([x_s, xs1, h_s], -1)
        z = jnp.einsum('bnc,ch->bnh', dec_in, params['w_din']) + params['b_din'][None]
        gc = jax.nn.relu(diff_conv(z, sup_dec, params['w_dgc'], params['b_dgc']))
        repr_s = jnp.concatenate([gc, h_s], -1)
        raw2 = jnp.einsum('bnc,ck->bnk', repr_s, params['w_ro']) + params['b_ro'][None]
        xs2 = _gmm_activate(raw2)
        inputs = jnp.concatenate([xs2, gc], -1)
        xh = jnp.concatenate([inputs, h_s], -1)
        r = jax.nn.sigmoid(diff_conv(xh, sup_gru, params['w_gru'][0], params['b_gru'][0:1]))
        u = jax.nn.sigmoid(diff_conv(xh, sup_gru, params['w_gru'][1], params['b_gru'][1:2]))
        xh_c = jnp.concatenate([inputs, r * h_s], -1)
        c = jnp.tanh(diff_conv(xh_c, sup_gru, params['w_gru'][2], params['b_gru'][2:3]))
        h_new = u * h_s + (1.0 - u) * c
        h = h.at[N_LAYERS - 1].set(h_new)
        gens.append(xs2); preds.append(xs1); reprs.append(repr_s); states.append(h)
    return (jnp.stack(gens, 1), jnp.stack(preds, 1),
            jnp.stack(reprs, 1), jnp.stack(states, 2))


# ---------------- graph glue -----------------------------------------------------------
def build_supports(adj, k):
    """Dense diffusion supports: [I, P_fwd^1..k, P_bwd^1..k] with P = D^-1 A."""
    n = adj.shape[0]
    a_fwd = adj / jnp.maximum(adj.sum(1, keepdims=True), 1e-6)
    adj_t = adj.T
    a_bwd = adj_t / jnp.maximum(adj_t.sum(1, keepdims=True), 1e-6)
    sups = [jnp.eye(n, dtype=jnp.float32)]
    p = a_fwd
    for _ in range(k):
        sups.append(p)
        p = p @ a_fwd
    p = a_bwd
    for _ in range(k):
        sups.append(p)
        p = p @ a_bwd
    return jnp.stack(sups).astype(jnp.float32)


if __name__ == "__main__":
    key = jax.random.PRNGKey(0)
    keys = jax.random.split(key, 20)

    B, T, N, D = 2, 8, 8, INPUT_SIZE
    x = jax.random.normal(keys[0], (B, T, N, D), jnp.float32)

    # sparse graph (edge_index, edge_weight) -> dense adjacency (plain JAX glue)
    E = 24
    src = jax.random.randint(keys[1], (E,), 0, N)
    dst = jax.random.randint(keys[2], (E,), 0, N)
    edge_weight = jax.random.uniform(keys[3], (E,), jnp.float32)
    adj = jnp.zeros((N, N), jnp.float32).at[src, dst].add(edge_weight)

    sup_gru = build_supports(adj, KERNEL_K)     # (5, N, N)
    sup_dec = build_supports(adj, DEC_ORDER)    # (3, N, N)

    def init(k, shape, scale=0.1):
        return scale * jax.random.normal(k, shape, jnp.float32)

    params = dict(
        h0=init(keys[4], (N_LAYERS, 1, N, HIDDEN)),                 # NodeEmbedding per layer
        w_gmm=init(keys[5], (HIDDEN, GMM_OUT)),                     # GMMCell (first stage)
        b_gmm=init(keys[6], (1, GMM_OUT)),
        w_din=init(keys[7], (DEC_IN, HIDDEN)),                      # SpatialDecoderGMM lin_in
        b_din=init(keys[8], (1, HIDDEN)),
        w_dgc=init(keys[9], (S_DEC, HIDDEN, HIDDEN)),               # decoder graph conv
        b_dgc=init(keys[10], (1, HIDDEN)),
        w_ro=init(keys[11], (2 * HIDDEN, GMM_OUT)),                 # decoder read-out
        b_ro=init(keys[12], (1, GMM_OUT)),
        w_gru=init(keys[13], (3, S_GRU, RNN_IN + HIDDEN, HIDDEN)),  # DCGRNN r/u/c gates
        b_gru=init(keys[14], (3, HIDDEN)),
    )

    outs = grgn_cell_forward(x, params, sup_gru, sup_dec)
    outs = jax.block_until_ready(outs)
    gens, preds, reprs, states = outs

    ref = grgn_reference(x, params, sup_gru, sup_dec)
    # tolerance loosened from 1e-4 to 2e-3 because the softmax denominator now uses the
    # approximate EUP reciprocal (pl.reciprocal(..., approx=True)); everything else is f32.
    for got, want in zip((gens, preds, reprs, states), ref):
        np.testing.assert_allclose(np.asarray(got), np.asarray(want),
                                   rtol=2e-3, atol=2e-3)

    print("KERNEL_OK")
</pallas_src>

<mosaic_0001>
module attributes {stable_mosaic.version = 11 : i64} {
  func.func @grgn_step_kernel(%arg0: i32, %arg1: i32, %arg2: memref<1x1x8x1xf32, #tpu.memory_space<vmem>>, %arg3: memref<8x32xf32, #tpu.memory_space<vmem>>, %arg4: memref<40x8xf32, #tpu.memory_space<vmem>>, %arg5: memref<24x8xf32, #tpu.memory_space<vmem>>, %arg6: memref<32x12xf32, #tpu.memory_space<vmem>>, %arg7: memref<1x12xf32, #tpu.memory_space<vmem>>, %arg8: memref<1x32xf32, #tpu.memory_space<vmem>>, %arg9: memref<12x32xf32, #tpu.memory_space<vmem>>, %arg10: memref<32x32xf32, #tpu.memory_space<vmem>>, %arg11: memref<1x32xf32, #tpu.memory_space<vmem>>, %arg12: memref<3x32x32xf32, #tpu.memory_space<vmem>>, %arg13: memref<1x32xf32, #tpu.memory_space<vmem>>, %arg14: memref<32x12xf32, #tpu.memory_space<vmem>>, %arg15: memref<32x12xf32, #tpu.memory_space<vmem>>, %arg16: memref<1x12xf32, #tpu.memory_space<vmem>>, %arg17: memref<5x12x96xf32, #tpu.memory_space<vmem>>, %arg18: memref<5x32x96xf32, #tpu.memory_space<vmem>>, %arg19: memref<5x32x64xf32, #tpu.memory_space<vmem>>, %arg20: memref<5x32x32xf32, #tpu.memory_space<vmem>>, %arg21: memref<1x96xf32, #tpu.memory_space<vmem>>, %arg22: memref<1x1x8x128xf32, #tpu.memory_space<vmem>>, %arg23: memref<8x32xf32, #tpu.memory_space<vmem>>) attributes {dimension_semantics = [#tpu.dimension_semantics<parallel>, #tpu.dimension_semantics<arbitrary>], iteration_bounds = array<i64: 2, 8>, scalar_prefetch = 0 : i64, scratch_operands = 1 : i64, tpu.core_type = #tpu.core_type<tc>, window_params = [{transform_indices = @transform_0, window_bounds = array<i64: 1, 1, 8, 1>}, {pipeline_mode = #tpu.pipeline_mode<synchronous>, transform_indices = @transform_1, window_bounds = array<i64: 8, 32>}, {pipeline_mode = #tpu.pipeline_mode<synchronous>, transform_indices = @transform_2, window_bounds = array<i64: 40, 8>}, {pipeline_mode = #tpu.pipeline_mode<synchronous>, transform_indices = @transform_3, window_bounds = array<i64: 24, 8>}, {pipeline_mode = #tpu.pipeline_mode<synchronous>, transform_indices = @transform_4, window_bounds = array<i64: 32, 12>}, {pipeline_mode = #tpu.pipeline_mode<synchronous>, transform_indices = @transform_5, window_bounds = array<i64: 1, 12>}, {pipeline_mode = #tpu.pipeline_mode<synchronous>, transform_indices = @transform_6, window_bounds = array<i64: 1, 32>}, {pipeline_mode = #tpu.pipeline_mode<synchronous>, transform_indices = @transform_7, window_bounds = array<i64: 12, 32>}, {pipeline_mode = #tpu.pipeline_mode<synchronous>, transform_indices = @transform_8, window_bounds = array<i64: 32, 32>}, {pipeline_mode = #tpu.pipeline_mode<synchronous>, transform_indices = @transform_9, window_bounds = array<i64: 1, 32>}, {pipeline_mode = #tpu.pipeline_mode<synchronous>, transform_indices = @transform_10, window_bounds = array<i64: 3, 32, 32>}, {pipeline_mode = #tpu.pipeline_mode<synchronous>, transform_indices = @transform_11, window_bounds = array<i64: 1, 32>}, {pipeline_mode = #tpu.pipeline_mode<synchronous>, transform_indices = @transform_12, window_bounds = array<i64: 32, 12>}, {pipeline_mode = #tpu.pipeline_mode<synchronous>, transform_indices = @transform_13, window_bounds = array<i64: 32, 12>}, {pipeline_mode = #tpu.pipeline_mode<synchronous>, transform_indices = @transform_14, window_bounds = array<i64: 1, 12>}, {pipeline_mode = #tpu.pipeline_mode<synchronous>, transform_indices = @transform_15, window_bounds = array<i64: 5, 12, 96>}, {pipeline_mode = #tpu.pipeline_mode<synchronous>, transform_indices = @transform_16, window_bounds = array<i64: 5, 32, 96>}, {pipeline_mode = #tpu.pipeline_mode<synchronous>, transform_indices = @transform_17, window_bounds = array<i64: 5, 32, 64>}, {pipeline_mode = #tpu.pipeline_mode<synchronous>, transform_indices = @transform_18, window_bounds = array<i64: 5, 32, 32>}, {pipeline_mode = #tpu.pipeline_mode<synchronous>, transform_indices = @transform_19, window_bounds = array<i64: 1, 96>}, {transform_indices = @transform_20, window_bounds = array<i64: 1, 1, 8, 128>}]} {
    %c0_i32 = arith.constant 0 : i32
    %0 = arith.cmpi eq, %arg1, %c0_i32 : i32
    %1 = arith.extui %0 : i1 to i32
    %c0_i32_0 = arith.constant 0 : i32
    %2 = arith.cmpi ne, %1, %c0_i32_0 : i32
    scf.if %2 {
      %c0_149 = arith.constant 0 : index
      %c0_150 = arith.constant 0 : index
      %231 = vector.load %arg3[%c0_149, %c0_150] : memref<8x32xf32, #tpu.memory_space<vmem>>, vector<8x32xf32>
      %c0_151 = arith.constant 0 : index
      %c0_152 = arith.constant 0 : index
      %232 = vector.load %arg23[%c0_151, %c0_152] : memref<8x32xf32, #tpu.memory_space<vmem>>, vector<8x32xf32>
      tpu.vector_store %arg23[%c0_151, %c0_152], %231 {strides = array<i32>} : memref<8x32xf32, #tpu.memory_space<vmem>>, vector<8x32xf32>,
    } else {
    }
    %c0 = arith.constant 0 : index
    %c0_1 = arith.constant 0 : index
    %3 = vector.load %arg23[%c0, %c0_1] : memref<8x32xf32, #tpu.memory_space<vmem>>, vector<8x32xf32>
    %c0_2 = arith.constant 0 : index
    %c0_3 = arith.constant 0 : index
    %c0_4 = arith.constant 0 : index
    %c0_5 = arith.constant 0 : index
    %4 = vector.load %arg2[%c0_2, %c0_3, %c0_4, %c0_5] : memref<1x1x8x1xf32, #tpu.memory_space<vmem>>, vector<1x1x8x1xf32>
    %5 = vector.shape_cast %4 : vector<1x1x8x1xf32> to vector<8x1xf32>
    %6 = tpu.iota {dimensions = array<i32: 1>} : vector<8x12xi32>
    %c4_i32 = arith.constant 4 : i32
    %7 = vector.broadcast %c4_i32 : i32 to vector<8x12xi32>
    %8 = arith.cmpi sge, %6, %7 : vector<8x12xi32>
    %c8_i32 = arith.constant 8 : i32
    %9 = vector.broadcast %c8_i32 : i32 to vector<8x12xi32>
    %10 = arith.cmpi slt, %6, %9 : vector<8x12xi32>
    %11 = arith.andi %8, %10 : vector<8x12xi1>
    %c8_i32_6 = arith.constant 8 : i32
    %12 = vector.broadcast %c8_i32_6 : i32 to vector<8x12xi32>
    %13 = arith.cmpi sge, %6, %12 : vector<8x12xi32>
    %c0_7 = arith.constant 0 : index
    %c0_8 = arith.constant 0 : index
    %14 = vector.load %arg6[%c0_7, %c0_8] : memref<32x12xf32, #tpu.memory_space<vmem>>, vector<32x12xf32>
    %cst = arith.constant dense<0.000000e+00> : vector<8x12xf32>
    %15 = tpu.matmul %3, %14, %cst {dimension_numbers = #tpu.dot_dimension_numbers<[1], [0], [0], [1], [0, 0, 1, 1], [], []>} : vector<8x32xf32>, vector<32x12xf32>, vector<8x12xf32> -> vector<8x12xf32>
    %c0_9 = arith.constant 0 : index
    %c0_10 = arith.constant 0 : index
    %16 = vector.load %arg7[%c0_9, %c0_10] : memref<1x12xf32, #tpu.memory_space<vmem>>, vector<1x12xf32>
    %17 = vector.broadcast %16 : vector<1x12xf32> to vector<8x12xf32>
    %18 = arith.addf %15, %17 : vector<8x12xf32>
    %19 = math.exp %18 : vector<8x12xf32>
    %20 = arith.select %11, %19, %18 : vector<8x12xi1>, vector<8x12xf32>
    %cst_11 = arith.constant -1.000000e+30 : f32
    %21 = vector.broadcast %cst_11 : f32 to vector<8x12xf32>
    %22 = arith.select %13, %18, %21 : vector<8x12xi1>, vector<8x12xf32>
    %cst_12 = arith.constant dense<0xFF800000> : vector<8xf32>
    %23 = vector.multi_reduction <maximumf>, %22, %cst_12 [1] : vector<8x12xf32> to vector<8xf32>
    %24 = vector.shape_cast %23 : vector<8xf32> to vector<8x1xf32>
    %25 = vector.broadcast %24 : vector<8x1xf32> to vector<8x12xf32>
    %26 = arith.subf %18, %25 : vector<8x12xf32>
    %27 = math.exp %26 : vector<8x12xf32>
    %cst_13 = arith.constant 0.000000e+00 : f32
    %28 = vector.broadcast %cst_13 : f32 to vector<8x12xf32>
    %29 = arith.select %13, %27, %28 : vector<8x12xi1>, vector<8x12xf32>
    %cst_14 = arith.constant dense<0.000000e+00> : vector<8xf32>
    %30 = vector.multi_reduction <add>, %29, %cst_14 [1] : vector<8x12xf32> to vector<8xf32>
    %31 = vector.shape_cast %30 : vector<8xf32> to vector<8x1xf32>
    %32 = tpu.reciprocal %31 {approx = true} : vector<8x1xf32> -> vector<8x1xf32>
    %33 = vector.broadcast %32 : vector<8x1xf32> to vector<8x12xf32>
    %34 = arith.mulf %29, %33 : vector<8x12xf32>
    %35 = arith.select %13, %34, %20 : vector<8x12xi1>, vector<8x12xf32>
    %c0_15 = arith.constant 0 : index
    %c0_16 = arith.constant 0 : index
    %36 = vector.load %arg8[%c0_15, %c0_16] : memref<1x32xf32, #tpu.memory_space<vmem>>, vector<1x32xf32>
    %37 = vector.broadcast %5 : vector<8x1xf32> to vector<8x32xf32>
    %38 = vector.broadcast %36 : vector<1x32xf32> to vector<8x32xf32>
    %39 = arith.mulf %37, %38 : vector<8x32xf32>
    %c0_17 = arith.constant 0 : index
    %c0_18 = arith.constant 0 : index
    %40 = vector.load %arg9[%c0_17, %c0_18] : memref<12x32xf32, #tpu.memory_space<vmem>>, vector<12x32xf32>
    %cst_19 = arith.constant dense<0.000000e+00> : vector<8x32xf32>
    %41 = tpu.matmul %35, %40, %cst_19 {dimension_numbers = #tpu.dot_dimension_numbers<[1], [0], [0], [1], [0, 0, 1, 1], [], []>} : vector<8x12xf32>, vector<12x32xf32>, vector<8x32xf32> -> vector<8x32xf32>
    %42 = arith.addf %39, %41 : vector<8x32xf32>
    %c0_20 = arith.constant 0 : index
    %c0_21 = arith.constant 0 : index
    %43 = vector.load %arg10[%c0_20, %c0_21] : memref<32x32xf32, #tpu.memory_space<vmem>>, vector<32x32xf32>
    %cst_22 = arith.constant dense<0.000000e+00> : vector<8x32xf32>
    %44 = tpu.matmul %3, %43, %cst_22 {dimension_numbers = #tpu.dot_dimension_numbers<[1], [0], [0], [1], [0, 0, 1, 1], [], []>} : vector<8x32xf32>, vector<32x32xf32>, vector<8x32xf32> -> vector<8x32xf32>
    %45 = arith.addf %42, %44 : vector<8x32xf32>
    %c0_23 = arith.constant 0 : index
    %c0_24 = arith.constant 0 : index
    %46 = vector.load %arg11[%c0_23, %c0_24] : memref<1x32xf32, #tpu.memory_space<vmem>>, vector<1x32xf32>
    %47 = vector.broadcast %46 : vector<1x32xf32> to vector<8x32xf32>
    %48 = arith.addf %45, %47 : vector<8x32xf32>
    %c0_25 = arith.constant 0 : index
    %c0_26 = arith.constant 0 : index
    %49 = vector.load %arg5[%c0_25, %c0_26] : memref<24x8xf32, #tpu.memory_space<vmem>>, vector<24x8xf32>
    %cst_27 = arith.constant dense<0.000000e+00> : vector<24x32xf32>
    %50 = tpu.matmul %49, %48, %cst_27 {dimension_numbers = #tpu.dot_dimension_numbers<[1], [0], [0], [1], [0, 0, 1, 1], [], []>} : vector<24x8xf32>, vector<8x32xf32>, vector<24x32xf32> -> vector<24x32xf32>
    %51 = vector.extract_strided_slice %50 {offsets = [0, 0], sizes = [8, 32], strides = [1, 1]} : vector<24x32xf32> to vector<8x32xf32>
    %c0_28 = arith.constant 0 : index
    %c0_29 = arith.constant 0 : index
    %c0_30 = arith.constant 0 : index
    %52 = vector.load %arg12[%c0_28, %c0_29, %c0_30] : memref<3x32x32xf32, #tpu.memory_space<vmem>>, vector<1x32x32xf32>
    %53 = vector.shape_cast %52 : vector<1x32x32xf32> to vector<32x32xf32>
    %cst_31 = arith.constant dense<0.000000e+00> : vector<8x32xf32>
    %54 = tpu.matmul %51, %53, %cst_31 {dimension_numbers = #tpu.dot_dimension_numbers<[1], [0], [0], [1], [0, 0, 1, 1], [], []>} : vector<8x32xf32>, vector<32x32xf32>, vector<8x32xf32> -> vector<8x32xf32>
    %55 = vector.extract_strided_slice %50 {offsets = [8, 0], sizes = [8, 32], strides = [1, 1]} : vector<24x32xf32> to vector<8x32xf32>
    %c1 = arith.constant 1 : index
    %c0_32 = arith.constant 0 : index
    %c0_33 = arith.constant 0 : index
    %56 = vector.load %arg12[%c1, %c0_32, %c0_33] : memref<3x32x32xf32, #tpu.memory_space<vmem>>, vector<1x32x32xf32>
    %57 = vector.shape_cast %56 : vector<1x32x32xf32> to vector<32x32xf32>
    %cst_34 = arith.constant dense<0.000000e+00> : vector<8x32xf32>
    %58 = tpu.matmul %55, %57, %cst_34 {dimension_numbers = #tpu.dot_dimension_numbers<[1], [0], [0], [1], [0, 0, 1, 1], [], []>} : vector<8x32xf32>, vector<32x32xf32>, vector<8x32xf32> -> vector<8x32xf32>
    %59 = vector.extract_strided_slice %50 {offsets = [16, 0], sizes = [8, 32], strides = [1, 1]} : vector<24x32xf32> to vector<8x32xf32>
    %c2 = arith.constant 2 : index
    %c0_35 = arith.constant 0 : index
    %c0_36 = arith.constant 0 : index
    %60 = vector.load %arg12[%c2, %c0_35, %c0_36] : memref<3x32x32xf32, #tpu.memory_space<vmem>>, vector<1x32x32xf32>
    %61 = vector.shape_cast %60 : vector<1x32x32xf32> to vector<32x32xf32>
    %cst_37 = arith.constant dense<0.000000e+00> : vector<8x32xf32>
    %62 = tpu.matmul %59, %61, %cst_37 {dimension_numbers = #tpu.dot_dimension_numbers<[1], [0], [0], [1], [0, 0, 1, 1], [], []>} : vector<8x32xf32>, vector<32x32xf32>, vector<8x32xf32> -> vector<8x32xf32>
    %63 = arith.addf %54, %58 : vector<8x32xf32>
    %64 = arith.addf %63, %62 : vector<8x32xf32>
    %c0_38 = arith.constant 0 : index
    %c0_39 = arith.constant 0 : index
    %65 = vector.load %arg13[%c0_38, %c0_39] : memref<1x32xf32, #tpu.memory_space<vmem>>, vector<1x32xf32>
    %66 = vector.broadcast %65 : vector<1x32xf32> to vector<8x32xf32>
    %67 = arith.addf %64, %66 : vector<8x32xf32>
    %cst_40 = arith.constant 0.000000e+00 : f32
    %68 = vector.broadcast %cst_40 : f32 to vector<8x32xf32>
    %69 = arith.maximumf %67, %68 : vector<8x32xf32>
    %c0_41 = arith.constant 0 : index
    %c0_42 = arith.constant 0 : index
    %70 = vector.load %arg14[%c0_41, %c0_42] : memref<32x12xf32, #tpu.memory_space<vmem>>, vector<32x12xf32>
    %cst_43 = arith.constant dense<0.000000e+00> : vector<8x12xf32>
    %71 = tpu.matmul %69, %70, %cst_43 {dimension_numbers = #tpu.dot_dimension_numbers<[1], [0], [0], [1], [0, 0, 1, 1], [], []>} : vector<8x32xf32>, vector<32x12xf32>, vector<8x12xf32> -> vector<8x12xf32>
    %c0_44 = arith.constant 0 : index
    %c0_45 = arith.constant 0 : index
    %72 = vector.load %arg15[%c0_44, %c0_45] : memref<32x12xf32, #tpu.memory_space<vmem>>, vector<32x12xf32>
    %cst_46 = arith.constant dense<0.000000e+00> : vector<8x12xf32>
    %73 = tpu.matmul %3, %72, %cst_46 {dimension_numbers = #tpu.dot_dimension_numbers<[1], [0], [0], [1], [0, 0, 1, 1], [], []>} : vector<8x32xf32>, vector<32x12xf32>, vector<8x12xf32> -> vector<8x12xf32>
    %74 = arith.addf %71, %73 : vector<8x12xf32>
    %c0_47 = arith.constant 0 : index
    %c0_48 = arith.constant 0 : index
    %75 = vector.load %arg16[%c0_47, %c0_48] : memref<1x12xf32, #tpu.memory_space<vmem>>, vector<1x12xf32>
    %76 = vector.broadcast %75 : vector<1x12xf32> to vector<8x12xf32>
    %77 = arith.addf %74, %76 : vector<8x12xf32>
    %78 = math.exp %77 : vector<8x12xf32>
    %79 = arith.select %11, %78, %77 : vector<8x12xi1>, vector<8x12xf32>
    %cst_49 = arith.constant -1.000000e+30 : f32
    %80 = vector.broadcast %cst_49 : f32 to vector<8x12xf32>
    %81 = arith.select %13, %77, %80 : vector<8x12xi1>, vector<8x12xf32>
    %cst_50 = arith.constant dense<0xFF800000> : vector<8xf32>
    %82 = vector.multi_reduction <maximumf>, %81, %cst_50 [1] : vector<8x12xf32> to vector<8xf32>
    %83 = vector.shape_cast %82 : vector<8xf32> to vector<8x1xf32>
    %84 = vector.broadcast %83 : vector<8x1xf32> to vector<8x12xf32>
    %85 = arith.subf %77, %84 : vector<8x12xf32>
    %86 = math.exp %85 : vector<8x12xf32>
    %cst_51 = arith.constant 0.000000e+00 : f32
    %87 = vector.broadcast %cst_51 : f32 to vector<8x12xf32>
    %88 = arith.select %13, %86, %87 : vector<8x12xi1>, vector<8x12xf32>
    %cst_52 = arith.constant dense<0.000000e+00> : vector<8xf32>
    %89 = vector.multi_reduction <add>, %88, %cst_52 [1] : vector<8x12xf32> to vector<8xf32>
    %90 = vector.shape_cast %89 : vector<8xf32> to vector<8x1xf32>
    %91 = tpu.reciprocal %90 {approx = true} : vector<8x1xf32> -> vector<8x1xf32>
    %92 = vector.broadcast %91 : vector<8x1xf32> to vector<8x12xf32>
    %93 = arith.mulf %88, %92 : vector<8x12xf32>
    %94 = arith.select %13, %93, %79 : vector<8x12xi1>, vector<8x12xf32>
    %c0_53 = arith.constant 0 : index
    %c0_54 = arith.constant 0 : index
    %95 = vector.load %arg4[%c0_53, %c0_54] : memref<40x8xf32, #tpu.memory_space<vmem>>, vector<40x8xf32>
    %cst_55 = arith.constant dense<0.000000e+00> : vector<40x12xf32>
    %96 = tpu.matmul %95, %94, %cst_55 {dimension_numbers = #tpu.dot_dimension_numbers<[1], [0], [0], [1], [0, 0, 1, 1], [], []>} : vector<40x8xf32>, vector<8x12xf32>, vector<40x12xf32> -> vector<40x12xf32>
    %cst_56 = arith.constant dense<0.000000e+00> : vector<40x32xf32>
    %97 = tpu.matmul %95, %69, %cst_56 {dimension_numbers = #tpu.dot_dimension_numbers<[1], [0], [0], [1], [0, 0, 1, 1], [], []>} : vector<40x8xf32>, vector<8x32xf32>, vector<40x32xf32> -> vector<40x32xf32>
    %cst_57 = arith.constant dense<0.000000e+00> : vector<40x32xf32>
    %98 = tpu.matmul %95, %3, %cst_57 {dimension_numbers = #tpu.dot_dimension_numbers<[1], [0], [0], [1], [0, 0, 1, 1], [], []>} : vector<40x8xf32>, vector<8x32xf32>, vector<40x32xf32> -> vector<40x32xf32>
    %99 = vector.extract_strided_slice %96 {offsets = [0, 0], sizes = [8, 12], strides = [1, 1]} : vector<40x12xf32> to vector<8x12xf32>
    %c0_58 = arith.constant 0 : index
    %c0_59 = arith.constant 0 : index
    %c0_60 = arith.constant 0 : index
    %100 = vector.load %arg17[%c0_58, %c0_59, %c0_60] : memref<5x12x96xf32, #tpu.memory_space<vmem>>, vector<1x12x96xf32>
    %101 = vector.shape_cast %100 : vector<1x12x96xf32> to vector<12x96xf32>
    %cst_61 = arith.constant dense<0.000000e+00> : vector<8x96xf32>
    %102 = tpu.matmul %99, %101, %cst_61 {dimension_numbers = #tpu.dot_dimension_numbers<[1], [0], [0], [1], [0, 0, 1, 1], [], []>} : vector<8x12xf32>, vector<12x96xf32>, vector<8x96xf32> -> vector<8x96xf32>
    %103 = vector.extract_strided_slice %97 {offsets = [0, 0], sizes = [8, 32], strides = [1, 1]} : vector<40x32xf32> to vector<8x32xf32>
    %c0_62 = arith.constant 0 : index
    %c0_63 = arith.constant 0 : index
    %c0_64 = arith.constant 0 : index
    %104 = vector.load %arg18[%c0_62, %c0_63, %c0_64] : memref<5x32x96xf32, #tpu.memory_space<vmem>>, vector<1x32x96xf32>
    %105 = vector.shape_cast %104 : vector<1x32x96xf32> to vector<32x96xf32>
    %cst_65 = arith.constant dense<0.000000e+00> : vector<8x96xf32>
    %106 = tpu.matmul %103, %105, %cst_65 {dimension_numbers = #tpu.dot_dimension_numbers<[1], [0], [0], [1], [0, 0, 1, 1], [], []>} : vector<8x32xf32>, vector<32x96xf32>, vector<8x96xf32> -> vector<8x96xf32>
    %107 = arith.addf %102, %106 : vector<8x96xf32>
    %108 = vector.extract_strided_slice %96 {offsets = [8, 0], sizes = [8, 12], strides = [1, 1]} : vector<40x12xf32> to vector<8x12xf32>
    %c1_66 = arith.constant 1 : index
    %c0_67 = arith.constant 0 : index
    %c0_68 = arith.constant 0 : index
    %109 = vector.load %arg17[%c1_66, %c0_67, %c0_68] : memref<5x12x96xf32, #tpu.memory_space<vmem>>, vector<1x12x96xf32>
    %110 = vector.shape_cast %109 : vector<1x12x96xf32> to vector<12x96xf32>
    %cst_69 = arith.constant dense<0.000000e+00> : vector<8x96xf32>
    %111 = tpu.matmul %108, %110, %cst_69 {dimension_numbers = #tpu.dot_dimension_numbers<[1], [0], [0], [1], [0, 0, 1, 1], [], []>} : vector<8x12xf32>, vector<12x96xf32>, vector<8x96xf32> -> vector<8x96xf32>
    %112 = vector.extract_strided_slice %97 {offsets = [8, 0], sizes = [8, 32], strides = [1, 1]} : vector<40x32xf32> to vector<8x32xf32>
    %c1_70 = arith.constant 1 : index
    %c0_71 = arith.constant 0 : index
    %c0_72 = arith.constant 0 : index
    %113 = vector.load %arg18[%c1_70, %c0_71, %c0_72] : memref<5x32x96xf32, #tpu.memory_space<vmem>>, vector<1x32x96xf32>
    %114 = vector.shape_cast %113 : vector<1x32x96xf32> to vector<32x96xf32>
    %cst_73 = arith.constant dense<0.000000e+00> : vector<8x96xf32>
    %115 = tpu.matmul %112, %114, %cst_73 {dimension_numbers = #tpu.dot_dimension_numbers<[1], [0], [0], [1], [0, 0, 1, 1], [], []>} : vector<8x32xf32>, vector<32x96xf32>, vector<8x96xf32> -> vector<8x96xf32>
    %116 = arith.addf %111, %115 : vector<8x96xf32>
    %117 = vector.extract_strided_slice %96 {offsets = [16, 0], sizes = [8, 12], strides = [1, 1]} : vector<40x12xf32> to vector<8x12xf32>
    %c2_74 = arith.constant 2 : index
    %c0_75 = arith.constant 0 : index
    %c0_76 = arith.constant 0 : index
    %118 = vector.load %arg17[%c2_74, %c0_75, %c0_76] : memref<5x12x96xf32, #tpu.memory_space<vmem>>, vector<1x12x96xf32>
    %119 = vector.shape_cast %118 : vector<1x12x96xf32> to vector<12x96xf32>
    %cst_77 = arith.constant dense<0.000000e+00> : vector<8x96xf32>
    %120 = tpu.matmul %117, %119, %cst_77 {dimension_numbers = #tpu.dot_dimension_numbers<[1], [0], [0], [1], [0, 0, 1, 1], [], []>} : vector<8x12xf32>, vector<12x96xf32>, vector<8x96xf32> -> vector<8x96xf32>
    %121 = vector.extract_strided_slice %97 {offsets = [16, 0], sizes = [8, 32], strides = [1, 1]} : vector<40x32xf32> to vector<8x32xf32>
    %c2_78 = arith.constant 2 : index
    %c0_79 = arith.constant 0 : index
    %c0_80 = arith.constant 0 : index
    %122 = vector.load %arg18[%c2_78, %c0_79, %c0_80] : memref<5x32x96xf32, #tpu.memory_space<vmem>>, vector<1x32x96xf32>
    %123 = vector.shape_cast %122 : vector<1x32x96xf32> to vector<32x96xf32>
    %cst_81 = arith.constant dense<0.000000e+00> : vector<8x96xf32>
    %124 = tpu.matmul %121, %123, %cst_81 {dimension_numbers = #tpu.dot_dimension_numbers<[1], [0], [0], [1], [0, 0, 1, 1], [], []>} : vector<8x32xf32>, vector<32x96xf32>, vector<8x96xf32> -> vector<8x96xf32>
    %125 = arith.addf %120, %124 : vector<8x96xf32>
    %126 = vector.extract_strided_slice %96 {offsets = [24, 0], sizes = [8, 12], strides = [1, 1]} : vector<40x12xf32> to vector<8x12xf32>
    %c3 = arith.constant 3 : index
    %c0_82 = arith.constant 0 : index
    %c0_83 = arith.constant 0 : index
    %127 = vector.load %arg17[%c3, %c0_82, %c0_83] : memref<5x12x96xf32, #tpu.memory_space<vmem>>, vector<1x12x96xf32>
    %128 = vector.shape_cast %127 : vector<1x12x96xf32> to vector<12x96xf32>
    %cst_84 = arith.constant dense<0.000000e+00> : vector<8x96xf32>
    %129 = tpu.matmul %126, %128, %cst_84 {dimension_numbers = #tpu.dot_dimension_numbers<[1], [0], [0], [1], [0, 0, 1, 1], [], []>} : vector<8x12xf32>, vector<12x96xf32>, vector<8x96xf32> -> vector<8x96xf32>
    %130 = vector.extract_strided_slice %97 {offsets = [24, 0], sizes = [8, 32], strides = [1, 1]} : vector<40x32xf32> to vector<8x32xf32>
    %c3_85 = arith.constant 3 : index
    %c0_86 = arith.constant 0 : index
    %c0_87 = arith.constant 0 : index
    %131 = vector.load %arg18[%c3_85, %c0_86, %c0_87] : memref<5x32x96xf32, #tpu.memory_space<vmem>>, vector<1x32x96xf32>
    %132 = vector.shape_cast %131 : vector<1x32x96xf32> to vector<32x96xf32>
    %cst_88 = arith.constant dense<0.000000e+00> : vector<8x96xf32>
    %133 = tpu.matmul %130, %132, %cst_88 {dimension_numbers = #tpu.dot_dimension_numbers<[1], [0], [0], [1], [0, 0, 1, 1], [], []>} : vector<8x32xf32>, vector<32x96xf32>, vector<8x96xf32> -> vector<8x96xf32>
    %134 = arith.addf %129, %133 : vector<8x96xf32>
    %135 = vector.extract_strided_slice %96 {offsets = [32, 0], sizes = [8, 12], strides = [1, 1]} : vector<40x12xf32> to vector<8x12xf32>
    %c4 = arith.constant 4 : index
    %c0_89 = arith.constant 0 : index
    %c0_90 = arith.constant 0 : index
    %136 = vector.load %arg17[%c4, %c0_89, %c0_90] : memref<5x12x96xf32, #tpu.memory_space<vmem>>, vector<1x12x96xf32>
    %137 = vector.shape_cast %136 : vector<1x12x96xf32> to vector<12x96xf32>
    %cst_91 = arith.constant dense<0.000000e+00> : vector<8x96xf32>
    %138 = tpu.matmul %135, %137, %cst_91 {dimension_numbers = #tpu.dot_dimension_numbers<[1], [0], [0], [1], [0, 0, 1, 1], [], []>} : vector<8x12xf32>, vector<12x96xf32>, vector<8x96xf32> -> vector<8x96xf32>
    %139 = vector.extract_strided_slice %97 {offsets = [32, 0], sizes = [8, 32], strides = [1, 1]} : vector<40x32xf32> to vector<8x32xf32>
    %c4_92 = arith.constant 4 : index
    %c0_93 = arith.constant 0 : index
    %c0_94 = arith.constant 0 : index
    %140 = vector.load %arg18[%c4_92, %c0_93, %c0_94] : memref<5x32x96xf32, #tpu.memory_space<vmem>>, vector<1x32x96xf32>
    %141 = vector.shape_cast %140 : vector<1x32x96xf32> to vector<32x96xf32>
    %cst_95 = arith.constant dense<0.000000e+00> : vector<8x96xf32>
    %142 = tpu.matmul %139, %141, %cst_95 {dimension_numbers = #tpu.dot_dimension_numbers<[1], [0], [0], [1], [0, 0, 1, 1], [], []>} : vector<8x32xf32>, vector<32x96xf32>, vector<8x96xf32> -> vector<8x96xf32>
    %143 = arith.addf %138, %142 : vector<8x96xf32>
    %144 = arith.addf %107, %116 : vector<8x96xf32>
    %145 = arith.addf %125, %134 : vector<8x96xf32>
    %146 = arith.addf %144, %145 : vector<8x96xf32>
    %147 = arith.addf %146, %143 : vector<8x96xf32>
    %c0_96 = arith.constant 0 : index
    %c0_97 = arith.constant 0 : index
    %148 = vector.load %arg21[%c0_96, %c0_97] : memref<1x96xf32, #tpu.memory_space<vmem>>, vector<1x96xf32>
    %149 = vector.broadcast %148 : vector<1x96xf32> to vector<8x96xf32>
    %150 = arith.addf %147, %149 : vector<8x96xf32>
    %151 = vector.extract_strided_slice %98 {offsets = [0, 0], sizes = [8, 32], strides = [1, 1]} : vector<40x32xf32> to vector<8x32xf32>
    %c0_98 = arith.constant 0 : index
    %c0_99 = arith.constant 0 : index
    %c0_100 = arith.constant 0 : index
    %152 = vector.load %arg19[%c0_98, %c0_99, %c0_100] : memref<5x32x64xf32, #tpu.memory_space<vmem>>, vector<1x32x64xf32>
    %153 = vector.shape_cast %152 : vector<1x32x64xf32> to vector<32x64xf32>
    %cst_101 = arith.constant dense<0.000000e+00> : vector<8x64xf32>
    %154 = tpu.matmul %151, %153, %cst_101 {dimension_numbers = #tpu.dot_dimension_numbers<[1], [0], [0], [1], [0, 0, 1, 1], [], []>} : vector<8x32xf32>, vector<32x64xf32>, vector<8x64xf32> -> vector<8x64xf32>
    %155 = vector.extract_strided_slice %98 {offsets = [8, 0], sizes = [8, 32], strides = [1, 1]} : vector<40x32xf32> to vector<8x32xf32>
    %c1_102 = arith.constant 1 : index
    %c0_103 = arith.constant 0 : index
    %c0_104 = arith.constant 0 : index
    %156 = vector.load %arg19[%c1_102, %c0_103, %c0_104] : memref<5x32x64xf32, #tpu.memory_space<vmem>>, vector<1x32x64xf32>
    %157 = vector.shape_cast %156 : vector<1x32x64xf32> to vector<32x64xf32>
    %cst_105 = arith.constant dense<0.000000e+00> : vector<8x64xf32>
    %158 = tpu.matmul %155, %157, %cst_105 {dimension_numbers = #tpu.dot_dimension_numbers<[1], [0], [0], [1], [0, 0, 1, 1], [], []>} : vector<8x32xf32>, vector<32x64xf32>, vector<8x64xf32> -> vector<8x64xf32>
    %159 = vector.extract_strided_slice %98 {offsets = [16, 0], sizes = [8, 32], strides = [1, 1]} : vector<40x32xf32> to vector<8x32xf32>
    %c2_106 = arith.constant 2 : index
    %c0_107 = arith.constant 0 : index
    %c0_108 = arith.constant 0 : index
    %160 = vector.load %arg19[%c2_106, %c0_107, %c0_108] : memref<5x32x64xf32, #tpu.memory_space<vmem>>, vector<1x32x64xf32>
    %161 = vector.shape_cast %160 : vector<1x32x64xf32> to vector<32x64xf32>
    %cst_109 = arith.constant dense<0.000000e+00> : vector<8x64xf32>
    %162 = tpu.matmul %159, %161, %cst_109 {dimension_numbers = #tpu.dot_dimension_numbers<[1], [0], [0], [1], [0, 0, 1, 1], [], []>} : vector<8x32xf32>, vector<32x64xf32>, vector<8x64xf32> -> vector<8x64xf32>
    %163 = vector.extract_strided_slice %98 {offsets = [24, 0], sizes = [8, 32], strides = [1, 1]} : vector<40x32xf32> to vector<8x32xf32>
    %c3_110 = arith.constant 3 : index
    %c0_111 = arith.constant 0 : index
    %c0_112 = arith.constant 0 : index
    %164 = vector.load %arg19[%c3_110, %c0_111, %c0_112] : memref<5x32x64xf32, #tpu.memory_space<vmem>>, vector<1x32x64xf32>
    %165 = vector.shape_cast %164 : vector<1x32x64xf32> to vector<32x64xf32>
    %cst_113 = arith.constant dense<0.000000e+00> : vector<8x64xf32>
    %166 = tpu.matmul %163, %165, %cst_113 {dimension_numbers = #tpu.dot_dimension_numbers<[1], [0], [0], [1], [0, 0, 1, 1], [], []>} : vector<8x32xf32>, vector<32x64xf32>, vector<8x64xf32> -> vector<8x64xf32>
    %167 = vector.extract_strided_slice %98 {offsets = [32, 0], sizes = [8, 32], strides = [1, 1]} : vector<40x32xf32> to vector<8x32xf32>
    %c4_114 = arith.constant 4 : index
    %c0_115 = arith.constant 0 : index
    %c0_116 = arith.constant 0 : index
    %168 = vector.load %arg19[%c4_114, %c0_115, %c0_116] : memref<5x32x64xf32, #tpu.memory_space<vmem>>, vector<1x32x64xf32>
    %169 = vector.shape_cast %168 : vector<1x32x64xf32> to vector<32x64xf32>
    %cst_117 = arith.constant dense<0.000000e+00> : vector<8x64xf32>
    %170 = tpu.matmul %167, %169, %cst_117 {dimension_numbers = #tpu.dot_dimension_numbers<[1], [0], [0], [1], [0, 0, 1, 1], [], []>} : vector<8x32xf32>, vector<32x64xf32>, vector<8x64xf32> -> vector<8x64xf32>
    %171 = arith.addf %154, %158 : vector<8x64xf32>
    %172 = arith.addf %162, %166 : vector<8x64xf32>
    %173 = arith.addf %171, %172 : vector<8x64xf32>
    %174 = arith.addf %173, %170 : vector<8x64xf32>
    %175 = vector.extract_strided_slice %150 {offsets = [0, 0], sizes = [8, 32], strides = [1, 1]} : vector<8x96xf32> to vector<8x32xf32>
    %176 = vector.extract_strided_slice %174 {offsets = [0, 0], sizes = [8, 32], strides = [1, 1]} : vector<8x64xf32> to vector<8x32xf32>
    %177 = arith.addf %175, %176 : vector<8x32xf32>
    %178 = arith.negf %177 : vector<8x32xf32>
    %179 = math.exp %178 : vector<8x32xf32>
    %cst_118 = arith.constant 1.000000e+00 : f32
    %180 = vector.broadcast %cst_118 : f32 to vector<8x32xf32>
    %181 = arith.addf %180, %179 : vector<8x32xf32>
    %182 = arith.divf %180, %181 : vector<8x32xf32>
    %183 = vector.extract_strided_slice %150 {offsets = [0, 32], sizes = [8, 32], strides = [1, 1]} : vector<8x96xf32> to vector<8x32xf32>
    %184 = vector.extract_strided_slice %174 {offsets = [0, 32], sizes = [8, 32], strides = [1, 1]} : vector<8x64xf32> to vector<8x32xf32>
    %185 = arith.addf %183, %184 : vector<8x32xf32>
    %186 = arith.negf %185 : vector<8x32xf32>
    %187 = math.exp %186 : vector<8x32xf32>
    %cst_119 = arith.constant 1.000000e+00 : f32
    %188 = vector.broadcast %cst_119 : f32 to vector<8x32xf32>
    %189 = arith.addf %188, %187 : vector<8x32xf32>
    %190 = arith.divf %188, %189 : vector<8x32xf32>
    %191 = arith.mulf %182, %3 : vector<8x32xf32>
    %cst_120 = arith.constant dense<0.000000e+00> : vector<40x32xf32>
    %192 = tpu.matmul %95, %191, %cst_120 {dimension_numbers = #tpu.dot_dimension_numbers<[1], [0], [0], [1], [0, 0, 1, 1], [], []>} : vector<40x8xf32>, vector<8x32xf32>, vector<40x32xf32> -> vector<40x32xf32>
    %193 = vector.extract_strided_slice %192 {offsets = [0, 0], sizes = [8, 32], strides = [1, 1]} : vector<40x32xf32> to vector<8x32xf32>
    %c0_121 = arith.constant 0 : index
    %c0_122 = arith.constant 0 : index
    %c0_123 = arith.constant 0 : index
    %194 = vector.load %arg20[%c0_121, %c0_122, %c0_123] : memref<5x32x32xf32, #tpu.memory_space<vmem>>, vector<1x32x32xf32>
    %195 = vector.shape_cast %194 : vector<1x32x32xf32> to vector<32x32xf32>
    %cst_124 = arith.constant dense<0.000000e+00> : vector<8x32xf32>
    %196 = tpu.matmul %193, %195, %cst_124 {dimension_numbers = #tpu.dot_dimension_numbers<[1], [0], [0], [1], [0, 0, 1, 1], [], []>} : vector<8x32xf32>, vector<32x32xf32>, vector<8x32xf32> -> vector<8x32xf32>
    %197 = vector.extract_strided_slice %192 {offsets = [8, 0], sizes = [8, 32], strides = [1, 1]} : vector<40x32xf32> to vector<8x32xf32>
    %c1_125 = arith.constant 1 : index
    %c0_126 = arith.constant 0 : index
    %c0_127 = arith.constant 0 : index
    %198 = vector.load %arg20[%c1_125, %c0_126, %c0_127] : memref<5x32x32xf32, #tpu.memory_space<vmem>>, vector<1x32x32xf32>
    %199 = vector.shape_cast %198 : vector<1x32x32xf32> to vector<32x32xf32>
    %cst_128 = arith.constant dense<0.000000e+00> : vector<8x32xf32>
    %200 = tpu.matmul %197, %199, %cst_128 {dimension_numbers = #tpu.dot_dimension_numbers<[1], [0], [0], [1], [0, 0, 1, 1], [], []>} : vector<8x32xf32>, vector<32x32xf32>, vector<8x32xf32> -> vector<8x32xf32>
    %201 = vector.extract_strided_slice %192 {offsets = [16, 0], sizes = [8, 32], strides = [1, 1]} : vector<40x32xf32> to vector<8x32xf32>
    %c2_129 = arith.constant 2 : index
    %c0_130 = arith.constant 0 : index
    %c0_131 = arith.constant 0 : index
    %202 = vector.load %arg20[%c2_129, %c0_130, %c0_131] : memref<5x32x32xf32, #tpu.memory_space<vmem>>, vector<1x32x32xf32>
    %203 = vector.shape_cast %202 : vector<1x32x32xf32> to vector<32x32xf32>
    %cst_132 = arith.constant dense<0.000000e+00> : vector<8x32xf32>
    %204 = tpu.matmul %201, %203, %cst_132 {dimension_numbers = #tpu.dot_dimension_numbers<[1], [0], [0], [1], [0, 0, 1, 1], [], []>} : vector<8x32xf32>, vector<32x32xf32>, vector<8x32xf32> -> vector<8x32xf32>
    %205 = vector.extract_strided_slice %192 {offsets = [24, 0], sizes = [8, 32], strides = [1, 1]} : vector<40x32xf32> to vector<8x32xf32>
    %c3_133 = arith.constant 3 : index
    %c0_134 = arith.constant 0 : index
    %c0_135 = arith.constant 0 : index
    %206 = vector.load %arg20[%c3_133, %c0_134, %c0_135] : memref<5x32x32xf32, #tpu.memory_space<vmem>>, vector<1x32x32xf32>
    %207 = vector.shape_cast %206 : vector<1x32x32xf32> to vector<32x32xf32>
    %cst_136 = arith.constant dense<0.000000e+00> : vector<8x32xf32>
    %208 = tpu.matmul %205, %207, %cst_136 {dimension_numbers = #tpu.dot_dimension_numbers<[1], [0], [0], [1], [0, 0, 1, 1], [], []>} : vector<8x32xf32>, vector<32x32xf32>, vector<8x32xf32> -> vector<8x32xf32>
    %209 = vector.extract_strided_slice %192 {offsets = [32, 0], sizes = [8, 32], strides = [1, 1]} : vector<40x32xf32> to vector<8x32xf32>
    %c4_137 = arith.constant 4 : index
    %c0_138 = arith.constant 0 : index
    %c0_139 = arith.constant 0 : index
    %210 = vector.load %arg20[%c4_137, %c0_138, %c0_139] : memref<5x32x32xf32, #tpu.memory_space<vmem>>, vector<1x32x32xf32>
    %211 = vector.shape_cast %210 : vector<1x32x32xf32> to vector<32x32xf32>
    %cst_140 = arith.constant dense<0.000000e+00> : vector<8x32xf32>
    %212 = tpu.matmul %209, %211, %cst_140 {dimension_numbers = #tpu.dot_dimension_numbers<[1], [0], [0], [1], [0, 0, 1, 1], [], []>} : vector<8x32xf32>, vector<32x32xf32>, vector<8x32xf32> -> vector<8x32xf32>
    %213 = vector.extract_strided_slice %150 {offsets = [0, 64], sizes = [8, 32], strides = [1, 1]} : vector<8x96xf32> to vector<8x32xf32>
    %214 = arith.addf %196, %200 : vector<8x32xf32>
    %215 = arith.addf %204, %208 : vector<8x32xf32>
    %216 = arith.addf %214, %215 : vector<8x32xf32>
    %217 = arith.addf %216, %212 : vector<8x32xf32>
    %218 = arith.addf %213, %217 : vector<8x32xf32>
    %219 = math.tanh %218 : vector<8x32xf32>
    %220 = arith.mulf %190, %3 : vector<8x32xf32>
    %cst_141 = arith.constant 1.000000e+00 : f32
    %221 = vector.broadcast %cst_141 : f32 to vector<8x32xf32>
    %222 = arith.subf %221, %190 : vector<8x32xf32>
    %223 = arith.mulf %222, %219 : vector<8x32xf32>
    %224 = arith.addf %220, %223 : vector<8x32xf32>
    %c0_142 = arith.constant 0 : index
    %c0_143 = arith.constant 0 : index
    %225 = vector.load %arg23[%c0_142, %c0_143] : memref<8x32xf32, #tpu.memory_space<vmem>>, vector<8x32xf32>
    tpu.vector_store %arg23[%c0_142, %c0_143], %224 {strides = array<i32>} : memref<8x32xf32, #tpu.memory_space<vmem>>, vector<8x32xf32>,
    %cst_144 = arith.constant 0.000000e+00 : f32
    %226 = vector.broadcast %cst_144 : f32 to vector<8x8xf32>
    %227 = tpu.concatenate %69, %3, %224, %35, %94, %226 in 1 : vector<8x32xf32>, vector<8x32xf32>, vector<8x32xf32>, vector<8x12xf32>, vector<8x12xf32>, vector<8x8xf32> -> vector<8x128xf32>
    %c0_145 = arith.constant 0 : index
    %c0_146 = arith.constant 0 : index
    %c0_147 = arith.constant 0 : index
    %c0_148 = arith.constant 0 : index
    %228 = vector.load %arg22[%c0_145, %c0_146, %c0_147, %c0_148] : memref<1x1x8x128xf32, #tpu.memory_space<vmem>>, vector<1x1x8x128xf32>
    %229 = vector.shape_cast %228 : vector<1x1x8x128xf32> to vector<8x128xf32>
    %230 = vector.shape_cast %227 : vector<8x128xf32> to vector<1x1x8x128xf32>
    tpu.vector_store %arg22[%c0_145, %c0_146, %c0_147, %c0_148], %230 {strides = array<i32>} : memref<1x1x8x128xf32, #tpu.memory_space<vmem>>, vector<1x1x8x128xf32>,
    return
  }
  func.func @transform_0(%arg0: i32, %arg1: i32) -> (i32, i32, i32, i32) {
    %c0_i32 = arith.constant 0 : i32
    %c0_i32_0 = arith.constant 0 : i32
    %c0_i32_1 = arith.constant 0 : i32
    return %arg0, %arg1, %c0_i32, %c0_i32_0 : i32, i32, i32, i32
  }
  func.func @transform_1(%arg0: i32, %arg1: i32) -> (i32, i32) {
    %c0_i32 = arith.constant 0 : i32
    %c0_i32_0 = arith.constant 0 : i32
    %c0_i32_1 = arith.constant 0 : i32
    return %c0_i32, %c0_i32_0 : i32, i32
  }
  func.func @transform_2(%arg0: i32, %arg1: i32) -> (i32, i32) {
    %c0_i32 = arith.constant 0 : i32
    %c0_i32_0 = arith.constant 0 : i32
    %c0_i32_1 = arith.constant 0 : i32
    return %c0_i32, %c0_i32_0 : i32, i32
  }
  func.func @transform_3(%arg0: i32, %arg1: i32) -> (i32, i32) {
    %c0_i32 = arith.constant 0 : i32
    %c0_i32_0 = arith.constant 0 : i32
    %c0_i32_1 = arith.constant 0 : i32
    return %c0_i32, %c0_i32_0 : i32, i32
  }
  func.func @transform_4(%arg0: i32, %arg1: i32) -> (i32, i32) {
    %c0_i32 = arith.constant 0 : i32
    %c0_i32_0 = arith.constant 0 : i32
    %c0_i32_1 = arith.constant 0 : i32
    return %c0_i32, %c0_i32_0 : i32, i32
  }
  func.func @transform_5(%arg0: i32, %arg1: i32) -> (i32, i32) {
    %c0_i32 = arith.constant 0 : i32
    %c0_i32_0 = arith.constant 0 : i32
    %c0_i32_1 = arith.constant 0 : i32
    return %c0_i32, %c0_i32_0 : i32, i32
  }
  func.func @transform_6(%arg0: i32, %arg1: i32) -> (i32, i32) {
    %c0_i32 = arith.constant 0 : i32
    %c0_i32_0 = arith.constant 0 : i32
    %c0_i32_1 = arith.constant 0 : i32
    return %c0_i32, %c0_i32_0 : i32, i32
  }
  func.func @transform_7(%arg0: i32, %arg1: i32) -> (i32, i32) {
    %c0_i32 = arith.constant 0 : i32
    %c0_i32_0 = arith.constant 0 : i32
    %c0_i32_1 = arith.constant 0 : i32
    return %c0_i32, %c0_i32_0 : i32, i32
  }
  func.func @transform_8(%arg0: i32, %arg1: i32) -> (i32, i32) {
    %c0_i32 = arith.constant 0 : i32
    %c0_i32_0 = arith.constant 0 : i32
    %c0_i32_1 = arith.constant 0 : i32
    return %c0_i32, %c0_i32_0 : i32, i32
  }
  func.func @transform_9(%arg0: i32, %arg1: i32) -> (i32, i32) {
    %c0_i32 = arith.constant 0 : i32
    %c0_i32_0 = arith.constant 0 : i32
    %c0_i32_1 = arith.constant 0 : i32
    return %c0_i32, %c0_i32_0 : i32, i32
  }
  func.func @transform_10(%arg0: i32, %arg1: i32) -> (i32, i32, i32) {
    %c0_i32 = arith.constant 0 : i32
    %c0_i32_0 = arith.constant 0 : i32
    %c0_i32_1 = arith.constant 0 : i32
    %c0_i32_2 = arith.constant 0 : i32
    return %c0_i32, %c0_i32_0, %c0_i32_1 : i32, i32, i32
  }
  func.func @transform_11(%arg0: i32, %arg1: i32) -> (i32, i32) {
    %c0_i32 = arith.constant 0 : i32
    %c0_i32_0 = arith.constant 0 : i32
    %c0_i32_1 = arith.constant 0 : i32
    return %c0_i32, %c0_i32_0 : i32, i32
  }
  func.func @transform_12(%arg0: i32, %arg1: i32) -> (i32, i32) {
    %c0_i32 = arith.constant 0 : i32
    %c0_i32_0 = arith.constant 0 : i32
    %c0_i32_1 = arith.constant 0 : i32
    return %c0_i32, %c0_i32_0 : i32, i32
  }
  func.func @transform_13(%arg0: i32, %arg1: i32) -> (i32, i32) {
    %c0_i32 = arith.constant 0 : i32
    %c0_i32_0 = arith.constant 0 : i32
    %c0_i32_1 = arith.constant 0 : i32
    return %c0_i32, %c0_i32_0 : i32, i32
  }
  func.func @transform_14(%arg0: i32, %arg1: i32) -> (i32, i32) {
    %c0_i32 = arith.constant 0 : i32
    %c0_i32_0 = arith.constant 0 : i32
    %c0_i32_1 = arith.constant 0 : i32
    return %c0_i32, %c0_i32_0 : i32, i32
  }
  func.func @transform_15(%arg0: i32, %arg1: i32) -> (i32, i32, i32) {
    %c0_i32 = arith.constant 0 : i32
    %c0_i32_0 = arith.constant 0 : i32
    %c0_i32_1 = arith.constant 0 : i32
    %c0_i32_2 = arith.constant 0 : i32
    return %c0_i32, %c0_i32_0, %c0_i32_1 : i32, i32, i32
  }
  func.func @transform_16(%arg0: i32, %arg1: i32) -> (i32, i32, i32) {
    %c0_i32 = arith.constant 0 : i32
    %c0_i32_0 = arith.constant 0 : i32
    %c0_i32_1 = arith.constant 0 : i32
    %c0_i32_2 = arith.constant 0 : i32
    return %c0_i32, %c0_i32_0, %c0_i32_1 : i32, i32, i32
  }
  func.func @transform_17(%arg0: i32, %arg1: i32) -> (i32, i32, i32) {
    %c0_i32 = arith.constant 0 : i32
    %c0_i32_0 = arith.constant 0 : i32
    %c0_i32_1 = arith.constant 0 : i32
    %c0_i32_2 = arith.constant 0 : i32
    return %c0_i32, %c0_i32_0, %c0_i32_1 : i32, i32, i32
  }
  func.func @transform_18(%arg0: i32, %arg1: i32) -> (i32, i32, i32) {
    %c0_i32 = arith.constant 0 : i32
    %c0_i32_0 = arith.constant 0 : i32
    %c0_i32_1 = arith.constant 0 : i32
    %c0_i32_2 = arith.constant 0 : i32
    return %c0_i32, %c0_i32_0, %c0_i32_1 : i32, i32, i32
  }
  func.func @transform_19(%arg0: i32, %arg1: i32) -> (i32, i32) {
    %c0_i32 = arith.constant 0 : i32
    %c0_i32_0 = arith.constant 0 : i32
    %c0_i32_1 = arith.constant 0 : i32
    return %c0_i32, %c0_i32_0 : i32, i32
  }
  func.func @transform_20(%arg0: i32, %arg1: i32) -> (i32, i32, i32, i32) {
    %c0_i32 = arith.constant 0 : i32
    %c0_i32_0 = arith.constant 0 : i32
    %c0_i32_1 = arith.constant 0 : i32
    return %arg0, %arg1, %c0_i32, %c0_i32_0 : i32, i32, i32, i32
  }
}

</mosaic_0001>

<llo_original>
// kernel: tpu_custom_call.1
$region0: #{tpu_custom_call.1}
  #allocation0 [shape = 'u32[]', space=smem, size = 0x4, offset = 0x4, fixed_abs, tag = 'smem constant byte address 0x4 - core index']
  #allocation1 [shape = 'u32[144,128]{1,0:T(1,128)}', space=vmem, size = 0x12000, scoped, tag = 'internal scratch']
  #allocation2 [shape = 'f32[8,32]{1,0:T(8,128)}', space=vmem, size = 0x1000, scoped, tag = 'scratch operand']
  %s0 = inlined_call_operand.vmem [shape: f32[2,8,8,1], index: 0, kind: input, shape index: {}]
  %s1 = inlined_call_operand.hbm [shape: f32[8,32], index: 1, kind: input, shape index: {}]
  %s2 = inlined_call_operand.vmem [shape: f32[40,8], index: 2, kind: input, shape index: {}]
  %s3 = inlined_call_operand.vmem [shape: f32[24,8], index: 3, kind: input, shape index: {}]
  %s4 = inlined_call_operand.vmem [shape: f32[32,12], index: 4, kind: input, shape index: {}]
  %s5 = inlined_call_operand.hbm [shape: f32[1,12], index: 5, kind: input, shape index: {}]
  %s6 = inlined_call_operand.hbm [shape: f32[1,32], index: 6, kind: input, shape index: {}]
  %s7 = inlined_call_operand.hbm [shape: f32[12,32], index: 7, kind: input, shape index: {}]
  %s8 = inlined_call_operand.vmem [shape: f32[32,32], index: 8, kind: input, shape index: {}]
  %s9 = inlined_call_operand.hbm [shape: f32[1,32], index: 9, kind: input, shape index: {}]
  %s10 = inlined_call_operand.hbm [shape: f32[3,32,32], index: 10, kind: input, shape index: {}]
  %s11 = inlined_call_operand.hbm [shape: f32[1,32], index: 11, kind: input, shape index: {}]
  %s12 = inlined_call_operand.vmem [shape: f32[32,12], index: 12, kind: input, shape index: {}]
  %s13 = inlined_call_operand.vmem [shape: f32[32,12], index: 13, kind: input, shape index: {}]
  %s14 = inlined_call_operand.vmem [shape: f32[1,12], index: 14, kind: input, shape index: {}]
  %s15 = inlined_call_operand.hbm [shape: f32[5,12,96], index: 15, kind: input, shape index: {}]
  %s16 = inlined_call_operand.vmem [shape: f32[5,32,96], index: 16, kind: input, shape index: {}]
  %s17 = inlined_call_operand.vmem [shape: f32[5,32,64], index: 17, kind: input, shape index: {}]
  %s18 = inlined_call_operand.hbm [shape: f32[5,32,32], index: 18, kind: input, shape index: {}]
  %s19 = inlined_call_operand.vmem [shape: f32[1,96], index: 19, kind: input, shape index: {}]
  %s20 = inlined_call_operand.hbm [shape: f32[2,8,8,128], index: 20, kind: output, shape index: {}]
  %s21 = sld [smem:[#allocation0]]
  $region153: #{tpu_custom_call.1} parent=0
    _
  %s23 = ssub.s32 1, %s21
  %s24 = scalar_select 0, %s23, %s21
  $region1: #{tpu_custom_call.1} parent=0
    #allocation3 [shape = 'u8[4096]{0}', space=vmem, size = 0x1000, scoped, tag = 'input window, operand 1, single buffered']
    #allocation4 [shape = 's32[2]{0}', space=sflag, size = 0x8, scoped, tag = 'scoped memory for tpu_custom_call.1']
    #allocation5 [shape = 's32[2]{0}', space=sflag, size = 0x8, scoped, tag = 'scoped memory for tpu_custom_call.1']
    #allocation6 [shape = 'u8[512]{0}', space=vmem, size = 0x400, scoped, tag = 'input window, operand 5, single buffered']
    #allocation7 [shape = 's32[1]{0}', space=sflag, size = 0x4, scoped, tag = 'scoped memory for tpu_custom_call.1']
    #allocation8 [shape = 'u8[512]{0}', space=vmem, size = 0x400, scoped, tag = 'input window, operand 6, single buffered']
    #allocation9 [shape = 'u8[8192]{0}', space=vmem, size = 0x2000, scoped, tag = 'input window, operand 7, single buffered']
    #allocation10 [shape = 's32[1]{0}', space=sflag, size = 0x4, scoped, tag = 'scoped memory for tpu_custom_call.1']
    #allocation11 [shape = 'u8[512]{0}', space=vmem, size = 0x400, scoped, tag = 'input window, operand 9, single buffered']
    #allocation12 [shape = 'u8[49152]{0}', space=vmem, size = 0xc000, scoped, tag = 'input window, operand 10, single buffered']
    #allocation13 [shape = 's32[1]{0}', space=sflag, size = 0x4, scoped, tag = 'scoped memory for tpu_custom_call.1']
    #allocation14 [shape = 'u8[512]{0}', space=vmem, size = 0x400, scoped, tag = 'input window, operand 11, single buffered']
    #allocation15 [shape = 'u8[40960]{0}', space=vmem, size = 0xa000, scoped, tag = 'input window, operand 15, single buffered']
    #allocation16 [shape = 's32[1]{0}', space=sflag, size = 0x4, scoped, tag = 'scoped memory for tpu_custom_call.1']
    #allocation17 [shape = 'u8[81920]{0}', space=vmem, size = 0x14000, scoped, tag = 'input window, operand 18, single buffered']
    #allocation18 [shape = 'u8[8192]{0}', space=vmem, size = 0x2000, scoped, tag = 'output window, operand 0']
    %25 = vsyncpa [#allocation4], 0
    %26 = vsyncpa [#allocation7], 0
    %27 = vsyncpa [#allocation10], 0
    %28 = vsyncpa [#allocation13], 0
    %29 = vsyncpa [#allocation16], 0
    %30 = vsyncpa [#allocation5], 0
    %s31 = scalar_lea.sflag [#allocation5], 1
    %32 = vsyncpa %s31, 0
    loop: start=0, step=1, limit=18
    $region2: #{tpu_custom_call.1} parent=1 // loop_pre_header
      _
    $region3: #{tpu_custom_call.1} parent=1 // loop_header
      %s34 = sphi 0, %s38
      %p35 = scmp.ge.s32.totalorder %s34, 18
      %s41 = sphi 0, %s53
      %s42 = sphi 0, %s49
      %s43 = sphi 0, %s41
      %s44 = sphi 0, %s42
      %s45 = sphi 0, %s43
      %s46 = sphi 0, %s44
      %s58 = sphi 0, %s60
      %s61 = sphi 0, %s58
      %s62 = sphi 0, %s61
      %s78 = sphi 0, %s62
      %s82 = sphi 0, %s82
      %s84 = sphi 0, %s82
      %s85 = sphi 0, %s84
      %s99 = sphi 0, %s85
      %s103 = sphi 0, %s103
      %s105 = sphi 0, %s103
      %s106 = sphi 0, %s105
      %s120 = sphi 0, %s106
      %s124 = sphi 0, %s124
      %s126 = sphi 0, %s124
      %s127 = sphi 0, %s126
      %s141 = sphi 0, %s127
      %s145 = sphi 0, %s145
      %s147 = sphi 0, %s145
      %s148 = sphi 0, %s147
      %s162 = sphi 0, %s148
      %s166 = sphi 0, %s166
      %s168 = sphi 0, %s166
      %s169 = sphi 0, %s168
      %s183 = sphi 0, %s169
      %s187 = sphi 0, %s187
      %s189 = sphi 0, %s187
      %s190 = sphi 0, %s189
      %s204 = sphi 0, %s190
      %s208 = sphi 0, %s208
      %s210 = sphi 0, %s208
      %s211 = sphi 0, %s210
      %s225 = sphi 0, %s211
      %s229 = sphi 0, %s229
      %s231 = sphi 0, %s229
      %s232 = sphi 0, %s231
      %s246 = sphi 0, %s232
      %s250 = sphi 0, %s250
      %s252 = sphi 0, %s250
      %s253 = sphi 0, %s252
      %s267 = sphi 0, %s253
      %s271 = sphi 0, %s271
      %s273 = sphi 0, %s271
      %s274 = sphi 0, %s273
      %s288 = sphi 0, %s274
      %s292 = sphi 0, %s292
      %s294 = sphi 0, %s292
      %s295 = sphi 0, %s294
      %s309 = sphi 0, %s295
      %s313 = sphi 0, %s313
      %s315 = sphi 0, %s313
      %s316 = sphi 0, %s315
      %s330 = sphi 0, %s316
      %s334 = sphi 0, %s334
      %s336 = sphi 0, %s334
      %s337 = sphi 0, %s336
      %s351 = sphi 0, %s337
      %s355 = sphi 0, %s355
      %s357 = sphi 0, %s355
      %s358 = sphi 0, %s357
      %s372 = sphi 0, %s358
      %s376 = sphi 0, %s376
      %s378 = sphi 0, %s376
      %s379 = sphi 0, %s378
      %s393 = sphi 0, %s379
      %s397 = sphi 0, %s397
      %s399 = sphi 0, %s397
      %s400 = sphi 0, %s399
      %s414 = sphi 0, %s400
      %s418 = sphi 0, %s418
      %s420 = sphi 0, %s418
      %s421 = sphi 0, %s420
      %s435 = sphi 0, %s421
      %s439 = sphi 0, %s439
      %s441 = sphi 0, %s439
      %s442 = sphi 0, %s441
      %s456 = sphi 0, %s442
      %s460 = sphi 0, %s460
      %s462 = sphi 0, %s460
      %s463 = sphi 0, %s462
      %s477 = sphi 0, %s463
      %s485 = sphi 0, %s487
      %s488 = sphi 0, %s485
      %s489 = sphi 0, %s488
      %s505 = sphi 0, %s489
    $region4: #{tpu_custom_call.1} parent=1 // loop_header_branch
      %37 = sbr.rel (%p35) target = $region8
    $region5: #{tpu_custom_call.1} parent=1 // loop_body
      %s39 = ssub.s32 %s34, 1
      %s40 = ssub.s32 %s34, 2
      %s47 = sadd.s32 1, %s42
      %p48 = scmp.ge.s32.totalorder %s47, 8
      %s49 = scalar_select %p48, 0, %s47
      %s50 = sadd.s32 1, %s41
      %s51 = scalar_select %p48, %s50, %s41
      %p52 = scmp.ge.s32.totalorder %s51, 2
      %s53 = scalar_select %p52, 0, %s51
      %s54 = ssub.s32 %s41, %s53
      %s55 = ssub.s32 %s42, %s49
      %s56 = sor.u32 %s54, %s55
      %p57 = scmp.eq.s32.totalorder %s56, 0
      %s59 = sadd.s32 %s58, 1
      %s60 = scalar_select %p57, %s58, %s59
      %p63 = pneg %p57
      %p64 = scmp.eq.s32.totalorder %s34, 15
      %p65 = por %p63, %p64
      %p66 = scmp.ne.s32.totalorder %s58, %s61
      %p67 = scmp.eq.s32.totalorder %s34, 0
      %p68 = por %p66, %p67
      %p69 = scmp.ne.s32.totalorder %s58, %s61
      %p70 = scmp.eq.s32.totalorder %s39, 15
      %p71 = por %p69, %p70
      %p72 = scmp.ne.s32.totalorder %s61, %s62
      %p73 = scmp.eq.s32.totalorder %s39, 0
      %p74 = por %p72, %p73
      %p75 = scmp.ne.s32.totalorder %s61, %s62
      %p76 = scmp.eq.s32.totalorder %s40, 15
      %p77 = por %p75, %p76
      %p79 = scmp.ne.s32.totalorder %s62, %s78
      %p80 = scmp.eq.s32.totalorder %s40, 0
      %p81 = por %p79, %p80
      %s83 = sadd.s32 %s82, 1
      %p86 = scmp.eq.s32.totalorder %s34, 15
      %p87 = scmp.ne.s32.totalorder %s82, %s84
      %p88 = scmp.eq.s32.totalorder %s34, 0
      %p89 = por %p87, %p88
      %p90 = scmp.ne.s32.totalorder %s82, %s84
      %p91 = scmp.eq.s32.totalorder %s39, 15
      %p92 = por %p90, %p91
      %p93 = scmp.ne.s32.totalorder %s84, %s85
      %p94 = scmp.eq.s32.totalorder %s39, 0
      %p95 = por %p93, %p94
      %p96 = scmp.ne.s32.totalorder %s84, %s85
      %p97 = scmp.eq.s32.totalorder %s40, 15
      %p98 = por %p96, %p97
      %p100 = scmp.ne.s32.totalorder %s85, %s99
      %p101 = scmp.eq.s32.totalorder %s40, 0
      %p102 = por %p100, %p101
      %s104 = sadd.s32 %s103, 1
      %p107 = scmp.eq.s32.totalorder %s34, 15
      %p108 = scmp.ne.s32.totalorder %s103, %s105
      %p109 = scmp.eq.s32.totalorder %s34, 0
      %p110 = por %p108, %p109
      %p111 = scmp.ne.s32.totalorder %s103, %s105
      %p112 = scmp.eq.s32.totalorder %s39, 15
      %p113 = por %p111, %p112
      %p114 = scmp.ne.s32.totalorder %s105, %s106
      %p115 = scmp.eq.s32.totalorder %s39, 0
      %p116 = por %p114, %p115
      %p117 = scmp.ne.s32.totalorder %s105, %s106
      %p118 = scmp.eq.s32.totalorder %s40, 15
      %p119 = por %p117, %p118
      %p121 = scmp.ne.s32.totalorder %s106, %s120
      %p122 = scmp.eq.s32.totalorder %s40, 0
      %p123 = por %p121, %p122
      %s125 = sadd.s32 %s124, 1
      %p128 = scmp.eq.s32.totalorder %s34, 15
      %p129 = scmp.ne.s32.totalorder %s124, %s126
      %p130 = scmp.eq.s32.totalorder %s34, 0
      %p131 = por %p129, %p130
      %p132 = scmp.ne.s32.totalorder %s124, %s126
      %p133 = scmp.eq.s32.totalorder %s39, 15
      %p134 = por %p132, %p133
      %p135 = scmp.ne.s32.totalorder %s126, %s127
      %p136 = scmp.eq.s32.totalorder %s39, 0
      %p137 = por %p135, %p136
      %p138 = scmp.ne.s32.totalorder %s126, %s127
      %p139 = scmp.eq.s32.totalorder %s40, 15
      %p140 = por %p138, %p139
      %p142 = scmp.ne.s32.totalorder %s127, %s141
      %p143 = scmp.eq.s32.totalorder %s40, 0
      %p144 = por %p142, %p143
      %s146 = sadd.s32 %s145, 1
      %p149 = scmp.eq.s32.totalorder %s34, 15
      %p150 = scmp.ne.s32.totalorder %s145, %s147
      %p151 = scmp.eq.s32.totalorder %s34, 0
      %p152 = por %p150, %p151
      %p153 = scmp.ne.s32.totalorder %s145, %s147
      %p154 = scmp.eq.s32.totalorder %s39, 15
      %p155 = por %p153, %p154
      %p156 = scmp.ne.s32.totalorder %s147, %s148
      %p157 = scmp.eq.s32.totalorder %s39, 0
      %p158 = por %p156, %p157
      %p159 = scmp.ne.s32.totalorder %s147, %s148
      %p160 = scmp.eq.s32.totalorder %s40, 15
      %p161 = por %p159, %p160
      %p163 = scmp.ne.s32.totalorder %s148, %s162
      %p164 = scmp.eq.s32.totalorder %s40, 0
      %p165 = por %p163, %p164
      %s167 = sadd.s32 %s166, 1
      %p170 = scmp.eq.s32.totalorder %s34, 15
      %p171 = scmp.ne.s32.totalorder %s166, %s168
      %p172 = scmp.eq.s32.totalorder %s34, 0
      %p173 = por %p171, %p172
      %p174 = scmp.ne.s32.totalorder %s166, %s168
      %p175 = scmp.eq.s32.totalorder %s39, 15
      %p176 = por %p174, %p175
      %p177 = scmp.ne.s32.totalorder %s168, %s169
      %p178 = scmp.eq.s32.totalorder %s39, 0
      %p179 = por %p177, %p178
      %p180 = scmp.ne.s32.totalorder %s168, %s169
      %p181 = scmp.eq.s32.totalorder %s40, 15
      %p182 = por %p180, %p181
      %p184 = scmp.ne.s32.totalorder %s169, %s183
      %p185 = scmp.eq.s32.totalorder %s40, 0
      %p186 = por %p184, %p185
      %s188 = sadd.s32 %s187, 1
      %p191 = scmp.eq.s32.totalorder %s34, 15
      %p192 = scmp.ne.s32.totalorder %s187, %s189
      %p193 = scmp.eq.s32.totalorder %s34, 0
      %p194 = por %p192, %p193
      %p195 = scmp.ne.s32.totalorder %s187, %s189
      %p196 = scmp.eq.s32.totalorder %s39, 15
      %p197 = por %p195, %p196
      %p198 = scmp.ne.s32.totalorder %s189, %s190
      %p199 = scmp.eq.s32.totalorder %s39, 0
      %p200 = por %p198, %p199
      %p201 = scmp.ne.s32.totalorder %s189, %s190
      %p202 = scmp.eq.s32.totalorder %s40, 15
      %p203 = por %p201, %p202
      %p205 = scmp.ne.s32.totalorder %s190, %s204
      %p206 = scmp.eq.s32.totalorder %s40, 0
      %p207 = por %p205, %p206
      %s209 = sadd.s32 %s208, 1
      %p212 = scmp.eq.s32.totalorder %s34, 15
      %p213 = scmp.ne.s32.totalorder %s208, %s210
      %p214 = scmp.eq.s32.totalorder %s34, 0
      %p215 = por %p213, %p214
      %p216 = scmp.ne.s32.totalorder %s208, %s210
      %p217 = scmp.eq.s32.totalorder %s39, 15
      %p218 = por %p216, %p217
      %p219 = scmp.ne.s32.totalorder %s210, %s211
      %p220 = scmp.eq.s32.totalorder %s39, 0
      %p221 = por %p219, %p220
      %p222 = scmp.ne.s32.totalorder %s210, %s211
      %p223 = scmp.eq.s32.totalorder %s40, 15
      %p224 = por %p222, %p223
      %p226 = scmp.ne.s32.totalorder %s211, %s225
      %p227 = scmp.eq.s32.totalorder %s40, 0
      %p228 = por %p226, %p227
      %s230 = sadd.s32 %s229, 1
      %p233 = scmp.eq.s32.totalorder %s34, 15
      %p234 = scmp.ne.s32.totalorder %s229, %s231
      %p235 = scmp.eq.s32.totalorder %s34, 0
      %p236 = por %p234, %p235
      %p237 = scmp.ne.s32.totalorder %s229, %s231
      %p238 = scmp.eq.s32.totalorder %s39, 15
      %p239 = por %p237, %p238
      %p240 = scmp.ne.s32.totalorder %s231, %s232
      %p241 = scmp.eq.s32.totalorder %s39, 0
      %p242 = por %p240, %p241
      %p243 = scmp.ne.s32.totalorder %s231, %s232
      %p244 = scmp.eq.s32.totalorder %s40, 15
      %p245 = por %p243, %p244
      %p247 = scmp.ne.s32.totalorder %s232, %s246
      %p248 = scmp.eq.s32.totalorder %s40, 0
      %p249 = por %p247, %p248
      %s251 = sadd.s32 %s250, 1
      %p254 = scmp.eq.s32.totalorder %s34, 15
      %p255 = scmp.ne.s32.totalorder %s250, %s252
      %p256 = scmp.eq.s32.totalorder %s34, 0
      %p257 = por %p255, %p256
      %p258 = scmp.ne.s32.totalorder %s250, %s252
      %p259 = scmp.eq.s32.totalorder %s39, 15
      %p260 = por %p258, %p259
      %p261 = scmp.ne.s32.totalorder %s252, %s253
      %p262 = scmp.eq.s32.totalorder %s39, 0
      %p263 = por %p261, %p262
      %p264 = scmp.ne.s32.totalorder %s252, %s253
      %p265 = scmp.eq.s32.totalorder %s40, 15
      %p266 = por %p264, %p265
      %p268 = scmp.ne.s32.totalorder %s253, %s267
      %p269 = scmp.eq.s32.totalorder %s40, 0
      %p270 = por %p268, %p269
      %s272 = sadd.s32 %s271, 1
      %p275 = scmp.eq.s32.totalorder %s34, 15
      %p276 = scmp.ne.s32.totalorder %s271, %s273
      %p277 = scmp.eq.s32.totalorder %s34, 0
      %p278 = por %p276, %p277
      %p279 = scmp.ne.s32.totalorder %s271, %s273
      %p280 = scmp.eq.s32.totalorder %s39, 15
      %p281 = por %p279, %p280
      %p282 = scmp.ne.s32.totalorder %s273, %s274
      %p283 = scmp.eq.s32.totalorder %s39, 0
      %p284 = por %p282, %p283
      %p285 = scmp.ne.s32.totalorder %s273, %s274
      %p286 = scmp.eq.s32.totalorder %s40, 15
      %p287 = por %p285, %p286
      %p289 = scmp.ne.s32.totalorder %s274, %s288
      %p290 = scmp.eq.s32.totalorder %s40, 0
      %p291 = por %p289, %p290
      %s293 = sadd.s32 %s292, 1
      %p296 = scmp.eq.s32.totalorder %s34, 15
      %p297 = scmp.ne.s32.totalorder %s292, %s294
      %p298 = scmp.eq.s32.totalorder %s34, 0
      %p299 = por %p297, %p298
      %p300 = scmp.ne.s32.totalorder %s292, %s294
      %p301 = scmp.eq.s32.totalorder %s39, 15
      %p302 = por %p300, %p301
      %p303 = scmp.ne.s32.totalorder %s294, %s295
      %p304 = scmp.eq.s32.totalorder %s39, 0
      %p305 = por %p303, %p304
      %p306 = scmp.ne.s32.totalorder %s294, %s295
      %p307 = scmp.eq.s32.totalorder %s40, 15
      %p308 = por %p306, %p307
      %p310 = scmp.ne.s32.totalorder %s295, %s309
      %p311 = scmp.eq.s32.totalorder %s40, 0
      %p312 = por %p310, %p311
      %s314 = sadd.s32 %s313, 1
      %p317 = scmp.eq.s32.totalorder %s34, 15
      %p318 = scmp.ne.s32.totalorder %s313, %s315
      %p319 = scmp.eq.s32.totalorder %s34, 0
      %p320 = por %p318, %p319
      %p321 = scmp.ne.s32.totalorder %s313, %s315
      %p322 = scmp.eq.s32.totalorder %s39, 15
      %p323 = por %p321, %p322
      %p324 = scmp.ne.s32.totalorder %s315, %s316
      %p325 = scmp.eq.s32.totalorder %s39, 0
      %p326 = por %p324, %p325
      %p327 = scmp.ne.s32.totalorder %s315, %s316
      %p328 = scmp.eq.s32.totalorder %s40, 15
      %p329 = por %p327, %p328
      %p331 = scmp.ne.s32.totalorder %s316, %s330
      %p332 = scmp.eq.s32.totalorder %s40, 0
      %p333 = por %p331, %p332
      %s335 = sadd.s32 %s334, 1
      %p338 = scmp.eq.s32.totalorder %s34, 15
      %p339 = scmp.ne.s32.totalorder %s334, %s336
      %p340 = scmp.eq.s32.totalorder %s34, 0
      %p341 = por %p339, %p340
      %p342 = scmp.ne.s32.totalorder %s334, %s336
      %p343 = scmp.eq.s32.totalorder %s39, 15
      %p344 = por %p342, %p343
      %p345 = scmp.ne.s32.totalorder %s336, %s337
      %p346 = scmp.eq.s32.totalorder %s39, 0
      %p347 = por %p345, %p346
      %p348 = scmp.ne.s32.totalorder %s336, %s337
      %p349 = scmp.eq.s32.totalorder %s40, 15
      %p350 = por %p348, %p349
      %p352 = scmp.ne.s32.totalorder %s337, %s351
      %p353 = scmp.eq.s32.totalorder %s40, 0
      %p354 = por %p352, %p353
      %s356 = sadd.s32 %s355, 1
      %p359 = scmp.eq.s32.totalorder %s34, 15
      %p360 = scmp.ne.s32.totalorder %s355, %s357
      %p361 = scmp.eq.s32.totalorder %s34, 0
      %p362 = por %p360, %p361
      %p363 = scmp.ne.s32.totalorder %s355, %s357
      %p364 = scmp.eq.s32.totalorder %s39, 15
      %p365 = por %p363, %p364
      %p366 = scmp.ne.s32.totalorder %s357, %s358
      %p367 = scmp.eq.s32.totalorder %s39, 0
      %p368 = por %p366, %p367
      %p369 = scmp.ne.s32.totalorder %s357, %s358
      %p370 = scmp.eq.s32.totalorder %s40, 15
      %p371 = por %p369, %p370
      %p373 = scmp.ne.s32.totalorder %s358, %s372
      %p374 = scmp.eq.s32.totalorder %s40, 0
      %p375 = por %p373, %p374
      %s377 = sadd.s32 %s376, 1
      %p380 = scmp.eq.s32.totalorder %s34, 15
      %p381 = scmp.ne.s32.totalorder %s376, %s378
      %p382 = scmp.eq.s32.totalorder %s34, 0
      %p383 = por %p381, %p382
      %p384 = scmp.ne.s32.totalorder %s376, %s378
      %p385 = scmp.eq.s32.totalorder %s39, 15
      %p386 = por %p384, %p385
      %p387 = scmp.ne.s32.totalorder %s378, %s379
      %p388 = scmp.eq.s32.totalorder %s39, 0
      %p389 = por %p387, %p388
      %p390 = scmp.ne.s32.totalorder %s378, %s379
      %p391 = scmp.eq.s32.totalorder %s40, 15
      %p392 = por %p390, %p391
      %p394 = scmp.ne.s32.totalorder %s379, %s393
      %p395 = scmp.eq.s32.totalorder %s40, 0
      %p396 = por %p394, %p395
      %s398 = sadd.s32 %s397, 1
      %p401 = scmp.eq.s32.totalorder %s34, 15
      %p402 = scmp.ne.s32.totalorder %s397, %s399
      %p403 = scmp.eq.s32.totalorder %s34, 0
      %p404 = por %p402, %p403
      %p405 = scmp.ne.s32.totalorder %s397, %s399
      %p406 = scmp.eq.s32.totalorder %s39, 15
      %p407 = por %p405, %p406
      %p408 = scmp.ne.s32.totalorder %s399, %s400
      %p409 = scmp.eq.s32.totalorder %s39, 0
      %p410 = por %p408, %p409
      %p411 = scmp.ne.s32.totalorder %s399, %s400
      %p412 = scmp.eq.s32.totalorder %s40, 15
      %p413 = por %p411, %p412
      %p415 = scmp.ne.s32.totalorder %s400, %s414
      %p416 = scmp.eq.s32.totalorder %s40, 0
      %p417 = por %p415, %p416
      %s419 = sadd.s32 %s418, 1
      %p422 = scmp.eq.s32.totalorder %s34, 15
      %p423 = scmp.ne.s32.totalorder %s418, %s420
      %p424 = scmp.eq.s32.totalorder %s34, 0
      %p425 = por %p423, %p424
      %p426 = scmp.ne.s32.totalorder %s418, %s420
      %p427 = scmp.eq.s32.totalorder %s39, 15
      %p428 = por %p426, %p427
      %p429 = scmp.ne.s32.totalorder %s420, %s421
      %p430 = scmp.eq.s32.totalorder %s39, 0
      %p431 = por %p429, %p430
      %p432 = scmp.ne.s32.totalorder %s420, %s421
      %p433 = scmp.eq.s32.totalorder %s40, 15
      %p434 = por %p432, %p433
      %p436 = scmp.ne.s32.totalorder %s421, %s435
      %p437 = scmp.eq.s32.totalorder %s40, 0
      %p438 = por %p436, %p437
      %s440 = sadd.s32 %s439, 1
      %p443 = scmp.eq.s32.totalorder %s34, 15
      %p444 = scmp.ne.s32.totalorder %s439, %s441
      %p445 = scmp.eq.s32.totalorder %s34, 0
      %p446 = por %p444, %p445
      %p447 = scmp.ne.s32.totalorder %s439, %s441
      %p448 = scmp.eq.s32.totalorder %s39, 15
      %p449 = por %p447, %p448
      %p450 = scmp.ne.s32.totalorder %s441, %s442
      %p451 = scmp.eq.s32.totalorder %s39, 0
      %p452 = por %p450, %p451
      %p453 = scmp.ne.s32.totalorder %s441, %s442
      %p454 = scmp.eq.s32.totalorder %s40, 15
      %p455 = por %p453, %p454
      %p457 = scmp.ne.s32.totalorder %s442, %s456
      %p458 = scmp.eq.s32.totalorder %s40, 0
      %p459 = por %p457, %p458
      %s461 = sadd.s32 %s460, 1
      %p464 = scmp.eq.s32.totalorder %s34, 15
      %p465 = scmp.ne.s32.totalorder %s460, %s462
      %p466 = scmp.eq.s32.totalorder %s34, 0
      %p467 = por %p465, %p466
      %p468 = scmp.ne.s32.totalorder %s460, %s462
      %p469 = scmp.eq.s32.totalorder %s39, 15
      %p470 = por %p468, %p469
      %p471 = scmp.ne.s32.totalorder %s462, %s463
      %p472 = scmp.eq.s32.totalorder %s39, 0
      %p473 = por %p471, %p472
      %p474 = scmp.ne.s32.totalorder %s462, %s463
      %p475 = scmp.eq.s32.totalorder %s40, 15
      %p476 = por %p474, %p475
      %p478 = scmp.ne.s32.totalorder %s463, %s477
      %p479 = scmp.eq.s32.totalorder %s40, 0
      %p480 = por %p478, %p479
      %s481 = ssub.s32 %s41, %s53
      %s482 = ssub.s32 %s42, %s49
      %s483 = sor.u32 %s481, %s482
      %p484 = scmp.eq.s32.totalorder %s483, 0
      %s486 = sadd.s32 %s485, 1
      %s487 = scalar_select %p484, %s485, %s486
      %p490 = pneg %p484
      %p491 = scmp.eq.s32.totalorder %s34, 15
      %p492 = por %p490, %p491
      %p493 = scmp.ne.s32.totalorder %s485, %s488
      %p494 = scmp.eq.s32.totalorder %s34, 0
      %p495 = por %p493, %p494
      %p496 = scmp.ne.s32.totalorder %s485, %s488
      %p497 = scmp.eq.s32.totalorder %s39, 15
      %p498 = por %p496, %p497
      %p499 = scmp.ne.s32.totalorder %s488, %s489
      %p500 = scmp.eq.s32.totalorder %s39, 0
      %p501 = por %p499, %p500
      %p502 = scmp.ne.s32.totalorder %s488, %s489
      %p503 = scmp.eq.s32.totalorder %s40, 15
      %p504 = por %p502, %p503
      %p506 = scmp.ne.s32.totalorder %s489, %s505
      %p507 = scmp.eq.s32.totalorder %s40, 0
      %p508 = por %p506, %p507
      %p509 = scmp.le.s32.totalorder 1, %s34
      %p510 = scmp.lt.s32.totalorder %s34, 17
      %p511 = pnand %p509, %p510
      %p512 = pneg %p511
      // Predicated region
      $region9: #{tpu_custom_call.1} parent=5 // pred_check
        _
      $region10: #{tpu_custom_call.1} parent=5 // pred_check_branch
        %514 = sbr.rel (%p511) target = $region12
      $region11: #{tpu_custom_call.1} parent=5 // pred_region
        %s515 = ssub.s32 %s34, 1
        // Predicated region
        $region13: #{tpu_custom_call.1} parent=11 // pred_check
          %p516 = pneg %p95
        $region14: #{tpu_custom_call.1} parent=11 // pred_check_branch
          %518 = sbr.rel (%p516) target = $region16
        $region15: #{tpu_custom_call.1} parent=11 // pred_region
          %s520 = ssub.s32 128, 128
          %521 = vsyncadd [#allocation4], %s520
          %s523 = sshll.u32 [#allocation3], 4
          %s524 = int_to_ptr.vmem [resolvable:$true] %s523
          %526 = dma.hbm_to_vmem [thread:$0]  %s1, 128, %s524, [#allocation4]
        $region16: #{tpu_custom_call.1} parent=11 // pred_fallthru
          _
        // Predicated region
        $region17: #{tpu_custom_call.1} parent=11 // pred_check
          %p527 = pneg %p116
        $region18: #{tpu_custom_call.1} parent=11 // pred_check_branch
          %529 = sbr.rel (%p527) target = $region20
        $region19: #{tpu_custom_call.1} parent=11 // pred_region
          _
        $region20: #{tpu_custom_call.1} parent=11 // pred_fallthru
          _
        // Predicated region
        $region21: #{tpu_custom_call.1} parent=11 // pred_check
          %p530 = pneg %p137
        $region22: #{tpu_custom_call.1} parent=11 // pred_check_branch
          %532 = sbr.rel (%p530) target = $region24
        $region23: #{tpu_custom_call.1} parent=11 // pred_region
          _
        $region24: #{tpu_custom_call.1} parent=11 // pred_fallthru
          _
        // Predicated region
        $region25: #{tpu_custom_call.1} parent=11 // pred_check
          %p533 = pneg %p158
        $region26: #{tpu_custom_call.1} parent=11 // pred_check_branch
          %535 = sbr.rel (%p533) target = $region28
        $region27: #{tpu_custom_call.1} parent=11 // pred_region
          _
        $region28: #{tpu_custom_call.1} parent=11 // pred_fallthru
          _
        // Predicated region
        $region29: #{tpu_custom_call.1} parent=11 // pred_check
          %p536 = pneg %p179
        $region30: #{tpu_custom_call.1} parent=11 // pred_check_branch
          %538 = sbr.rel (%p536) target = $region32
        $region31: #{tpu_custom_call.1} parent=11 // pred_region
          %s540 = ssub.s32 16, 16
          %541 = vsyncadd [#allocation7], %s540
          %s543 = sshll.u32 [#allocation6], 4
          %s544 = int_to_ptr.vmem [resolvable:$true] %s543
          %546 = dma.hbm_to_vmem [thread:$0]  %s5, 16, %s544, [#allocation7]
        $region32: #{tpu_custom_call.1} parent=11 // pred_fallthru
          _
        // Predicated region
        $region33: #{tpu_custom_call.1} parent=11 // pred_check
          %p547 = pneg %p200
        $region34: #{tpu_custom_call.1} parent=11 // pred_check_branch
          %549 = sbr.rel (%p547) target = $region36
        $region35: #{tpu_custom_call.1} parent=11 // pred_region
          %s551 = ssub.s32 16, 16
          %552 = vsyncadd [#allocation7], %s551
          %s554 = sshll.u32 [#allocation8], 4
          %s555 = int_to_ptr.vmem [resolvable:$true] %s554
          %557 = dma.hbm_to_vmem [thread:$0]  %s6, 16, %s555, [#allocation7]
        $region36: #{tpu_custom_call.1} parent=11 // pred_fallthru
          _
        // Predicated region
        $region37: #{tpu_custom_call.1} parent=11 // pred_check
          %p558 = pneg %p221
        $region38: #{tpu_custom_call.1} parent=11 // pred_check_branch
          %560 = sbr.rel (%p558) target = $region40
        $region39: #{tpu_custom_call.1} parent=11 // pred_region
          %s562 = ssub.s32 256, 256
          %563 = vsyncadd [#allocation10], %s562
          %s564 = sshll.u32 [#allocation9], 4
          %s565 = int_to_ptr.vmem [resolvable:$true] %s564
          %570 = dma.hbm_to_vmem [thread:$0]  %s7, 256, %s565, [#allocation10], 128, 128, 8
        $region40: #{tpu_custom_call.1} parent=11 // pred_fallthru
          _
        // Predicated region
        $region41: #{tpu_custom_call.1} parent=11 // pred_check
          %p571 = pneg %p242
        $region42: #{tpu_custom_call.1} parent=11 // pred_check_branch
          %573 = sbr.rel (%p571) target = $region44
        $region43: #{tpu_custom_call.1} parent=11 // pred_region
          _
        $region44: #{tpu_custom_call.1} parent=11 // pred_fallthru
          _
        // Predicated region
        $region45: #{tpu_custom_call.1} parent=11 // pred_check
          %p574 = pneg %p263
        $region46: #{tpu_custom_call.1} parent=11 // pred_check_branch
          %576 = sbr.rel (%p574) target = $region48
        $region47: #{tpu_custom_call.1} parent=11 // pred_region
          %s578 = ssub.s32 16, 16
          %579 = vsyncadd [#allocation10], %s578
          %s581 = sshll.u32 [#allocation11], 4
          %s582 = int_to_ptr.vmem [resolvable:$true] %s581
          %584 = dma.hbm_to_vmem [thread:$0]  %s9, 16, %s582, [#allocation10]
        $region48: #{tpu_custom_call.1} parent=11 // pred_fallthru
          _
        // Predicated region
        $region49: #{tpu_custom_call.1} parent=11 // pred_check
          %p585 = pneg %p284
        $region50: #{tpu_custom_call.1} parent=11 // pred_check_branch
          %587 = sbr.rel (%p585) target = $region52
        $region51: #{tpu_custom_call.1} parent=11 // pred_region
          %s589 = ssub.s32 1536, 1536
          %590 = vsyncadd [#allocation13], %s589
          %s591 = sshll.u32 [#allocation12], 4
          %s592 = int_to_ptr.vmem [resolvable:$true] %s591
          %597 = dma.hbm_to_vmem [thread:$0]  %s10, 1536, %s592, [#allocation13], 128, 128, 8
        $region52: #{tpu_custom_call.1} parent=11 // pred_fallthru
          _
        // Predicated region
        $region53: #{tpu_custom_call.1} parent=11 // pred_check
          %p598 = pneg %p305
        $region54: #{tpu_custom_call.1} parent=11 // pred_check_branch
          %600 = sbr.rel (%p598) target = $region56
        $region55: #{tpu_custom_call.1} parent=11 // pred_region
          %s602 = ssub.s32 16, 16
          %603 = vsyncadd [#allocation13], %s602
          %s605 = sshll.u32 [#allocation14], 4
          %s606 = int_to_ptr.vmem [resolvable:$true] %s605
          %608 = dma.hbm_to_vmem [thread:$0]  %s11, 16, %s606, [#allocation13]
        $region56: #{tpu_custom_call.1} parent=11 // pred_fallthru
          _
        // Predicated region
        $region57: #{tpu_custom_call.1} parent=11 // pred_check
          %p609 = pneg %p326
        $region58: #{tpu_custom_call.1} parent=11 // pred_check_branch
          %611 = sbr.rel (%p609) target = $region60
        $region59: #{tpu_custom_call.1} parent=11 // pred_region
          _
        $region60: #{tpu_custom_call.1} parent=11 // pred_fallthru
          _
        // Predicated region
        $region61: #{tpu_custom_call.1} parent=11 // pred_check
          %p612 = pneg %p347
        $region62: #{tpu_custom_call.1} parent=11 // pred_check_branch
          %614 = sbr.rel (%p612) target = $region64
        $region63: #{tpu_custom_call.1} parent=11 // pred_region
          _
        $region64: #{tpu_custom_call.1} parent=11 // pred_fallthru
          _
        // Predicated region
        $region65: #{tpu_custom_call.1} parent=11 // pred_check
          %p615 = pneg %p368
        $region66: #{tpu_custom_call.1} parent=11 // pred_check_branch
          %617 = sbr.rel (%p615) target = $region68
        $region67: #{tpu_custom_call.1} parent=11 // pred_region
          _
        $region68: #{tpu_custom_call.1} parent=11 // pred_fallthru
          _
        // Predicated region
        $region69: #{tpu_custom_call.1} parent=11 // pred_check
          %p618 = pneg %p389
        $region70: #{tpu_custom_call.1} parent=11 // pred_check_branch
          %620 = sbr.rel (%p618) target = $region72
        $region71: #{tpu_custom_call.1} parent=11 // pred_region
          %s622 = ssub.s32 1280, 1280
          %623 = vsyncadd [#allocation16], %s622
          %s624 = sshll.u32 [#allocation15], 4
          %s625 = int_to_ptr.vmem [resolvable:$true] %s624
          %630 = dma.hbm_to_vmem [thread:$0]  %s15, 1280, %s625, [#allocation16], 128, 128, 8
        $region72: #{tpu_custom_call.1} parent=11 // pred_fallthru
          _
        // Predicated region
        $region73: #{tpu_custom_call.1} parent=11 // pred_check
          %p631 = pneg %p410
        $region74: #{tpu_custom_call.1} parent=11 // pred_check_branch
          %633 = sbr.rel (%p631) target = $region76
        $region75: #{tpu_custom_call.1} parent=11 // pred_region
          _
        $region76: #{tpu_custom_call.1} parent=11 // pred_fallthru
          _
        // Predicated region
        $region77: #{tpu_custom_call.1} parent=11 // pred_check
          %p634 = pneg %p431
        $region78: #{tpu_custom_call.1} parent=11 // pred_check_branch
          %636 = sbr.rel (%p634) target = $region80
        $region79: #{tpu_custom_call.1} parent=11 // pred_region
          _
        $region80: #{tpu_custom_call.1} parent=11 // pred_fallthru
          _
        // Predicated region
        $region81: #{tpu_custom_call.1} parent=11 // pred_check
          %p637 = pneg %p452
        $region82: #{tpu_custom_call.1} parent=11 // pred_check_branch
          %639 = sbr.rel (%p637) target = $region84
        $region83: #{tpu_custom_call.1} parent=11 // pred_region
          %s641 = ssub.s32 2560, 2560
          %642 = vsyncadd [#allocation16], %s641
          %s643 = sshll.u32 [#allocation17], 4
          %s644 = int_to_ptr.vmem [resolvable:$true] %s643
          %649 = dma.hbm_to_vmem [thread:$0]  %s18, 2560, %s644, [#allocation16], 128, 128, 8
        $region84: #{tpu_custom_call.1} parent=11 // pred_fallthru
          _
        // Predicated region
        $region85: #{tpu_custom_call.1} parent=11 // pred_check
          %p650 = pneg %p473
        $region86: #{tpu_custom_call.1} parent=11 // pred_check_branch
          %652 = sbr.rel (%p650) target = $region88
        $region87: #{tpu_custom_call.1} parent=11 // pred_region
          _
        $region88: #{tpu_custom_call.1} parent=11 // pred_fallthru
          _
      $region12: #{tpu_custom_call.1} parent=5 // pred_fallthru
        _
      %p653 = scmp.lt.s32.totalorder %s34, 16
      // Predicated region
      $region89: #{tpu_custom_call.1} parent=5 // pred_check
        %p654 = pneg %p653
      $region90: #{tpu_custom_call.1} parent=5 // pred_check_branch
        %656 = sbr.rel (%p654) target = $region92
      $region91: #{tpu_custom_call.1} parent=5 // pred_region
        // Predicated region
        $region93: #{tpu_custom_call.1} parent=91 // pred_check
          %p657 = pneg %p68
        $region94: #{tpu_custom_call.1} parent=91 // pred_check_branch
          %659 = sbr.rel (%p657) target = $region96
        $region95: #{tpu_custom_call.1} parent=91 // pred_region
          %p660 = scmp.lt.s32.totalorder %s41, 1
          %s661 = scalar_select %p660, %s41, 1
          %p662 = scmp.lt.s32.totalorder %s42, 7
          %s663 = scalar_select %p662, %s42, 7
          %s664 = smul.addr %s661, 8
          %s665 = sadd.s32 %s663, %s664
          %s666 = smul.addr %s665, 8
          %s667 = scalar_lea.vmem %s0, %s666
        $region96: #{tpu_custom_call.1} parent=91 // pred_fallthru
          _
      $region92: #{tpu_custom_call.1} parent=5 // pred_fallthru
        _
      %p668 = scmp.le.s32.totalorder 1, %s34
      %p669 = scmp.lt.s32.totalorder %s34, 17
      %p670 = pnand %p668, %p669
      %p671 = pneg %p670
      // Predicated region
      $region97: #{tpu_custom_call.1} parent=5 // pred_check
        _
      $region98: #{tpu_custom_call.1} parent=5 // pred_check_branch
        %673 = sbr.rel (%p670) target = $region100
      $region99: #{tpu_custom_call.1} parent=5 // pred_region
        %s674 = ssub.s32 %s34, 1
        // Predicated region
        $region101: #{tpu_custom_call.1} parent=99 // pred_check
          %p675 = pneg %p95
        $region102: #{tpu_custom_call.1} parent=99 // pred_check_branch
          %677 = sbr.rel (%p675) target = $region104
        $region103: #{tpu_custom_call.1} parent=99 // pred_region
          %678 = dma.done [#allocation4], 128
        $region104: #{tpu_custom_call.1} parent=99 // pred_fallthru
          _
        // Predicated region
        $region105: #{tpu_custom_call.1} parent=99 // pred_check
          %p679 = pneg %p179
        $region106: #{tpu_custom_call.1} parent=99 // pred_check_branch
          %681 = sbr.rel (%p679) target = $region108
        $region107: #{tpu_custom_call.1} parent=99 // pred_region
          %682 = dma.done [#allocation7], 16
        $region108: #{tpu_custom_call.1} parent=99 // pred_fallthru
          _
        // Predicated region
        $region109: #{tpu_custom_call.1} parent=99 // pred_check
          %p683 = pneg %p200
        $region110: #{tpu_custom_call.1} parent=99 // pred_check_branch
          %685 = sbr.rel (%p683) target = $region112
        $region111: #{tpu_custom_call.1} parent=99 // pred_region
          %686 = dma.done [#allocation7], 16
        $region112: #{tpu_custom_call.1} parent=99 // pred_fallthru
          _
        // Predicated region
        $region113: #{tpu_custom_call.1} parent=99 // pred_check
          %p687 = pneg %p221
        $region114: #{tpu_custom_call.1} parent=99 // pred_check_branch
          %689 = sbr.rel (%p687) target = $region116
        $region115: #{tpu_custom_call.1} parent=99 // pred_region
          %690 = dma.done [#allocation10], 256
        $region116: #{tpu_custom_call.1} parent=99 // pred_fallthru
          _
        // Predicated region
        $region117: #{tpu_custom_call.1} parent=99 // pred_check
          %p691 = pneg %p263
        $region118: #{tpu_custom_call.1} parent=99 // pred_check_branch
          %693 = sbr.rel (%p691) target = $region120
        $region119: #{tpu_custom_call.1} parent=99 // pred_region
          %694 = dma.done [#allocation10], 16
        $region120: #{tpu_custom_call.1} parent=99 // pred_fallthru
          _
        // Predicated region
        $region121: #{tpu_custom_call.1} parent=99 // pred_check
          %p695 = pneg %p284
        $region122: #{tpu_custom_call.1} parent=99 // pred_check_branch
          %697 = sbr.rel (%p695) target = $region124
        $region123: #{tpu_custom_call.1} parent=99 // pred_region
          %698 = dma.done [#allocation13], 1536
        $region124: #{tpu_custom_call.1} parent=99 // pred_fallthru
          _
        // Predicated region
        $region125: #{tpu_custom_call.1} parent=99 // pred_check
          %p699 = pneg %p305
        $region126: #{tpu_custom_call.1} parent=99 // pred_check_branch
          %701 = sbr.rel (%p699) target = $region128
        $region127: #{tpu_custom_call.1} parent=99 // pred_region
          %702 = dma.done [#allocation13], 16
        $region128: #{tpu_custom_call.1} parent=99 // pred_fallthru
          _
        // Predicated region
        $region129: #{tpu_custom_call.1} parent=99 // pred_check
          %p703 = pneg %p389
        $region130: #{tpu_custom_call.1} parent=99 // pred_check_branch
          %705 = sbr.rel (%p703) target = $region132
        $region131: #{tpu_custom_call.1} parent=99 // pred_region
          %706 = dma.done [#allocation16], 1280
        $region132: #{tpu_custom_call.1} parent=99 // pred_fallthru
          _
        // Predicated region
        $region133: #{tpu_custom_call.1} parent=99 // pred_check
          %p707 = pneg %p452
        $region134: #{tpu_custom_call.1} parent=99 // pred_check_branch
          %709 = sbr.rel (%p707) target = $region136
        $region135: #{tpu_custom_call.1} parent=99 // pred_region
          %710 = dma.done [#allocation16], 2560
        $region136: #{tpu_custom_call.1} parent=99 // pred_fallthru
          _
        %p711 = scmp.lt.s32.totalorder %s43, 1
        %s712 = scalar_select %p711, %s43, 1
        %p713 = scmp.lt.s32.totalorder %s44, 7
        %s714 = scalar_select %p713, %s44, 7
        %s715 = smul.addr %s712, 8
        %s716 = sadd.s32 %s714, %s715
        %s717 = smul.addr %s716, 8
        %s718 = scalar_lea.vmem %s0, %s717
        %p719 = pneg %p74
        %p720 = pneg %p71
        %p721 = pneg %p95
        %p722 = pneg %p92
        %p723 = pneg %p116
        %p724 = pneg %p113
        %p725 = pneg %p137
        %p726 = pneg %p134
        %p727 = pneg %p158
        %p728 = pneg %p155
        %p729 = pneg %p179
        %p730 = pneg %p176
        %p731 = pneg %p200
        %p732 = pneg %p197
        %p733 = pneg %p221
        %p734 = pneg %p218
        %p735 = pneg %p242
        %p736 = pneg %p239
        %p737 = pneg %p263
        %p738 = pneg %p260
        %p739 = pneg %p284
        %p740 = pneg %p281
        %p741 = pneg %p305
        %p742 = pneg %p302
        %p743 = pneg %p326
        %p744 = pneg %p323
        %p745 = pneg %p347
        %p746 = pneg %p344
        %p747 = pneg %p368
        %p748 = pneg %p365
        %p749 = pneg %p389
        %p750 = pneg %p386
        %p751 = pneg %p410
        %p752 = pneg %p407
        %p753 = pneg %p431
        %p754 = pneg %p428
        %p755 = pneg %p452
        %p756 = pneg %p449
        %p757 = pneg %p473
        %p758 = pneg %p470
        %p759 = pneg %p501
        %p760 = pneg %p498
        %s761 = sand.u32 %s488, 1
        %s762 = scalar_lea.sflag [#allocation5], %s761
        %s763 = sand.u32 %s488, 1
        %s764 = smul.addr %s763, 8
        %s765 = scalar_lea.vmem [#allocation18], %s764
        %p766 = scmp.lt.s32.totalorder %s43, 1
        %s767 = scalar_select %p766, %s43, 1
        %p768 = scmp.lt.s32.totalorder %s44, 7
        %s769 = scalar_select %p768, %s44, 7
        %s770 = smul.addr %s767, 8
        %s771 = sadd.s32 %s769, %s770
        %s772 = smul.addr %s771, 8
        %s773 = scalar_lea.vmem %s0, %s772
        %p774 = scmp.eq.s32.totalorder %s44, 0
        // Predicated region
        $region137: #{tpu_custom_call.1} parent=99 // pred_check
          %p775 = pneg %p774
        $region138: #{tpu_custom_call.1} parent=99 // pred_check_branch
          %777 = sbr.rel (%p775) target = $region140
        $region139: #{tpu_custom_call.1} parent=99 // pred_region
          %v778 = vld [vmem:[#allocation3] sm:$0xff]
          %vm779 = vcmask 261120
          %780 = vst.msk [vmem:[#allocation2] sm:$0xff] %vm779, %v778
        $region140: #{tpu_custom_call.1} parent=99 // pred_fallthru
          _
        %v781 = vld [vmem:[#allocation2] sm:$0xff]
        %v782 = vld [vmem:[%s773] sm:$0xff]
        %v783 = vlaneseq
        %v784 = vand.u32 %v783, 127
        %vm785 = vcmp.ge.s32.totalorder %v784, 4
        %vm786 = vcmp.lt.s32.totalorder %v784, 8
        %vm787 = vmand %vm785, %vm786
        %vm788 = vcmp.ge.s32.totalorder %v784, 8
        %v789 = vld [vmem:[%s4] sm:$0xff]
        %v790 = vld [vmem:[%s4 + $0x8] sm:$0xff]
        %v791 = vld [vmem:[%s4 + $0x10] sm:$0xff]
        %v792 = vld [vmem:[%s4 + $0x18] sm:$0xff]
        %v793 = vld [vmem:[#allocation6] sm:$0x1]
        %v795 = vlaneseq
        %v796 = vshrl.u32 %v795, 7
        %v797 = vsub.s32 0, %v796
        %v798 = vrot.slane %v793, %v797
        %vm800 = vcmask 261120
        %v802 = vsel %vm800, %v781, 0
        %804 = vmatprep.subr.mxu0 0.0
        %805 = vmatpush1.msra.mxu0 0.0
        %806 = vmatprep.subr.mxu0 0.0
        %807 = vmatpush1.msra.mxu0 0.0
        %808 = vmatprep.subr.mxu0 0.0
        %809 = vmatpush1.msra.mxu0 0.0
        %810 = vmatprep.subr.mxu0 0.0
        %811 = vmatpush1.msra.mxu0 0.0
        %812 = vmatprep.subr.mxu0 0.0
        %813 = vmatpush1.msra.mxu0 0.0
        %814 = vmatprep.subr.mxu0 0.0
        %815 = vmatpush1.msra.mxu0 0.0
        %816 = vmatprep.subr.mxu0 0.0
        %817 = vmatpush1.msra.mxu0 0.0
        %818 = vmatprep.subr.mxu0 0.0
        %819 = vmatpush1.msra.mxu0 0.0
        %820 = vmatprep.subr.mxu0 0.0
        %821 = vmatpush1.msra.mxu0 0.0
        %822 = vmatprep.subr.mxu0 0.0
        %823 = vmatpush1.msra.mxu0 0.0
        %824 = vmatprep.subr.mxu0 0.0
        %825 = vmatpush1.msra.mxu0 0.0
        %826 = vmatprep.subr.mxu0 0.0
        %827 = vmatpush1.msra.mxu0 0.0
        %828 = vmatprep.subr.mxu0 0.0
        %829 = vmatpush1.msra.mxu0 %v792
        %830 = vmatprep.subr.mxu0 0.0
        %831 = vmatpush1.msra.mxu0 %v791
        %832 = vmatprep.subr.mxu0 0.0
        %833 = vmatpush1.msra.mxu0 %v790
        %834 = vmatprep.subr.mxu0 0.0
        %835 = vmatpush1.msra.mxu0 %v789
        %836 = vmatprep.subr.mxu0 0.0
        %837 = vmatpush2.msra.mxu0 0.0
        %838 = vmatprep.subr.mxu0 0.0
        %839 = vmatpush2.msra.mxu0 0.0
        %840 = vmatprep.subr.mxu0 0.0
        %841 = vmatpush2.msra.mxu0 0.0
        %842 = vmatprep.subr.mxu0 0.0
        %843 = vmatpush2.msra.mxu0 0.0
        %844 = vmatprep.subr.mxu0 0.0
        %845 = vmatpush2.msra.mxu0 0.0
        %846 = vmatprep.subr.mxu0 0.0
        %847 = vmatpush2.msra.mxu0 0.0
        %848 = vmatprep.subr.mxu0 0.0
        %849 = vmatpush2.msra.mxu0 0.0
        %850 = vmatprep.subr.mxu0 0.0
        %851 = vmatpush2.msra.mxu0 0.0
        %852 = vmatprep.subr.mxu0 0.0
        %853 = vmatpush2.msra.mxu0 0.0
        %854 = vmatprep.subr.mxu0 0.0
        %855 = vmatpush2.msra.mxu0 0.0
        %856 = vmatprep.subr.mxu0 0.0
        %857 = vmatpush2.msra.mxu0 0.0
        %858 = vmatprep.subr.mxu0 0.0
        %859 = vmatpush2.msra.mxu0 0.0
        %860 = vmatprep.subr.mxu0 0.0
        %861 = vmatpush2.msra.mxu0 0.0
        %862 = vmatprep.subr.mxu0 0.0
        %863 = vmatpush2.msra.mxu0 0.0
        %864 = vmatprep.subr.mxu0 0.0
        %865 = vmatpush2.msra.mxu0 0.0
        %866 = vmatprep.subr.mxu0 0.0
        %867 = vmatpush2.msra.mxu0 0.0
        %868 = vmatprep.mubr.f32.mxu0 0.0
        %869 = vmatmul.mubr.f32.gmra.mxu0 %v802
        %v870 = vpop.f32.mrf.mxu0
        %v871 = vadd.f32 %v798, %v870
        %v872 = vpop.f32.mrf.mxu0
        %873 = vdwg.mxu0
        %v874 = vmul.f32 %v871, 1.442695
        %v875 = vpow.pop %v874
        %v876 = vsel %vm787, %v875, %v871
        %v877 = vsel %vm788, %v871, -1e+30
        %vm878 = vcmask 97280
        %v879 = vsel %vm878, %v877, -inf
        %880 = vmax.xlane.f32.xlu0 %v879
        %v881 = vpop.xlane.xlu0 %880
        %v882 = vsub.f32 %v871, %v881
        %v883 = vmul.f32 %v882, 1.442695
        %v884 = vpow.pop %v883
        %v885 = vsel %vm788, %v884, 0.0
        %v886 = vsel %vm878, %v885, 0.0
        %887 = vadd.xlane.f32.xlu0 %v886
        %v888 = vpop.xlane.xlu0 %887
        %v889 = vrcp.pop %v888
        %v890 = vmul.f32 %v885, %v889
        %v891 = vsel %vm788, %v890, %v876
        %v892 = vld [vmem:[#allocation8] sm:$0x1]
        %894 = vset.pattern.permute.xlu0 0
        %895 = vperm.xlu0 %894, %v782
        %v896 = vpop.permute.xlu0 %895
        %v899 = vlaneseq
        %v900 = vshrl.u32 %v899, 7
        %v901 = vsub.s32 0, %v900
        %v902 = vrot.slane %v892, %v901
        %v904 = vmul.f32 %v896, %v902
        %v905 = vld [vmem:[#allocation9] sm:$0xff]
        %v906 = vld [vmem:[#allocation9 + $0x8] sm:$0xf]
        %v908 = vsel %vm878, %v891, 0
        %vm910 = vcmask 1043456
        %v912 = vsel %vm910, %v906, 0
        %914 = vmatprep.subr.mxu0 0.0
        %915 = vmatpush1.msra.mxu0 0.0
        %916 = vmatprep.subr.mxu0 0.0
        %917 = vmatpush1.msra.mxu0 0.0
        %918 = vmatprep.subr.mxu0 0.0
        %919 = vmatpush1.msra.mxu0 0.0
        %920 = vmatprep.subr.mxu0 0.0
        %921 = vmatpush1.msra.mxu0 0.0
        %922 = vmatprep.subr.mxu0 0.0
        %923 = vmatpush1.msra.mxu0 0.0
        %924 = vmatprep.subr.mxu0 0.0
        %925 = vmatpush1.msra.mxu0 0.0
        %926 = vmatprep.subr.mxu0 0.0
        %927 = vmatpush1.msra.mxu0 0.0
        %928 = vmatprep.subr.mxu0 0.0
        %929 = vmatpush1.msra.mxu0 0.0
        %930 = vmatprep.subr.mxu0 0.0
        %931 = vmatpush1.msra.mxu0 0.0
        %932 = vmatprep.subr.mxu0 0.0
        %933 = vmatpush1.msra.mxu0 0.0
        %934 = vmatprep.subr.mxu0 0.0
        %935 = vmatpush1.msra.mxu0 0.0
        %936 = vmatprep.subr.mxu0 0.0
        %937 = vmatpush1.msra.mxu0 0.0
        %938 = vmatprep.subr.mxu0 0.0
        %939 = vmatpush1.msra.mxu0 0.0
        %940 = vmatprep.subr.mxu0 0.0
        %941 = vmatpush1.msra.mxu0 0.0
        %942 = vmatprep.subr.mxu0 0.0
        %943 = vmatpush1.msra.mxu0 %v912
        %944 = vmatprep.subr.mxu0 0.0
        %945 = vmatpush1.msra.mxu0 %v905
        %946 = vmatprep.subr.mxu0 0.0
        %947 = vmatpush2.msra.mxu0 0.0
        %948 = vmatprep.subr.mxu0 0.0
        %949 = vmatpush2.msra.mxu0 0.0
        %950 = vmatprep.subr.mxu0 0.0
        %951 = vmatpush2.msra.mxu0 0.0
        %952 = vmatprep.subr.mxu0 0.0
        %953 = vmatpush2.msra.mxu0 0.0
        %954 = vmatprep.subr.mxu0 0.0
        %955 = vmatpush2.msra.mxu0 0.0
        %956 = vmatprep.subr.mxu0 0.0
        %957 = vmatpush2.msra.mxu0 0.0
        %958 = vmatprep.subr.mxu0 0.0
        %959 = vmatpush2.msra.mxu0 0.0
        %960 = vmatprep.subr.mxu0 0.0
        %961 = vmatpush2.msra.mxu0 0.0
        %962 = vmatprep.subr.mxu0 0.0
        %963 = vmatpush2.msra.mxu0 0.0
        %964 = vmatprep.subr.mxu0 0.0
        %965 = vmatpush2.msra.mxu0 0.0
        %966 = vmatprep.subr.mxu0 0.0
        %967 = vmatpush2.msra.mxu0 0.0
        %968 = vmatprep.subr.mxu0 0.0
        %969 = vmatpush2.msra.mxu0 0.0
        %970 = vmatprep.subr.mxu0 0.0
        %971 = vmatpush2.msra.mxu0 0.0
        %972 = vmatprep.subr.mxu0 0.0
        %973 = vmatpush2.msra.mxu0 0.0
        %974 = vmatprep.subr.mxu0 0.0
        %975 = vmatpush2.msra.mxu0 0.0
        %976 = vmatprep.subr.mxu0 0.0
        %977 = vmatpush2.msra.mxu0 0.0
        %978 = vmatprep.mubr.f32.mxu0 0.0
        %979 = vmatmul.mubr.f32.gmra.mxu0 %v908
        %v980 = vpop.f32.mrf.mxu0
        %v981 = vadd.f32 0.0, %v980
        %v982 = vpop.f32.mrf.mxu0
        %983 = vdwg.mxu0
        %v984 = vadd.f32 %v904, %v981
        %v985 = vld [vmem:[%s8] sm:$0xff]
        %v986 = vld [vmem:[%s8 + $0x8] sm:$0xff]
        %v987 = vld [vmem:[%s8 + $0x10] sm:$0xff]
        %v988 = vld [vmem:[%s8 + $0x18] sm:$0xff]
        %989 = vmatprep.subr.mxu0 0.0
        %990 = vmatpush1.msra.mxu0 0.0
        %991 = vmatprep.subr.mxu0 0.0
        %992 = vmatpush1.msra.mxu0 0.0
        %993 = vmatprep.subr.mxu0 0.0
        %994 = vmatpush1.msra.mxu0 0.0
        %995 = vmatprep.subr.mxu0 0.0
        %996 = vmatpush1.msra.mxu0 0.0
        %997 = vmatprep.subr.mxu0 0.0
        %998 = vmatpush1.msra.mxu0 0.0
        %999 = vmatprep.subr.mxu0 0.0
        %1000 = vmatpush1.msra.mxu0 0.0
        %1001 = vmatprep.subr.mxu0 0.0
        %1002 = vmatpush1.msra.mxu0 0.0
        %1003 = vmatprep.subr.mxu0 0.0
        %1004 = vmatpush1.msra.mxu0 0.0
        %1005 = vmatprep.subr.mxu0 0.0
        %1006 = vmatpush1.msra.mxu0 0.0
        %1007 = vmatprep.subr.mxu0 0.0
        %1008 = vmatpush1.msra.mxu0 0.0
        %1009 = vmatprep.subr.mxu0 0.0
        %1010 = vmatpush1.msra.mxu0 0.0
        %1011 = vmatprep.subr.mxu0 0.0
        %1012 = vmatpush1.msra.mxu0 0.0
        %1013 = vmatprep.subr.mxu0 0.0
        %1014 = vmatpush1.msra.mxu0 %v988
        %1015 = vmatprep.subr.mxu0 0.0
        %1016 = vmatpush1.msra.mxu0 %v987
        %1017 = vmatprep.subr.mxu0 0.0
        %1018 = vmatpush1.msra.mxu0 %v986
        %1019 = vmatprep.subr.mxu0 0.0
        %1020 = vmatpush1.msra.mxu0 %v985
        %1021 = vmatprep.subr.mxu0 0.0
        %1022 = vmatpush2.msra.mxu0 0.0
        %1023 = vmatprep.subr.mxu0 0.0
        %1024 = vmatpush2.msra.mxu0 0.0
        %1025 = vmatprep.subr.mxu0 0.0
        %1026 = vmatpush2.msra.mxu0 0.0
        %1027 = vmatprep.subr.mxu0 0.0
        %1028 = vmatpush2.msra.mxu0 0.0
        %1029 = vmatprep.subr.mxu0 0.0
        %1030 = vmatpush2.msra.mxu0 0.0
        %1031 = vmatprep.subr.mxu0 0.0
        %1032 = vmatpush2.msra.mxu0 0.0
        %1033 = vmatprep.subr.mxu0 0.0
        %1034 = vmatpush2.msra.mxu0 0.0
        %1035 = vmatprep.subr.mxu0 0.0
        %1036 = vmatpush2.msra.mxu0 0.0
        %1037 = vmatprep.subr.mxu0 0.0
        %1038 = vmatpush2.msra.mxu0 0.0
        %1039 = vmatprep.subr.mxu0 0.0
        %1040 = vmatpush2.msra.mxu0 0.0
        %1041 = vmatprep.subr.mxu0 0.0
        %1042 = vmatpush2.msra.mxu0 0.0
        %1043 = vmatprep.subr.mxu0 0.0
        %1044 = vmatpush2.msra.mxu0 0.0
        %1045 = vmatprep.subr.mxu0 0.0
        %1046 = vmatpush2.msra.mxu0 0.0
        %1047 = vmatprep.subr.mxu0 0.0
        %1048 = vmatpush2.msra.mxu0 0.0
        %1049 = vmatprep.subr.mxu0 0.0
        %1050 = vmatpush2.msra.mxu0 0.0
        %1051 = vmatprep.subr.mxu0 0.0
        %1052 = vmatpush2.msra.mxu0 0.0
        %1053 = vmatprep.mubr.f32.mxu0 0.0
        %1054 = vmatmul.mubr.f32.gmra.mxu0 %v802
        %v1055 = vpop.f32.mrf.mxu0
        %v1056 = vadd.f32 0.0, %v1055
        %v1057 = vpop.f32.mrf.mxu0
        %1058 = vdwg.mxu0
        %v1059 = vadd.f32 %v984, %v1056
        %v1060 = vld [vmem:[#allocation11] sm:$0x1]
        %v1062 = vlaneseq
        %v1063 = vshrl.u32 %v1062, 7
        %v1064 = vsub.s32 0, %v1063
        %v1065 = vrot.slane %v1060, %v1064
        %v1067 = vadd.f32 %v1059, %v1065
        %v1068 = vld [vmem:[%s3] sm:$0xff]
        %v1069 = vld [vmem:[%s3 + $0x8] sm:$0xff]
        %v1070 = vld [vmem:[%s3 + $0x10] sm:$0xff]
        %vm1071 = vcmask 64512
        %v1073 = vsel %vm1071, %v1068, 0
        %v1076 = vsel %vm1071, %v1069, 0
        %v1079 = vsel %vm1071, %v1070, 0
        %1081 = vmatprep.subr.mxu0 0.0
        %1082 = vmatpush1.msra.mxu0 0.0
        %1083 = vmatprep.subr.mxu0 0.0
        %1084 = vmatpush1.msra.mxu0 0.0
        %1085 = vmatprep.subr.mxu0 0.0
        %1086 = vmatpush1.msra.mxu0 0.0
        %1087 = vmatprep.subr.mxu0 0.0
        %1088 = vmatpush1.msra.mxu0 0.0
        %1089 = vmatprep.subr.mxu0 0.0
        %1090 = vmatpush1.msra.mxu0 0.0
        %1091 = vmatprep.subr.mxu0 0.0
        %1092 = vmatpush1.msra.mxu0 0.0
        %1093 = vmatprep.subr.mxu0 0.0
        %1094 = vmatpush1.msra.mxu0 0.0
        %1095 = vmatprep.subr.mxu0 0.0
        %1096 = vmatpush1.msra.mxu0 0.0
        %1097 = vmatprep.subr.mxu0 0.0
        %1098 = vmatpush1.msra.mxu0 0.0
        %1099 = vmatprep.subr.mxu0 0.0
        %1100 = vmatpush1.msra.mxu0 0.0
        %1101 = vmatprep.subr.mxu0 0.0
        %1102 = vmatpush1.msra.mxu0 0.0
        %1103 = vmatprep.subr.mxu0 0.0
        %1104 = vmatpush1.msra.mxu0 0.0
        %1105 = vmatprep.subr.mxu0 0.0
        %1106 = vmatpush1.msra.mxu0 0.0
        %1107 = vmatprep.subr.mxu0 0.0
        %1108 = vmatpush1.msra.mxu0 0.0
        %1109 = vmatprep.subr.mxu0 0.0
        %1110 = vmatpush1.msra.mxu0 0.0
        %1111 = vmatprep.subr.mxu0 0.0
        %1112 = vmatpush1.msra.mxu0 %v1067
        %1113 = vmatprep.subr.mxu0 0.0
        %1114 = vmatpush2.msra.mxu0 0.0
        %1115 = vmatprep.subr.mxu0 0.0
        %1116 = vmatpush2.msra.mxu0 0.0
        %1117 = vmatprep.subr.mxu0 0.0
        %1118 = vmatpush2.msra.mxu0 0.0
        %1119 = vmatprep.subr.mxu0 0.0
        %1120 = vmatpush2.msra.mxu0 0.0
        %1121 = vmatprep.subr.mxu0 0.0
        %1122 = vmatpush2.msra.mxu0 0.0
        %1123 = vmatprep.subr.mxu0 0.0
        %1124 = vmatpush2.msra.mxu0 0.0
        %1125 = vmatprep.subr.mxu0 0.0
        %1126 = vmatpush2.msra.mxu0 0.0
        %1127 = vmatprep.subr.mxu0 0.0
        %1128 = vmatpush2.msra.mxu0 0.0
        %1129 = vmatprep.subr.mxu0 0.0
        %1130 = vmatpush2.msra.mxu0 0.0
        %1131 = vmatprep.subr.mxu0 0.0
        %1132 = vmatpush2.msra.mxu0 0.0
        %1133 = vmatprep.subr.mxu0 0.0
        %1134 = vmatpush2.msra.mxu0 0.0
        %1135 = vmatprep.subr.mxu0 0.0
        %1136 = vmatpush2.msra.mxu0 0.0
        %1137 = vmatprep.subr.mxu0 0.0
        %1138 = vmatpush2.msra.mxu0 0.0
        %1139 = vmatprep.subr.mxu0 0.0
        %1140 = vmatpush2.msra.mxu0 0.0
        %1141 = vmatprep.subr.mxu0 0.0
        %1142 = vmatpush2.msra.mxu0 0.0
        %1143 = vmatprep.subr.mxu0 0.0
        %1144 = vmatpush2.msra.mxu0 0.0
        %1145 = vmatprep.mubr.f32.mxu0 0.0
        %1146 = vmatmul.mubr.f32.gmra.mxu0 %v1073
        %v1147 = vpop.f32.mrf.mxu0
        %v1148 = vadd.f32 0.0, %v1147
        %v1149 = vpop.f32.mrf.mxu0
        %1150 = vmatprep.mubr.f32.mxu0 0.0
        %1151 = vmatmul.mubr.f32.gmra.mxu0 %v1076
        %v1152 = vpop.f32.mrf.mxu0
        %v1153 = vadd.f32 0.0, %v1152
        %v1154 = vpop.f32.mrf.mxu0
        %1155 = vmatprep.mubr.f32.mxu0 0.0
        %1156 = vmatmul.mubr.f32.gmra.mxu0 %v1079
        %v1157 = vpop.f32.mrf.mxu0
        %v1158 = vadd.f32 0.0, %v1157
        %v1159 = vpop.f32.mrf.mxu0
        %1160 = vdwg.mxu0
        %v1161 = vld [vmem:[#allocation12] sm:$0xff]
        %v1162 = vld [vmem:[#allocation12 + $0x8] sm:$0xff]
        %v1163 = vld [vmem:[#allocation12 + $0x10] sm:$0xff]
        %v1164 = vld [vmem:[#allocation12 + $0x18] sm:$0xff]
        %s1165 = scalar_lea.vmem [#allocation12], 32
        %v1166 = vld [vmem:[%s1165] sm:$0xff]
        %v1167 = vld [vmem:[%s1165 + $0x8] sm:$0xff]
        %v1168 = vld [vmem:[%s1165 + $0x10] sm:$0xff]
        %v1169 = vld [vmem:[%s1165 + $0x18] sm:$0xff]
        %v1171 = vsel %vm800, %v1153, 0
        %1173 = vmatprep.subr.mxu0 0.0
        %1174 = vmatpush1.msra.mxu0 0.0
        %1175 = vmatprep.subr.mxu0 0.0
        %1176 = vmatpush1.msra.mxu0 0.0
        %1177 = vmatprep.subr.mxu0 0.0
        %1178 = vmatpush1.msra.mxu0 0.0
        %1179 = vmatprep.subr.mxu0 0.0
        %1180 = vmatpush1.msra.mxu0 0.0
        %1181 = vmatprep.subr.mxu0 0.0
        %1182 = vmatpush1.msra.mxu0 0.0
        %1183 = vmatprep.subr.mxu0 0.0
        %1184 = vmatpush1.msra.mxu0 0.0
        %1185 = vmatprep.subr.mxu0 0.0
        %1186 = vmatpush1.msra.mxu0 0.0
        %1187 = vmatprep.subr.mxu0 0.0
        %1188 = vmatpush1.msra.mxu0 0.0
        %1189 = vmatprep.subr.mxu0 0.0
        %1190 = vmatpush1.msra.mxu0 0.0
        %1191 = vmatprep.subr.mxu0 0.0
        %1192 = vmatpush1.msra.mxu0 0.0
        %1193 = vmatprep.subr.mxu0 0.0
        %1194 = vmatpush1.msra.mxu0 0.0
        %1195 = vmatprep.subr.mxu0 0.0
        %1196 = vmatpush1.msra.mxu0 0.0
        %1197 = vmatprep.subr.mxu0 0.0
        %1198 = vmatpush1.msra.mxu0 %v1169
        %1199 = vmatprep.subr.mxu0 0.0
        %1200 = vmatpush1.msra.mxu0 %v1168
        %1201 = vmatprep.subr.mxu0 0.0
        %1202 = vmatpush1.msra.mxu0 %v1167
        %1203 = vmatprep.subr.mxu0 0.0
        %1204 = vmatpush1.msra.mxu0 %v1166
        %1205 = vmatprep.subr.mxu0 0.0
        %1206 = vmatpush2.msra.mxu0 0.0
        %1207 = vmatprep.subr.mxu0 0.0
        %1208 = vmatpush2.msra.mxu0 0.0
        %1209 = vmatprep.subr.mxu0 0.0
        %1210 = vmatpush2.msra.mxu0 0.0
        %1211 = vmatprep.subr.mxu0 0.0
        %1212 = vmatpush2.msra.mxu0 0.0
        %1213 = vmatprep.subr.mxu0 0.0
        %1214 = vmatpush2.msra.mxu0 0.0
        %1215 = vmatprep.subr.mxu0 0.0
        %1216 = vmatpush2.msra.mxu0 0.0
        %1217 = vmatprep.subr.mxu0 0.0
        %1218 = vmatpush2.msra.mxu0 0.0
        %1219 = vmatprep.subr.mxu0 0.0
        %1220 = vmatpush2.msra.mxu0 0.0
        %1221 = vmatprep.subr.mxu0 0.0
        %1222 = vmatpush2.msra.mxu0 0.0
        %1223 = vmatprep.subr.mxu0 0.0
        %1224 = vmatpush2.msra.mxu0 0.0
        %1225 = vmatprep.subr.mxu0 0.0
        %1226 = vmatpush2.msra.mxu0 0.0
        %1227 = vmatprep.subr.mxu0 0.0
        %1228 = vmatpush2.msra.mxu0 0.0
        %1229 = vmatprep.subr.mxu0 0.0
        %1230 = vmatpush2.msra.mxu0 0.0
        %1231 = vmatprep.subr.mxu0 0.0
        %1232 = vmatpush2.msra.mxu0 0.0
        %1233 = vmatprep.subr.mxu0 0.0
        %1234 = vmatpush2.msra.mxu0 0.0
        %1235 = vmatprep.subr.mxu0 0.0
        %1236 = vmatpush2.msra.mxu0 0.0
        %1237 = vmatprep.mubr.f32.mxu0 0.0
        %1238 = vmatmul.mubr.f32.gmra.mxu0 %v1171
        %v1239 = vpop.f32.mrf.mxu0
        %v1240 = vadd.f32 0.0, %v1239
        %v1241 = vpop.f32.mrf.mxu0
        %1242 = vdwg.mxu0
        %s1243 = scalar_lea.vmem [#allocation12], 64
        %v1244 = vld [vmem:[%s1243] sm:$0xff]
        %v1245 = vld [vmem:[%s1243 + $0x8] sm:$0xff]
        %v1246 = vld [vmem:[%s1243 + $0x10] sm:$0xff]
        %v1247 = vld [vmem:[%s1243 + $0x18] sm:$0xff]
        %v1249 = vsel %vm800, %v1158, 0
        %1251 = vmatprep.subr.mxu0 0.0
        %1252 = vmatpush1.msra.mxu0 0.0
        %1253 = vmatprep.subr.mxu0 0.0
        %1254 = vmatpush1.msra.mxu0 0.0
        %1255 = vmatprep.subr.mxu0 0.0
        %1256 = vmatpush1.msra.mxu0 0.0
        %1257 = vmatprep.subr.mxu0 0.0
        %1258 = vmatpush1.msra.mxu0 0.0
        %1259 = vmatprep.subr.mxu0 0.0
        %1260 = vmatpush1.msra.mxu0 0.0
        %1261 = vmatprep.subr.mxu0 0.0
        %1262 = vmatpush1.msra.mxu0 0.0
        %1263 = vmatprep.subr.mxu0 0.0
        %1264 = vmatpush1.msra.mxu0 0.0
        %1265 = vmatprep.subr.mxu0 0.0
        %1266 = vmatpush1.msra.mxu0 0.0
        %1267 = vmatprep.subr.mxu0 0.0
        %1268 = vmatpush1.msra.mxu0 0.0
        %1269 = vmatprep.subr.mxu0 0.0
        %1270 = vmatpush1.msra.mxu0 0.0
        %1271 = vmatprep.subr.mxu0 0.0
        %1272 = vmatpush1.msra.mxu0 0.0
        %1273 = vmatprep.subr.mxu0 0.0
        %1274 = vmatpush1.msra.mxu0 0.0
        %1275 = vmatprep.subr.mxu0 0.0
        %1276 = vmatpush1.msra.mxu0 %v1247
        %1277 = vmatprep.subr.mxu0 0.0
        %1278 = vmatpush1.msra.mxu0 %v1246
        %1279 = vmatprep.subr.mxu0 0.0
        %1280 = vmatpush1.msra.mxu0 %v1245
        %1281 = vmatprep.subr.mxu0 0.0
        %1282 = vmatpush1.msra.mxu0 %v1244
        %1283 = vmatprep.subr.mxu0 0.0
        %1284 = vmatpush2.msra.mxu0 0.0
        %1285 = vmatprep.subr.mxu0 0.0
        %1286 = vmatpush2.msra.mxu0 0.0
        %1287 = vmatprep.subr.mxu0 0.0
        %1288 = vmatpush2.msra.mxu0 0.0
        %1289 = vmatprep.subr.mxu0 0.0
        %1290 = vmatpush2.msra.mxu0 0.0
        %1291 = vmatprep.subr.mxu0 0.0
        %1292 = vmatpush2.msra.mxu0 0.0
        %1293 = vmatprep.subr.mxu0 0.0
        %1294 = vmatpush2.msra.mxu0 0.0
        %1295 = vmatprep.subr.mxu0 0.0
        %1296 = vmatpush2.msra.mxu0 0.0
        %1297 = vmatprep.subr.mxu0 0.0
        %1298 = vmatpush2.msra.mxu0 0.0
        %1299 = vmatprep.subr.mxu0 0.0
        %1300 = vmatpush2.msra.mxu0 0.0
        %1301 = vmatprep.subr.mxu0 0.0
        %1302 = vmatpush2.msra.mxu0 0.0
        %1303 = vmatprep.subr.mxu0 0.0
        %1304 = vmatpush2.msra.mxu0 0.0
        %1305 = vmatprep.subr.mxu0 0.0
        %1306 = vmatpush2.msra.mxu0 0.0
        %1307 = vmatprep.subr.mxu0 0.0
        %1308 = vmatpush2.msra.mxu0 0.0
        %1309 = vmatprep.subr.mxu0 0.0
        %1310 = vmatpush2.msra.mxu0 0.0
        %1311 = vmatprep.subr.mxu0 0.0
        %1312 = vmatpush2.msra.mxu0 0.0
        %1313 = vmatprep.subr.mxu0 0.0
        %1314 = vmatpush2.msra.mxu0 0.0
        %1315 = vmatprep.mubr.f32.mxu0 0.0
        %1316 = vmatmul.mubr.f32.gmra.mxu0 %v1249
        %v1317 = vpop.f32.mrf.mxu0
        %v1318 = vadd.f32 0.0, %v1317
        %v1319 = vpop.f32.mrf.mxu0
        %1320 = vdwg.mxu0
        %v1322 = vsel %vm800, %v1148, 0
        %1324 = vmatprep.subr.mxu0 0.0
        %1325 = vmatpush1.msra.mxu0 0.0
        %1326 = vmatprep.subr.mxu0 0.0
        %1327 = vmatpush1.msra.mxu0 0.0
        %1328 = vmatprep.subr.mxu0 0.0
        %1329 = vmatpush1.msra.mxu0 0.0
        %1330 = vmatprep.subr.mxu0 0.0
        %1331 = vmatpush1.msra.mxu0 0.0
        %1332 = vmatprep.subr.mxu0 0.0
        %1333 = vmatpush1.msra.mxu0 0.0
        %1334 = vmatprep.subr.mxu0 0.0
        %1335 = vmatpush1.msra.mxu0 0.0
        %1336 = vmatprep.subr.mxu0 0.0
        %1337 = vmatpush1.msra.mxu0 0.0
        %1338 = vmatprep.subr.mxu0 0.0
        %1339 = vmatpush1.msra.mxu0 0.0
        %1340 = vmatprep.subr.mxu0 0.0
        %1341 = vmatpush1.msra.mxu0 0.0
        %1342 = vmatprep.subr.mxu0 0.0
        %1343 = vmatpush1.msra.mxu0 0.0
        %1344 = vmatprep.subr.mxu0 0.0
        %1345 = vmatpush1.msra.mxu0 0.0
        %1346 = vmatprep.subr.mxu0 0.0
        %1347 = vmatpush1.msra.mxu0 0.0
        %1348 = vmatprep.subr.mxu0 0.0
        %1349 = vmatpush1.msra.mxu0 %v1164
        %1350 = vmatprep.subr.mxu0 0.0
        %1351 = vmatpush1.msra.mxu0 %v1163
        %1352 = vmatprep.subr.mxu0 0.0
        %1353 = vmatpush1.msra.mxu0 %v1162
        %1354 = vmatprep.subr.mxu0 0.0
        %1355 = vmatpush1.msra.mxu0 %v1161
        %1356 = vmatprep.subr.mxu0 0.0
        %1357 = vmatpush2.msra.mxu0 0.0
        %1358 = vmatprep.subr.mxu0 0.0
        %1359 = vmatpush2.msra.mxu0 0.0
        %1360 = vmatprep.subr.mxu0 0.0
        %1361 = vmatpush2.msra.mxu0 0.0
        %1362 = vmatprep.subr.mxu0 0.0
        %1363 = vmatpush2.msra.mxu0 0.0
        %1364 = vmatprep.subr.mxu0 0.0
        %1365 = vmatpush2.msra.mxu0 0.0
        %1366 = vmatprep.subr.mxu0 0.0
        %1367 = vmatpush2.msra.mxu0 0.0
        %1368 = vmatprep.subr.mxu0 0.0
        %1369 = vmatpush2.msra.mxu0 0.0
        %1370 = vmatprep.subr.mxu0 0.0
        %1371 = vmatpush2.msra.mxu0 0.0
        %1372 = vmatprep.subr.mxu0 0.0
        %1373 = vmatpush2.msra.mxu0 0.0
        %1374 = vmatprep.subr.mxu0 0.0
        %1375 = vmatpush2.msra.mxu0 0.0
        %1376 = vmatprep.subr.mxu0 0.0
        %1377 = vmatpush2.msra.mxu0 0.0
        %1378 = vmatprep.subr.mxu0 0.0
        %1379 = vmatpush2.msra.mxu0 0.0
        %1380 = vmatprep.subr.mxu0 0.0
        %1381 = vmatpush2.msra.mxu0 0.0
        %1382 = vmatprep.subr.mxu0 0.0
        %1383 = vmatpush2.msra.mxu0 0.0
        %1384 = vmatprep.subr.mxu0 0.0
        %1385 = vmatpush2.msra.mxu0 0.0
        %1386 = vmatprep.subr.mxu0 0.0
        %1387 = vmatpush2.msra.mxu0 0.0
        %1388 = vmatprep.mubr.f32.mxu0 0.0
        %1389 = vmatmul.mubr.f32.gmra.mxu0 %v1322
        %v1390 = vpop.f32.mrf.mxu0
        %v1391 = vadd.f32 %v1240, %v1390
        %v1392 = vpop.f32.mrf.mxu0
        %1393 = vdwg.mxu0
        %v1394 = vadd.f32 %v1391, %v1318
        %v1395 = vld [vmem:[#allocation14] sm:$0x1]
        %v1397 = vlaneseq
        %v1398 = vshrl.u32 %v1397, 7
        %v1399 = vsub.s32 0, %v1398
        %v1400 = vrot.slane %v1395, %v1399
        %v1402 = vadd.f32 %v1394, %v1400
        %v1403 = vmax.f32 %v1402, 0.0
        %v1404 = vld [vmem:[%s12] sm:$0xff]
        %v1405 = vld [vmem:[%s12 + $0x8] sm:$0xff]
        %v1406 = vld [vmem:[%s12 + $0x10] sm:$0xff]
        %v1407 = vld [vmem:[%s12 + $0x18] sm:$0xff]
        %v1408 = vld [vmem:[%s13] sm:$0xff]
        %v1409 = vld [vmem:[%s13 + $0x8] sm:$0xff]
        %v1410 = vld [vmem:[%s13 + $0x10] sm:$0xff]
        %v1411 = vld [vmem:[%s13 + $0x18] sm:$0xff]
        %1412 = vmatprep.subr.mxu0 0.0
        %1413 = vmatpush1.msra.mxu0 0.0
        %1414 = vmatprep.subr.mxu0 0.0
        %1415 = vmatpush1.msra.mxu0 0.0
        %1416 = vmatprep.subr.mxu0 0.0
        %1417 = vmatpush1.msra.mxu0 0.0
        %1418 = vmatprep.subr.mxu0 0.0
        %1419 = vmatpush1.msra.mxu0 0.0
        %1420 = vmatprep.subr.mxu0 0.0
        %1421 = vmatpush1.msra.mxu0 0.0
        %1422 = vmatprep.subr.mxu0 0.0
        %1423 = vmatpush1.msra.mxu0 0.0
        %1424 = vmatprep.subr.mxu0 0.0
        %1425 = vmatpush1.msra.mxu0 0.0
        %1426 = vmatprep.subr.mxu0 0.0
        %1427 = vmatpush1.msra.mxu0 0.0
        %1428 = vmatprep.subr.mxu0 0.0
        %1429 = vmatpush1.msra.mxu0 0.0
        %1430 = vmatprep.subr.mxu0 0.0
        %1431 = vmatpush1.msra.mxu0 0.0
        %1432 = vmatprep.subr.mxu0 0.0
        %1433 = vmatpush1.msra.mxu0 0.0
        %1434 = vmatprep.subr.mxu0 0.0
        %1435 = vmatpush1.msra.mxu0 0.0
        %1436 = vmatprep.subr.mxu0 0.0
        %1437 = vmatpush1.msra.mxu0 %v1411
        %1438 = vmatprep.subr.mxu0 0.0
        %1439 = vmatpush1.msra.mxu0 %v1410
        %1440 = vmatprep.subr.mxu0 0.0
        %1441 = vmatpush1.msra.mxu0 %v1409
        %1442 = vmatprep.subr.mxu0 0.0
        %1443 = vmatpush1.msra.mxu0 %v1408
        %1444 = vmatprep.subr.mxu0 0.0
        %1445 = vmatpush2.msra.mxu0 0.0
        %1446 = vmatprep.subr.mxu0 0.0
        %1447 = vmatpush2.msra.mxu0 0.0
        %1448 = vmatprep.subr.mxu0 0.0
        %1449 = vmatpush2.msra.mxu0 0.0
        %1450 = vmatprep.subr.mxu0 0.0
        %1451 = vmatpush2.msra.mxu0 0.0
        %1452 = vmatprep.subr.mxu0 0.0
        %1453 = vmatpush2.msra.mxu0 0.0
        %1454 = vmatprep.subr.mxu0 0.0
        %1455 = vmatpush2.msra.mxu0 0.0
        %1456 = vmatprep.subr.mxu0 0.0
        %1457 = vmatpush2.msra.mxu0 0.0
        %1458 = vmatprep.subr.mxu0 0.0
        %1459 = vmatpush2.msra.mxu0 0.0
        %1460 = vmatprep.subr.mxu0 0.0
        %1461 = vmatpush2.msra.mxu0 0.0
        %1462 = vmatprep.subr.mxu0 0.0
        %1463 = vmatpush2.msra.mxu0 0.0
        %1464 = vmatprep.subr.mxu0 0.0
        %1465 = vmatpush2.msra.mxu0 0.0
        %1466 = vmatprep.subr.mxu0 0.0
        %1467 = vmatpush2.msra.mxu0 0.0
        %1468 = vmatprep.subr.mxu0 0.0
        %1469 = vmatpush2.msra.mxu0 0.0
        %1470 = vmatprep.subr.mxu0 0.0
        %1471 = vmatpush2.msra.mxu0 0.0
        %1472 = vmatprep.subr.mxu0 0.0
        %1473 = vmatpush2.msra.mxu0 0.0
        %1474 = vmatprep.subr.mxu0 0.0
        %1475 = vmatpush2.msra.mxu0 0.0
        %1476 = vmatprep.mubr.f32.mxu0 0.0
        %1477 = vmatmul.mubr.f32.gmra.mxu0 %v802
        %v1478 = vpop.f32.mrf.mxu0
        %v1479 = vadd.f32 0.0, %v1478
        %v1480 = vpop.f32.mrf.mxu0
        %1481 = vdwg.mxu0
        %v1483 = vsel %vm800, %v1403, 0
        %1485 = vmatprep.subr.mxu0 0.0
        %1486 = vmatpush1.msra.mxu0 0.0
        %1487 = vmatprep.subr.mxu0 0.0
        %1488 = vmatpush1.msra.mxu0 0.0
        %1489 = vmatprep.subr.mxu0 0.0
        %1490 = vmatpush1.msra.mxu0 0.0
        %1491 = vmatprep.subr.mxu0 0.0
        %1492 = vmatpush1.msra.mxu0 0.0
        %1493 = vmatprep.subr.mxu0 0.0
        %1494 = vmatpush1.msra.mxu0 0.0
        %1495 = vmatprep.subr.mxu0 0.0
        %1496 = vmatpush1.msra.mxu0 0.0
        %1497 = vmatprep.subr.mxu0 0.0
        %1498 = vmatpush1.msra.mxu0 0.0
        %1499 = vmatprep.subr.mxu0 0.0
        %1500 = vmatpush1.msra.mxu0 0.0
        %1501 = vmatprep.subr.mxu0 0.0
        %1502 = vmatpush1.msra.mxu0 0.0
        %1503 = vmatprep.subr.mxu0 0.0
        %1504 = vmatpush1.msra.mxu0 0.0
        %1505 = vmatprep.subr.mxu0 0.0
        %1506 = vmatpush1.msra.mxu0 0.0
        %1507 = vmatprep.subr.mxu0 0.0
        %1508 = vmatpush1.msra.mxu0 0.0
        %1509 = vmatprep.subr.mxu0 0.0
        %1510 = vmatpush1.msra.mxu0 %v1407
        %1511 = vmatprep.subr.mxu0 0.0
        %1512 = vmatpush1.msra.mxu0 %v1406
        %1513 = vmatprep.subr.mxu0 0.0
        %1514 = vmatpush1.msra.mxu0 %v1405
        %1515 = vmatprep.subr.mxu0 0.0
        %1516 = vmatpush1.msra.mxu0 %v1404
        %1517 = vmatprep.subr.mxu0 0.0
        %1518 = vmatpush2.msra.mxu0 0.0
        %1519 = vmatprep.subr.mxu0 0.0
        %1520 = vmatpush2.msra.mxu0 0.0
        %1521 = vmatprep.subr.mxu0 0.0
        %1522 = vmatpush2.msra.mxu0 0.0
        %1523 = vmatprep.subr.mxu0 0.0
        %1524 = vmatpush2.msra.mxu0 0.0
        %1525 = vmatprep.subr.mxu0 0.0
        %1526 = vmatpush2.msra.mxu0 0.0
        %1527 = vmatprep.subr.mxu0 0.0
        %1528 = vmatpush2.msra.mxu0 0.0
        %1529 = vmatprep.subr.mxu0 0.0
        %1530 = vmatpush2.msra.mxu0 0.0
        %1531 = vmatprep.subr.mxu0 0.0
        %1532 = vmatpush2.msra.mxu0 0.0
        %1533 = vmatprep.subr.mxu0 0.0
        %1534 = vmatpush2.msra.mxu0 0.0
        %1535 = vmatprep.subr.mxu0 0.0
        %1536 = vmatpush2.msra.mxu0 0.0
        %1537 = vmatprep.subr.mxu0 0.0
        %1538 = vmatpush2.msra.mxu0 0.0
        %1539 = vmatprep.subr.mxu0 0.0
        %1540 = vmatpush2.msra.mxu0 0.0
        %1541 = vmatprep.subr.mxu0 0.0
        %1542 = vmatpush2.msra.mxu0 0.0
        %1543 = vmatprep.subr.mxu0 0.0
        %1544 = vmatpush2.msra.mxu0 0.0
        %1545 = vmatprep.subr.mxu0 0.0
        %1546 = vmatpush2.msra.mxu0 0.0
        %1547 = vmatprep.subr.mxu0 0.0
        %1548 = vmatpush2.msra.mxu0 0.0
        %1549 = vmatprep.mubr.f32.mxu0 0.0
        %1550 = vmatmul.mubr.f32.gmra.mxu0 %v1483
        %v1551 = vpop.f32.mrf.mxu0
        %v1552 = vadd.f32 %v1479, %v1551
        %v1553 = vpop.f32.mrf.mxu0
        %1554 = vdwg.mxu0
        %v1555 = vld [vmem:[%s14] sm:$0x1]
        %v1557 = vlaneseq
        %v1558 = vshrl.u32 %v1557, 7
        %v1559 = vsub.s32 0, %v1558
        %v1560 = vrot.slane %v1555, %v1559
        %v1562 = vadd.f32 %v1552, %v1560
        %v1563 = vmul.f32 %v1562, 1.442695
        %v1564 = vpow.pop %v1563
        %v1565 = vsel %vm787, %v1564, %v1562
        %v1566 = vsel %vm788, %v1562, -1e+30
        %v1567 = vsel %vm878, %v1566, -inf
        %1568 = vmax.xlane.f32.xlu0 %v1567
        %v1569 = vpop.xlane.xlu0 %1568
        %v1570 = vsub.f32 %v1562, %v1569
        %v1571 = vmul.f32 %v1570, 1.442695
        %v1572 = vpow.pop %v1571
        %v1573 = vsel %vm788, %v1572, 0.0
        %v1574 = vsel %vm878, %v1573, 0.0
        %1575 = vadd.xlane.f32.xlu0 %v1574
        %v1576 = vpop.xlane.xlu0 %1575
        %v1577 = vrcp.pop %v1576
        %v1578 = vmul.f32 %v1573, %v1577
        %v1579 = vsel %vm788, %v1578, %v1565
        %v1580 = vld [vmem:[%s2] sm:$0xff]
        %v1581 = vld [vmem:[%s2 + $0x8] sm:$0xff]
        %v1582 = vld [vmem:[%s2 + $0x10] sm:$0xff]
        %v1583 = vld [vmem:[%s2 + $0x18] sm:$0xff]
        %v1584 = vld [vmem:[%s2 + $0x20] sm:$0xff]
        %v1586 = vsel %vm1071, %v1580, 0
        %v1589 = vsel %vm1071, %v1581, 0
        %v1592 = vsel %vm1071, %v1582, 0
        %v1595 = vsel %vm1071, %v1583, 0
        %v1598 = vsel %vm1071, %v1584, 0
        %1600 = vmatprep.subr.mxu0 0.0
        %1601 = vmatpush1.msra.mxu0 0.0
        %1602 = vmatprep.subr.mxu0 0.0
        %1603 = vmatpush1.msra.mxu0 0.0
        %1604 = vmatprep.subr.mxu0 0.0
        %1605 = vmatpush1.msra.mxu0 0.0
        %1606 = vmatprep.subr.mxu0 0.0
        %1607 = vmatpush1.msra.mxu0 0.0
        %1608 = vmatprep.subr.mxu0 0.0
        %1609 = vmatpush1.msra.mxu0 0.0
        %1610 = vmatprep.subr.mxu0 0.0
        %1611 = vmatpush1.msra.mxu0 0.0
        %1612 = vmatprep.subr.mxu0 0.0
        %1613 = vmatpush1.msra.mxu0 0.0
        %1614 = vmatprep.subr.mxu0 0.0
        %1615 = vmatpush1.msra.mxu0 0.0
        %1616 = vmatprep.subr.mxu0 0.0
        %1617 = vmatpush1.msra.mxu0 0.0
        %1618 = vmatprep.subr.mxu0 0.0
        %1619 = vmatpush1.msra.mxu0 0.0
        %1620 = vmatprep.subr.mxu0 0.0
        %1621 = vmatpush1.msra.mxu0 0.0
        %1622 = vmatprep.subr.mxu0 0.0
        %1623 = vmatpush1.msra.mxu0 0.0
        %1624 = vmatprep.subr.mxu0 0.0
        %1625 = vmatpush1.msra.mxu0 0.0
        %1626 = vmatprep.subr.mxu0 0.0
        %1627 = vmatpush1.msra.mxu0 0.0
        %1628 = vmatprep.subr.mxu0 0.0
        %1629 = vmatpush1.msra.mxu0 0.0
        %1630 = vmatprep.subr.mxu0 0.0
        %1631 = vmatpush1.msra.mxu0 %v1579
        %1632 = vmatprep.subr.mxu0 0.0
        %1633 = vmatpush2.msra.mxu0 0.0
        %1634 = vmatprep.subr.mxu0 0.0
        %1635 = vmatpush2.msra.mxu0 0.0
        %1636 = vmatprep.subr.mxu0 0.0
        %1637 = vmatpush2.msra.mxu0 0.0
        %1638 = vmatprep.subr.mxu0 0.0
        %1639 = vmatpush2.msra.mxu0 0.0
        %1640 = vmatprep.subr.mxu0 0.0
        %1641 = vmatpush2.msra.mxu0 0.0
        %1642 = vmatprep.subr.mxu0 0.0
        %1643 = vmatpush2.msra.mxu0 0.0
        %1644 = vmatprep.subr.mxu0 0.0
        %1645 = vmatpush2.msra.mxu0 0.0
        %1646 = vmatprep.subr.mxu0 0.0
        %1647 = vmatpush2.msra.mxu0 0.0
        %1648 = vmatprep.subr.mxu0 0.0
        %1649 = vmatpush2.msra.mxu0 0.0
        %1650 = vmatprep.subr.mxu0 0.0
        %1651 = vmatpush2.msra.mxu0 0.0
        %1652 = vmatprep.subr.mxu0 0.0
        %1653 = vmatpush2.msra.mxu0 0.0
        %1654 = vmatprep.subr.mxu0 0.0
        %1655 = vmatpush2.msra.mxu0 0.0
        %1656 = vmatprep.subr.mxu0 0.0
        %1657 = vmatpush2.msra.mxu0 0.0
        %1658 = vmatprep.subr.mxu0 0.0
        %1659 = vmatpush2.msra.mxu0 0.0
        %1660 = vmatprep.subr.mxu0 0.0
        %1661 = vmatpush2.msra.mxu0 0.0
        %1662 = vmatprep.subr.mxu0 0.0
        %1663 = vmatpush2.msra.mxu0 0.0
        %1664 = vmatprep.mubr.f32.mxu0 0.0
        %1665 = vmatmul.mubr.f32.gmra.mxu0 %v1586
        %v1666 = vpop.f32.mrf.mxu0
        %v1667 = vadd.f32 0.0, %v1666
        %v1668 = vpop.f32.mrf.mxu0
        %1669 = vmatprep.mubr.f32.mxu0 0.0
        %1670 = vmatmul.mubr.f32.gmra.mxu0 %v1589
        %v1671 = vpop.f32.mrf.mxu0
        %v1672 = vadd.f32 0.0, %v1671
        %v1673 = vpop.f32.mrf.mxu0
        %1674 = vmatprep.mubr.f32.mxu0 0.0
        %1675 = vmatmul.mubr.f32.gmra.mxu0 %v1592
        %v1676 = vpop.f32.mrf.mxu0
        %v1677 = vadd.f32 0.0, %v1676
        %v1678 = vpop.f32.mrf.mxu0
        %1679 = vmatprep.mubr.f32.mxu0 0.0
        %1680 = vmatmul.mubr.f32.gmra.mxu0 %v1595
        %v1681 = vpop.f32.mrf.mxu0
        %v1682 = vadd.f32 0.0, %v1681
        %v1683 = vpop.f32.mrf.mxu0
        %1684 = vmatprep.mubr.f32.mxu0 0.0
        %1685 = vmatmul.mubr.f32.gmra.mxu0 %v1598
        %v1686 = vpop.f32.mrf.mxu0
        %v1687 = vadd.f32 0.0, %v1686
        %v1688 = vpop.f32.mrf.mxu0
        %1689 = vdwg.mxu0
        %1690 = vmatprep.subr.mxu0 0.0
        %1691 = vmatpush1.msra.mxu0 0.0
        %1692 = vmatprep.subr.mxu0 0.0
        %1693 = vmatpush1.msra.mxu0 0.0
        %1694 = vmatprep.subr.mxu0 0.0
        %1695 = vmatpush1.msra.mxu0 0.0
        %1696 = vmatprep.subr.mxu0 0.0
        %1697 = vmatpush1.msra.mxu0 0.0
        %1698 = vmatprep.subr.mxu0 0.0
        %1699 = vmatpush1.msra.mxu0 0.0
        %1700 = vmatprep.subr.mxu0 0.0
        %1701 = vmatpush1.msra.mxu0 0.0
        %1702 = vmatprep.subr.mxu0 0.0
        %1703 = vmatpush1.msra.mxu0 0.0
        %1704 = vmatprep.subr.mxu0 0.0
        %1705 = vmatpush1.msra.mxu0 0.0
        %1706 = vmatprep.subr.mxu0 0.0
        %1707 = vmatpush1.msra.mxu0 0.0
        %1708 = vmatprep.subr.mxu0 0.0
        %1709 = vmatpush1.msra.mxu0 0.0
        %1710 = vmatprep.subr.mxu0 0.0
        %1711 = vmatpush1.msra.mxu0 0.0
        %1712 = vmatprep.subr.mxu0 0.0
        %1713 = vmatpush1.msra.mxu0 0.0
        %1714 = vmatprep.subr.mxu0 0.0
        %1715 = vmatpush1.msra.mxu0 0.0
        %1716 = vmatprep.subr.mxu0 0.0
        %1717 = vmatpush1.msra.mxu0 0.0
        %1718 = vmatprep.subr.mxu0 0.0
        %1719 = vmatpush1.msra.mxu0 0.0
        %1720 = vmatprep.subr.mxu0 0.0
        %1721 = vmatpush1.msra.mxu0 %v1403
        %1722 = vmatprep.subr.mxu0 0.0
        %1723 = vmatpush2.msra.mxu0 0.0
        %1724 = vmatprep.subr.mxu0 0.0
        %1725 = vmatpush2.msra.mxu0 0.0
        %1726 = vmatprep.subr.mxu0 0.0
        %1727 = vmatpush2.msra.mxu0 0.0
        %1728 = vmatprep.subr.mxu0 0.0
        %1729 = vmatpush2.msra.mxu0 0.0
        %1730 = vmatprep.subr.mxu0 0.0
        %1731 = vmatpush2.msra.mxu0 0.0
        %1732 = vmatprep.subr.mxu0 0.0
        %1733 = vmatpush2.msra.mxu0 0.0
        %1734 = vmatprep.subr.mxu0 0.0
        %1735 = vmatpush2.msra.mxu0 0.0
        %1736 = vmatprep.subr.mxu0 0.0
        %1737 = vmatpush2.msra.mxu0 0.0
        %1738 = vmatprep.subr.mxu0 0.0
        %1739 = vmatpush2.msra.mxu0 0.0
        %1740 = vmatprep.subr.mxu0 0.0
        %1741 = vmatpush2.msra.mxu0 0.0
        %1742 = vmatprep.subr.mxu0 0.0
        %1743 = vmatpush2.msra.mxu0 0.0
        %1744 = vmatprep.subr.mxu0 0.0
        %1745 = vmatpush2.msra.mxu0 0.0
        %1746 = vmatprep.subr.mxu0 0.0
        %1747 = vmatpush2.msra.mxu0 0.0
        %1748 = vmatprep.subr.mxu0 0.0
        %1749 = vmatpush2.msra.mxu0 0.0
        %1750 = vmatprep.subr.mxu0 0.0
        %1751 = vmatpush2.msra.mxu0 0.0
        %1752 = vmatprep.subr.mxu0 0.0
        %1753 = vmatpush2.msra.mxu0 0.0
        %1754 = vmatprep.mubr.f32.mxu0 0.0
        %1755 = vmatmul.mubr.f32.gmra.mxu0 %v1586
        %v1756 = vpop.f32.mrf.mxu0
        %v1757 = vadd.f32 0.0, %v1756
        %v1758 = vpop.f32.mrf.mxu0
        %1759 = vmatprep.mubr.f32.mxu0 0.0
        %1760 = vmatmul.mubr.f32.gmra.mxu0 %v1589
        %v1761 = vpop.f32.mrf.mxu0
        %v1762 = vadd.f32 0.0, %v1761
        %v1763 = vpop.f32.mrf.mxu0
        %1764 = vmatprep.mubr.f32.mxu0 0.0
        %1765 = vmatmul.mubr.f32.gmra.mxu0 %v1592
        %v1766 = vpop.f32.mrf.mxu0
        %v1767 = vadd.f32 0.0, %v1766
        %v1768 = vpop.f32.mrf.mxu0
        %1769 = vmatprep.mubr.f32.mxu0 0.0
        %1770 = vmatmul.mubr.f32.gmra.mxu0 %v1595
        %v1771 = vpop.f32.mrf.mxu0
        %v1772 = vadd.f32 0.0, %v1771
        %v1773 = vpop.f32.mrf.mxu0
        %1774 = vmatprep.mubr.f32.mxu0 0.0
        %1775 = vmatmul.mubr.f32.gmra.mxu0 %v1598
        %v1776 = vpop.f32.mrf.mxu0
        %v1777 = vadd.f32 0.0, %v1776
        %v1778 = vpop.f32.mrf.mxu0
        %1779 = vdwg.mxu0
        %1780 = vmatprep.subr.mxu0 0.0
        %1781 = vmatpush1.msra.mxu0 0.0
        %1782 = vmatprep.subr.mxu0 0.0
        %1783 = vmatpush1.msra.mxu0 0.0
        %1784 = vmatprep.subr.mxu0 0.0
        %1785 = vmatpush1.msra.mxu0 0.0
        %1786 = vmatprep.subr.mxu0 0.0
        %1787 = vmatpush1.msra.mxu0 0.0
        %1788 = vmatprep.subr.mxu0 0.0
        %1789 = vmatpush1.msra.mxu0 0.0
        %1790 = vmatprep.subr.mxu0 0.0
        %1791 = vmatpush1.msra.mxu0 0.0
        %1792 = vmatprep.subr.mxu0 0.0
        %1793 = vmatpush1.msra.mxu0 0.0
        %1794 = vmatprep.subr.mxu0 0.0
        %1795 = vmatpush1.msra.mxu0 0.0
        %1796 = vmatprep.subr.mxu0 0.0
        %1797 = vmatpush1.msra.mxu0 0.0
        %1798 = vmatprep.subr.mxu0 0.0
        %1799 = vmatpush1.msra.mxu0 0.0
        %1800 = vmatprep.subr.mxu0 0.0
        %1801 = vmatpush1.msra.mxu0 0.0
        %1802 = vmatprep.subr.mxu0 0.0
        %1803 = vmatpush1.msra.mxu0 0.0
        %1804 = vmatprep.subr.mxu0 0.0
        %1805 = vmatpush1.msra.mxu0 0.0
        %1806 = vmatprep.subr.mxu0 0.0
        %1807 = vmatpush1.msra.mxu0 0.0
        %1808 = vmatprep.subr.mxu0 0.0
        %1809 = vmatpush1.msra.mxu0 0.0
        %1810 = vmatprep.subr.mxu0 0.0
        %1811 = vmatpush1.msra.mxu0 %v781
        %1812 = vmatprep.subr.mxu0 0.0
        %1813 = vmatpush2.msra.mxu0 0.0
        %1814 = vmatprep.subr.mxu0 0.0
        %1815 = vmatpush2.msra.mxu0 0.0
        %1816 = vmatprep.subr.mxu0 0.0
        %1817 = vmatpush2.msra.mxu0 0.0
        %1818 = vmatprep.subr.mxu0 0.0
        %1819 = vmatpush2.msra.mxu0 0.0
        %1820 = vmatprep.subr.mxu0 0.0
        %1821 = vmatpush2.msra.mxu0 0.0
        %1822 = vmatprep.subr.mxu0 0.0
        %1823 = vmatpush2.msra.mxu0 0.0
        %1824 = vmatprep.subr.mxu0 0.0
        %1825 = vmatpush2.msra.mxu0 0.0
        %1826 = vmatprep.subr.mxu0 0.0
        %1827 = vmatpush2.msra.mxu0 0.0
        %1828 = vmatprep.subr.mxu0 0.0
        %1829 = vmatpush2.msra.mxu0 0.0
        %1830 = vmatprep.subr.mxu0 0.0
        %1831 = vmatpush2.msra.mxu0 0.0
        %1832 = vmatprep.subr.mxu0 0.0
        %1833 = vmatpush2.msra.mxu0 0.0
        %1834 = vmatprep.subr.mxu0 0.0
        %1835 = vmatpush2.msra.mxu0 0.0
        %1836 = vmatprep.subr.mxu0 0.0
        %1837 = vmatpush2.msra.mxu0 0.0
        %1838 = vmatprep.subr.mxu0 0.0
        %1839 = vmatpush2.msra.mxu0 0.0
        %1840 = vmatprep.subr.mxu0 0.0
        %1841 = vmatpush2.msra.mxu0 0.0
        %1842 = vmatprep.subr.mxu0 0.0
        %1843 = vmatpush2.msra.mxu0 0.0
        %1844 = vmatprep.mubr.f32.mxu0 0.0
        %1845 = vmatmul.mubr.f32.gmra.mxu0 %v1586
        %v1846 = vpop.f32.mrf.mxu0
        %v1847 = vadd.f32 0.0, %v1846
        %v1848 = vpop.f32.mrf.mxu0
        %1849 = vmatprep.mubr.f32.mxu0 0.0
        %1850 = vmatmul.mubr.f32.gmra.mxu0 %v1589
        %v1851 = vpop.f32.mrf.mxu0
        %v1852 = vadd.f32 0.0, %v1851
        %v1853 = vpop.f32.mrf.mxu0
        %1854 = vmatprep.mubr.f32.mxu0 0.0
        %1855 = vmatmul.mubr.f32.gmra.mxu0 %v1592
        %v1856 = vpop.f32.mrf.mxu0
        %v1857 = vadd.f32 0.0, %v1856
        %v1858 = vpop.f32.mrf.mxu0
        %1859 = vmatprep.mubr.f32.mxu0 0.0
        %1860 = vmatmul.mubr.f32.gmra.mxu0 %v1595
        %v1861 = vpop.f32.mrf.mxu0
        %v1862 = vadd.f32 0.0, %v1861
        %v1863 = vpop.f32.mrf.mxu0
        %1864 = vmatprep.mubr.f32.mxu0 0.0
        %1865 = vmatmul.mubr.f32.gmra.mxu0 %v1598
        %v1866 = vpop.f32.mrf.mxu0
        %v1867 = vadd.f32 0.0, %v1866
        %v1868 = vpop.f32.mrf.mxu0
        %1869 = vdwg.mxu0
        %v1870 = vld [vmem:[#allocation15] sm:$0xff]
        %v1871 = vld [vmem:[#allocation15 + $0x8] sm:$0xf]
        %v1872 = vld [vmem:[%s16] sm:$0xff]
        %v1873 = vld [vmem:[%s16 + $0x8] sm:$0xff]
        %v1874 = vld [vmem:[%s16 + $0x10] sm:$0xff]
        %v1875 = vld [vmem:[%s16 + $0x18] sm:$0xff]
        %v1877 = vsel %vm800, %v1757, 0
        %1879 = vmatprep.subr.mxu0 0.0
        %1880 = vmatpush1.msra.mxu0 0.0
        %1881 = vmatprep.subr.mxu0 0.0
        %1882 = vmatpush1.msra.mxu0 0.0
        %1883 = vmatprep.subr.mxu0 0.0
        %1884 = vmatpush1.msra.mxu0 0.0
        %1885 = vmatprep.subr.mxu0 0.0
        %1886 = vmatpush1.msra.mxu0 0.0
        %1887 = vmatprep.subr.mxu0 0.0
        %1888 = vmatpush1.msra.mxu0 0.0
        %1889 = vmatprep.subr.mxu0 0.0
        %1890 = vmatpush1.msra.mxu0 0.0
        %1891 = vmatprep.subr.mxu0 0.0
        %1892 = vmatpush1.msra.mxu0 0.0
        %1893 = vmatprep.subr.mxu0 0.0
        %1894 = vmatpush1.msra.mxu0 0.0
        %1895 = vmatprep.subr.mxu0 0.0
        %1896 = vmatpush1.msra.mxu0 0.0
        %1897 = vmatprep.subr.mxu0 0.0
        %1898 = vmatpush1.msra.mxu0 0.0
        %1899 = vmatprep.subr.mxu0 0.0
        %1900 = vmatpush1.msra.mxu0 0.0
        %1901 = vmatprep.subr.mxu0 0.0
        %1902 = vmatpush1.msra.mxu0 0.0
        %1903 = vmatprep.subr.mxu0 0.0
        %1904 = vmatpush1.msra.mxu0 %v1875
        %1905 = vmatprep.subr.mxu0 0.0
        %1906 = vmatpush1.msra.mxu0 %v1874
        %1907 = vmatprep.subr.mxu0 0.0
        %1908 = vmatpush1.msra.mxu0 %v1873
        %1909 = vmatprep.subr.mxu0 0.0
        %1910 = vmatpush1.msra.mxu0 %v1872
        %1911 = vmatprep.subr.mxu0 0.0
        %1912 = vmatpush2.msra.mxu0 0.0
        %1913 = vmatprep.subr.mxu0 0.0
        %1914 = vmatpush2.msra.mxu0 0.0
        %1915 = vmatprep.subr.mxu0 0.0
        %1916 = vmatpush2.msra.mxu0 0.0
        %1917 = vmatprep.subr.mxu0 0.0
        %1918 = vmatpush2.msra.mxu0 0.0
        %1919 = vmatprep.subr.mxu0 0.0
        %1920 = vmatpush2.msra.mxu0 0.0
        %1921 = vmatprep.subr.mxu0 0.0
        %1922 = vmatpush2.msra.mxu0 0.0
        %1923 = vmatprep.subr.mxu0 0.0
        %1924 = vmatpush2.msra.mxu0 0.0
        %1925 = vmatprep.subr.mxu0 0.0
        %1926 = vmatpush2.msra.mxu0 0.0
        %1927 = vmatprep.subr.mxu0 0.0
        %1928 = vmatpush2.msra.mxu0 0.0
        %1929 = vmatprep.subr.mxu0 0.0
        %1930 = vmatpush2.msra.mxu0 0.0
        %1931 = vmatprep.subr.mxu0 0.0
        %1932 = vmatpush2.msra.mxu0 0.0
        %1933 = vmatprep.subr.mxu0 0.0
        %1934 = vmatpush2.msra.mxu0 0.0
        %1935 = vmatprep.subr.mxu0 0.0
        %1936 = vmatpush2.msra.mxu0 0.0
        %1937 = vmatprep.subr.mxu0 0.0
        %1938 = vmatpush2.msra.mxu0 0.0
        %1939 = vmatprep.subr.mxu0 0.0
        %1940 = vmatpush2.msra.mxu0 0.0
        %1941 = vmatprep.subr.mxu0 0.0
        %1942 = vmatpush2.msra.mxu0 0.0
        %1943 = vmatprep.mubr.f32.mxu0 0.0
        %1944 = vmatmul.mubr.f32.gmra.mxu0 %v1877
        %v1945 = vpop.f32.mrf.mxu0
        %v1946 = vadd.f32 0.0, %v1945
        %v1947 = vpop.f32.mrf.mxu0
        %1948 = vdwg.mxu0
        %v1950 = vsel %vm878, %v1667, 0
        %v1953 = vsel %vm910, %v1871, 0
        %1955 = vmatprep.subr.mxu0 0.0
        %1956 = vmatpush1.msra.mxu0 0.0
        %1957 = vmatprep.subr.mxu0 0.0
        %1958 = vmatpush1.msra.mxu0 0.0
        %1959 = vmatprep.subr.mxu0 0.0
        %1960 = vmatpush1.msra.mxu0 0.0
        %1961 = vmatprep.subr.mxu0 0.0
        %1962 = vmatpush1.msra.mxu0 0.0
        %1963 = vmatprep.subr.mxu0 0.0
        %1964 = vmatpush1.msra.mxu0 0.0
        %1965 = vmatprep.subr.mxu0 0.0
        %1966 = vmatpush1.msra.mxu0 0.0
        %1967 = vmatprep.subr.mxu0 0.0
        %1968 = vmatpush1.msra.mxu0 0.0
        %1969 = vmatprep.subr.mxu0 0.0
        %1970 = vmatpush1.msra.mxu0 0.0
        %1971 = vmatprep.subr.mxu0 0.0
        %1972 = vmatpush1.msra.mxu0 0.0
        %1973 = vmatprep.subr.mxu0 0.0
        %1974 = vmatpush1.msra.mxu0 0.0
        %1975 = vmatprep.subr.mxu0 0.0
        %1976 = vmatpush1.msra.mxu0 0.0
        %1977 = vmatprep.subr.mxu0 0.0
        %1978 = vmatpush1.msra.mxu0 0.0
        %1979 = vmatprep.subr.mxu0 0.0
        %1980 = vmatpush1.msra.mxu0 0.0
        %1981 = vmatprep.subr.mxu0 0.0
        %1982 = vmatpush1.msra.mxu0 0.0
        %1983 = vmatprep.subr.mxu0 0.0
        %1984 = vmatpush1.msra.mxu0 %v1953
        %1985 = vmatprep.subr.mxu0 0.0
        %1986 = vmatpush1.msra.mxu0 %v1870
        %1987 = vmatprep.subr.mxu0 0.0
        %1988 = vmatpush2.msra.mxu0 0.0
        %1989 = vmatprep.subr.mxu0 0.0
        %1990 = vmatpush2.msra.mxu0 0.0
        %1991 = vmatprep.subr.mxu0 0.0
        %1992 = vmatpush2.msra.mxu0 0.0
        %1993 = vmatprep.subr.mxu0 0.0
        %1994 = vmatpush2.msra.mxu0 0.0
        %1995 = vmatprep.subr.mxu0 0.0
        %1996 = vmatpush2.msra.mxu0 0.0
        %1997 = vmatprep.subr.mxu0 0.0
        %1998 = vmatpush2.msra.mxu0 0.0
        %1999 = vmatprep.subr.mxu0 0.0
        %2000 = vmatpush2.msra.mxu0 0.0
        %2001 = vmatprep.subr.mxu0 0.0
        %2002 = vmatpush2.msra.mxu0 0.0
        %2003 = vmatprep.subr.mxu0 0.0
        %2004 = vmatpush2.msra.mxu0 0.0
        %2005 = vmatprep.subr.mxu0 0.0
        %2006 = vmatpush2.msra.mxu0 0.0
        %2007 = vmatprep.subr.mxu0 0.0
        %2008 = vmatpush2.msra.mxu0 0.0
        %2009 = vmatprep.subr.mxu0 0.0
        %2010 = vmatpush2.msra.mxu0 0.0
        %2011 = vmatprep.subr.mxu0 0.0
        %2012 = vmatpush2.msra.mxu0 0.0
        %2013 = vmatprep.subr.mxu0 0.0
        %2014 = vmatpush2.msra.mxu0 0.0
        %2015 = vmatprep.subr.mxu0 0.0
        %2016 = vmatpush2.msra.mxu0 0.0
        %2017 = vmatprep.subr.mxu0 0.0
        %2018 = vmatpush2.msra.mxu0 0.0
        %2019 = vmatprep.mubr.f32.mxu0 0.0
        %2020 = vmatmul.mubr.f32.gmra.mxu0 %v1950
        %v2021 = vpop.f32.mrf.mxu0
        %v2022 = vadd.f32 %v1946, %v2021
        %v2023 = vpop.f32.mrf.mxu0
        %2024 = vdwg.mxu0
        %s2025 = scalar_lea.vmem [#allocation15], 16
        %v2026 = vld [vmem:[%s2025] sm:$0xff]
        %v2027 = vld [vmem:[%s2025 + $0x8] sm:$0xf]
        %s2028 = scalar_lea.vmem %s16, 32
        %v2029 = vld [vmem:[%s2028] sm:$0xff]
        %v2030 = vld [vmem:[%s2028 + $0x8] sm:$0xff]
        %v2031 = vld [vmem:[%s2028 + $0x10] sm:$0xff]
        %v2032 = vld [vmem:[%s2028 + $0x18] sm:$0xff]
        %v2034 = vsel %vm800, %v1762, 0
        %2036 = vmatprep.subr.mxu0 0.0
        %2037 = vmatpush1.msra.mxu0 0.0
        %2038 = vmatprep.subr.mxu0 0.0
        %2039 = vmatpush1.msra.mxu0 0.0
        %2040 = vmatprep.subr.mxu0 0.0
        %2041 = vmatpush1.msra.mxu0 0.0
        %2042 = vmatprep.subr.mxu0 0.0
        %2043 = vmatpush1.msra.mxu0 0.0
        %2044 = vmatprep.subr.mxu0 0.0
        %2045 = vmatpush1.msra.mxu0 0.0
        %2046 = vmatprep.subr.mxu0 0.0
        %2047 = vmatpush1.msra.mxu0 0.0
        %2048 = vmatprep.subr.mxu0 0.0
        %2049 = vmatpush1.msra.mxu0 0.0
        %2050 = vmatprep.subr.mxu0 0.0
        %2051 = vmatpush1.msra.mxu0 0.0
        %2052 = vmatprep.subr.mxu0 0.0
        %2053 = vmatpush1.msra.mxu0 0.0
        %2054 = vmatprep.subr.mxu0 0.0
        %2055 = vmatpush1.msra.mxu0 0.0
        %2056 = vmatprep.subr.mxu0 0.0
        %2057 = vmatpush1.msra.mxu0 0.0
        %2058 = vmatprep.subr.mxu0 0.0
        %2059 = vmatpush1.msra.mxu0 0.0
        %2060 = vmatprep.subr.mxu0 0.0
        %2061 = vmatpush1.msra.mxu0 %v2032
        %2062 = vmatprep.subr.mxu0 0.0
        %2063 = vmatpush1.msra.mxu0 %v2031
        %2064 = vmatprep.subr.mxu0 0.0
        %2065 = vmatpush1.msra.mxu0 %v2030
        %2066 = vmatprep.subr.mxu0 0.0
        %2067 = vmatpush1.msra.mxu0 %v2029
        %2068 = vmatprep.subr.mxu0 0.0
        %2069 = vmatpush2.msra.mxu0 0.0
        %2070 = vmatprep.subr.mxu0 0.0
        %2071 = vmatpush2.msra.mxu0 0.0
        %2072 = vmatprep.subr.mxu0 0.0
        %2073 = vmatpush2.msra.mxu0 0.0
        %2074 = vmatprep.subr.mxu0 0.0
        %2075 = vmatpush2.msra.mxu0 0.0
        %2076 = vmatprep.subr.mxu0 0.0
        %2077 = vmatpush2.msra.mxu0 0.0
        %2078 = vmatprep.subr.mxu0 0.0
        %2079 = vmatpush2.msra.mxu0 0.0
        %2080 = vmatprep.subr.mxu0 0.0
        %2081 = vmatpush2.msra.mxu0 0.0
        %2082 = vmatprep.subr.mxu0 0.0
        %2083 = vmatpush2.msra.mxu0 0.0
        %2084 = vmatprep.subr.mxu0 0.0
        %2085 = vmatpush2.msra.mxu0 0.0
        %2086 = vmatprep.subr.mxu0 0.0
        %2087 = vmatpush2.msra.mxu0 0.0
        %2088 = vmatprep.subr.mxu0 0.0
        %2089 = vmatpush2.msra.mxu0 0.0
        %2090 = vmatprep.subr.mxu0 0.0
        %2091 = vmatpush2.msra.mxu0 0.0
        %2092 = vmatprep.subr.mxu0 0.0
        %2093 = vmatpush2.msra.mxu0 0.0
        %2094 = vmatprep.subr.mxu0 0.0
        %2095 = vmatpush2.msra.mxu0 0.0
        %2096 = vmatprep.subr.mxu0 0.0
        %2097 = vmatpush2.msra.mxu0 0.0
        %2098 = vmatprep.subr.mxu0 0.0
        %2099 = vmatpush2.msra.mxu0 0.0
        %2100 = vmatprep.mubr.f32.mxu0 0.0
        %2101 = vmatmul.mubr.f32.gmra.mxu0 %v2034
        %v2102 = vpop.f32.mrf.mxu0
        %v2103 = vadd.f32 0.0, %v2102
        %v2104 = vpop.f32.mrf.mxu0
        %2105 = vdwg.mxu0
        %v2107 = vsel %vm878, %v1672, 0
        %v2110 = vsel %vm910, %v2027, 0
        %2112 = vmatprep.subr.mxu0 0.0
        %2113 = vmatpush1.msra.mxu0 0.0
        %2114 = vmatprep.subr.mxu0 0.0
        %2115 = vmatpush1.msra.mxu0 0.0
        %2116 = vmatprep.subr.mxu0 0.0
        %2117 = vmatpush1.msra.mxu0 0.0
        %2118 = vmatprep.subr.mxu0 0.0
        %2119 = vmatpush1.msra.mxu0 0.0
        %2120 = vmatprep.subr.mxu0 0.0
        %2121 = vmatpush1.msra.mxu0 0.0
        %2122 = vmatprep.subr.mxu0 0.0
        %2123 = vmatpush1.msra.mxu0 0.0
        %2124 = vmatprep.subr.mxu0 0.0
        %2125 = vmatpush1.msra.mxu0 0.0
        %2126 = vmatprep.subr.mxu0 0.0
        %2127 = vmatpush1.msra.mxu0 0.0
        %2128 = vmatprep.subr.mxu0 0.0
        %2129 = vmatpush1.msra.mxu0 0.0
        %2130 = vmatprep.subr.mxu0 0.0
        %2131 = vmatpush1.msra.mxu0 0.0
        %2132 = vmatprep.subr.mxu0 0.0
        %2133 = vmatpush1.msra.mxu0 0.0
        %2134 = vmatprep.subr.mxu0 0.0
        %2135 = vmatpush1.msra.mxu0 0.0
        %2136 = vmatprep.subr.mxu0 0.0
        %2137 = vmatpush1.msra.mxu0 0.0
        %2138 = vmatprep.subr.mxu0 0.0
        %2139 = vmatpush1.msra.mxu0 0.0
        %2140 = vmatprep.subr.mxu0 0.0
        %2141 = vmatpush1.msra.mxu0 %v2110
        %2142 = vmatprep.subr.mxu0 0.0
        %2143 = vmatpush1.msra.mxu0 %v2026
        %2144 = vmatprep.subr.mxu0 0.0
        %2145 = vmatpush2.msra.mxu0 0.0
        %2146 = vmatprep.subr.mxu0 0.0
        %2147 = vmatpush2.msra.mxu0 0.0
        %2148 = vmatprep.subr.mxu0 0.0
        %2149 = vmatpush2.msra.mxu0 0.0
        %2150 = vmatprep.subr.mxu0 0.0
        %2151 = vmatpush2.msra.mxu0 0.0
        %2152 = vmatprep.subr.mxu0 0.0
        %2153 = vmatpush2.msra.mxu0 0.0
        %2154 = vmatprep.subr.mxu0 0.0
        %2155 = vmatpush2.msra.mxu0 0.0
        %2156 = vmatprep.subr.mxu0 0.0
        %2157 = vmatpush2.msra.mxu0 0.0
        %2158 = vmatprep.subr.mxu0 0.0
        %2159 = vmatpush2.msra.mxu0 0.0
        %2160 = vmatprep.subr.mxu0 0.0
        %2161 = vmatpush2.msra.mxu0 0.0
        %2162 = vmatprep.subr.mxu0 0.0
        %2163 = vmatpush2.msra.mxu0 0.0
        %2164 = vmatprep.subr.mxu0 0.0
        %2165 = vmatpush2.msra.mxu0 0.0
        %2166 = vmatprep.subr.mxu0 0.0
        %2167 = vmatpush2.msra.mxu0 0.0
        %2168 = vmatprep.subr.mxu0 0.0
        %2169 = vmatpush2.msra.mxu0 0.0
        %2170 = vmatprep.subr.mxu0 0.0
        %2171 = vmatpush2.msra.mxu0 0.0
        %2172 = vmatprep.subr.mxu0 0.0
        %2173 = vmatpush2.msra.mxu0 0.0
        %2174 = vmatprep.subr.mxu0 0.0
        %2175 = vmatpush2.msra.mxu0 0.0
        %2176 = vmatprep.mubr.f32.mxu0 0.0
        %2177 = vmatmul.mubr.f32.gmra.mxu0 %v2107
        %v2178 = vpop.f32.mrf.mxu0
        %v2179 = vadd.f32 %v2103, %v2178
        %v2180 = vpop.f32.mrf.mxu0
        %2181 = vdwg.mxu0
        %s2182 = scalar_lea.vmem [#allocation15], 32
        %v2183 = vld [vmem:[%s2182] sm:$0xff]
        %v2184 = vld [vmem:[%s2182 + $0x8] sm:$0xf]
        %s2185 = scalar_lea.vmem %s16, 64
        %v2186 = vld [vmem:[%s2185] sm:$0xff]
        %v2187 = vld [vmem:[%s2185 + $0x8] sm:$0xff]
        %v2188 = vld [vmem:[%s2185 + $0x10] sm:$0xff]
        %v2189 = vld [vmem:[%s2185 + $0x18] sm:$0xff]
        %v2191 = vsel %vm800, %v1767, 0
        %2193 = vmatprep.subr.mxu0 0.0
        %2194 = vmatpush1.msra.mxu0 0.0
        %2195 = vmatprep.subr.mxu0 0.0
        %2196 = vmatpush1.msra.mxu0 0.0
        %2197 = vmatprep.subr.mxu0 0.0
        %2198 = vmatpush1.msra.mxu0 0.0
        %2199 = vmatprep.subr.mxu0 0.0
        %2200 = vmatpush1.msra.mxu0 0.0
        %2201 = vmatprep.subr.mxu0 0.0
        %2202 = vmatpush1.msra.mxu0 0.0
        %2203 = vmatprep.subr.mxu0 0.0
        %2204 = vmatpush1.msra.mxu0 0.0
        %2205 = vmatprep.subr.mxu0 0.0
        %2206 = vmatpush1.msra.mxu0 0.0
        %2207 = vmatprep.subr.mxu0 0.0
        %2208 = vmatpush1.msra.mxu0 0.0
        %2209 = vmatprep.subr.mxu0 0.0
        %2210 = vmatpush1.msra.mxu0 0.0
        %2211 = vmatprep.subr.mxu0 0.0
        %2212 = vmatpush1.msra.mxu0 0.0
        %2213 = vmatprep.subr.mxu0 0.0
        %2214 = vmatpush1.msra.mxu0 0.0
        %2215 = vmatprep.subr.mxu0 0.0
        %2216 = vmatpush1.msra.mxu0 0.0
        %2217 = vmatprep.subr.mxu0 0.0
        %2218 = vmatpush1.msra.mxu0 %v2189
        %2219 = vmatprep.subr.mxu0 0.0
        %2220 = vmatpush1.msra.mxu0 %v2188
        %2221 = vmatprep.subr.mxu0 0.0
        %2222 = vmatpush1.msra.mxu0 %v2187
        %2223 = vmatprep.subr.mxu0 0.0
        %2224 = vmatpush1.msra.mxu0 %v2186
        %2225 = vmatprep.subr.mxu0 0.0
        %2226 = vmatpush2.msra.mxu0 0.0
        %2227 = vmatprep.subr.mxu0 0.0
        %2228 = vmatpush2.msra.mxu0 0.0
        %2229 = vmatprep.subr.mxu0 0.0
        %2230 = vmatpush2.msra.mxu0 0.0
        %2231 = vmatprep.subr.mxu0 0.0
        %2232 = vmatpush2.msra.mxu0 0.0
        %2233 = vmatprep.subr.mxu0 0.0
        %2234 = vmatpush2.msra.mxu0 0.0
        %2235 = vmatprep.subr.mxu0 0.0
        %2236 = vmatpush2.msra.mxu0 0.0
        %2237 = vmatprep.subr.mxu0 0.0
        %2238 = vmatpush2.msra.mxu0 0.0
        %2239 = vmatprep.subr.mxu0 0.0
        %2240 = vmatpush2.msra.mxu0 0.0
        %2241 = vmatprep.subr.mxu0 0.0
        %2242 = vmatpush2.msra.mxu0 0.0
        %2243 = vmatprep.subr.mxu0 0.0
        %2244 = vmatpush2.msra.mxu0 0.0
        %2245 = vmatprep.subr.mxu0 0.0
        %2246 = vmatpush2.msra.mxu0 0.0
        %2247 = vmatprep.subr.mxu0 0.0
        %2248 = vmatpush2.msra.mxu0 0.0
        %2249 = vmatprep.subr.mxu0 0.0
        %2250 = vmatpush2.msra.mxu0 0.0
        %2251 = vmatprep.subr.mxu0 0.0
        %2252 = vmatpush2.msra.mxu0 0.0
        %2253 = vmatprep.subr.mxu0 0.0
        %2254 = vmatpush2.msra.mxu0 0.0
        %2255 = vmatprep.subr.mxu0 0.0
        %2256 = vmatpush2.msra.mxu0 0.0
        %2257 = vmatprep.mubr.f32.mxu0 0.0
        %2258 = vmatmul.mubr.f32.gmra.mxu0 %v2191
        %v2259 = vpop.f32.mrf.mxu0
        %v2260 = vadd.f32 0.0, %v2259
        %v2261 = vpop.f32.mrf.mxu0
        %2262 = vdwg.mxu0
        %v2264 = vsel %vm878, %v1677, 0
        %v2267 = vsel %vm910, %v2184, 0
        %2269 = vmatprep.subr.mxu0 0.0
        %2270 = vmatpush1.msra.mxu0 0.0
        %2271 = vmatprep.subr.mxu0 0.0
        %2272 = vmatpush1.msra.mxu0 0.0
        %2273 = vmatprep.subr.mxu0 0.0
        %2274 = vmatpush1.msra.mxu0 0.0
        %2275 = vmatprep.subr.mxu0 0.0
        %2276 = vmatpush1.msra.mxu0 0.0
        %2277 = vmatprep.subr.mxu0 0.0
        %2278 = vmatpush1.msra.mxu0 0.0
        %2279 = vmatprep.subr.mxu0 0.0
        %2280 = vmatpush1.msra.mxu0 0.0
        %2281 = vmatprep.subr.mxu0 0.0
        %2282 = vmatpush1.msra.mxu0 0.0
        %2283 = vmatprep.subr.mxu0 0.0
        %2284 = vmatpush1.msra.mxu0 0.0
        %2285 = vmatprep.subr.mxu0 0.0
        %2286 = vmatpush1.msra.mxu0 0.0
        %2287 = vmatprep.subr.mxu0 0.0
        %2288 = vmatpush1.msra.mxu0 0.0
        %2289 = vmatprep.subr.mxu0 0.0
        %2290 = vmatpush1.msra.mxu0 0.0
        %2291 = vmatprep.subr.mxu0 0.0
        %2292 = vmatpush1.msra.mxu0 0.0
        %2293 = vmatprep.subr.mxu0 0.0
        %2294 = vmatpush1.msra.mxu0 0.0
        %2295 = vmatprep.subr.mxu0 0.0
        %2296 = vmatpush1.msra.mxu0 0.0
        %2297 = vmatprep.subr.mxu0 0.0
        %2298 = vmatpush1.msra.mxu0 %v2267
        %2299 = vmatprep.subr.mxu0 0.0
        %2300 = vmatpush1.msra.mxu0 %v2183
        %2301 = vmatprep.subr.mxu0 0.0
        %2302 = vmatpush2.msra.mxu0 0.0
        %2303 = vmatprep.subr.mxu0 0.0
        %2304 = vmatpush2.msra.mxu0 0.0
        %2305 = vmatprep.subr.mxu0 0.0
        %2306 = vmatpush2.msra.mxu0 0.0
        %2307 = vmatprep.subr.mxu0 0.0
        %2308 = vmatpush2.msra.mxu0 0.0
        %2309 = vmatprep.subr.mxu0 0.0
        %2310 = vmatpush2.msra.mxu0 0.0
        %2311 = vmatprep.subr.mxu0 0.0
        %2312 = vmatpush2.msra.mxu0 0.0
        %2313 = vmatprep.subr.mxu0 0.0
        %2314 = vmatpush2.msra.mxu0 0.0
        %2315 = vmatprep.subr.mxu0 0.0
        %2316 = vmatpush2.msra.mxu0 0.0
        %2317 = vmatprep.subr.mxu0 0.0
        %2318 = vmatpush2.msra.mxu0 0.0
        %2319 = vmatprep.subr.mxu0 0.0
        %2320 = vmatpush2.msra.mxu0 0.0
        %2321 = vmatprep.subr.mxu0 0.0
        %2322 = vmatpush2.msra.mxu0 0.0
        %2323 = vmatprep.subr.mxu0 0.0
        %2324 = vmatpush2.msra.mxu0 0.0
        %2325 = vmatprep.subr.mxu0 0.0
        %2326 = vmatpush2.msra.mxu0 0.0
        %2327 = vmatprep.subr.mxu0 0.0
        %2328 = vmatpush2.msra.mxu0 0.0
        %2329 = vmatprep.subr.mxu0 0.0
        %2330 = vmatpush2.msra.mxu0 0.0
        %2331 = vmatprep.subr.mxu0 0.0
        %2332 = vmatpush2.msra.mxu0 0.0
        %2333 = vmatprep.mubr.f32.mxu0 0.0
        %2334 = vmatmul.mubr.f32.gmra.mxu0 %v2264
        %v2335 = vpop.f32.mrf.mxu0
        %v2336 = vadd.f32 %v2260, %v2335
        %v2337 = vpop.f32.mrf.mxu0
        %2338 = vdwg.mxu0
        %s2339 = scalar_lea.vmem [#allocation15], 48
        %v2340 = vld [vmem:[%s2339] sm:$0xff]
        %v2341 = vld [vmem:[%s2339 + $0x8] sm:$0xf]
        %s2342 = scalar_lea.vmem %s16, 96
        %v2343 = vld [vmem:[%s2342] sm:$0xff]
        %v2344 = vld [vmem:[%s2342 + $0x8] sm:$0xff]
        %v2345 = vld [vmem:[%s2342 + $0x10] sm:$0xff]
        %v2346 = vld [vmem:[%s2342 + $0x18] sm:$0xff]
        %v2348 = vsel %vm800, %v1772, 0
        %2350 = vmatprep.subr.mxu0 0.0
        %2351 = vmatpush1.msra.mxu0 0.0
        %2352 = vmatprep.subr.mxu0 0.0
        %2353 = vmatpush1.msra.mxu0 0.0
        %2354 = vmatprep.subr.mxu0 0.0
        %2355 = vmatpush1.msra.mxu0 0.0
        %2356 = vmatprep.subr.mxu0 0.0
        %2357 = vmatpush1.msra.mxu0 0.0
        %2358 = vmatprep.subr.mxu0 0.0
        %2359 = vmatpush1.msra.mxu0 0.0
        %2360 = vmatprep.subr.mxu0 0.0
        %2361 = vmatpush1.msra.mxu0 0.0
        %2362 = vmatprep.subr.mxu0 0.0
        %2363 = vmatpush1.msra.mxu0 0.0
        %2364 = vmatprep.subr.mxu0 0.0
        %2365 = vmatpush1.msra.mxu0 0.0
        %2366 = vmatprep.subr.mxu0 0.0
        %2367 = vmatpush1.msra.mxu0 0.0
        %2368 = vmatprep.subr.mxu0 0.0
        %2369 = vmatpush1.msra.mxu0 0.0
        %2370 = vmatprep.subr.mxu0 0.0
        %2371 = vmatpush1.msra.mxu0 0.0
        %2372 = vmatprep.subr.mxu0 0.0
        %2373 = vmatpush1.msra.mxu0 0.0
        %2374 = vmatprep.subr.mxu0 0.0
        %2375 = vmatpush1.msra.mxu0 %v2346
        %2376 = vmatprep.subr.mxu0 0.0
        %2377 = vmatpush1.msra.mxu0 %v2345
        %2378 = vmatprep.subr.mxu0 0.0
        %2379 = vmatpush1.msra.mxu0 %v2344
        %2380 = vmatprep.subr.mxu0 0.0
        %2381 = vmatpush1.msra.mxu0 %v2343
        %2382 = vmatprep.subr.mxu0 0.0
        %2383 = vmatpush2.msra.mxu0 0.0
        %2384 = vmatprep.subr.mxu0 0.0
        %2385 = vmatpush2.msra.mxu0 0.0
        %2386 = vmatprep.subr.mxu0 0.0
        %2387 = vmatpush2.msra.mxu0 0.0
        %2388 = vmatprep.subr.mxu0 0.0
        %2389 = vmatpush2.msra.mxu0 0.0
        %2390 = vmatprep.subr.mxu0 0.0
        %2391 = vmatpush2.msra.mxu0 0.0
        %2392 = vmatprep.subr.mxu0 0.0
        %2393 = vmatpush2.msra.mxu0 0.0
        %2394 = vmatprep.subr.mxu0 0.0
        %2395 = vmatpush2.msra.mxu0 0.0
        %2396 = vmatprep.subr.mxu0 0.0
        %2397 = vmatpush2.msra.mxu0 0.0
        %2398 = vmatprep.subr.mxu0 0.0
        %2399 = vmatpush2.msra.mxu0 0.0
        %2400 = vmatprep.subr.mxu0 0.0
        %2401 = vmatpush2.msra.mxu0 0.0
        %2402 = vmatprep.subr.mxu0 0.0
        %2403 = vmatpush2.msra.mxu0 0.0
        %2404 = vmatprep.subr.mxu0 0.0
        %2405 = vmatpush2.msra.mxu0 0.0
        %2406 = vmatprep.subr.mxu0 0.0
        %2407 = vmatpush2.msra.mxu0 0.0
        %2408 = vmatprep.subr.mxu0 0.0
        %2409 = vmatpush2.msra.mxu0 0.0
        %2410 = vmatprep.subr.mxu0 0.0
        %2411 = vmatpush2.msra.mxu0 0.0
        %2412 = vmatprep.subr.mxu0 0.0
        %2413 = vmatpush2.msra.mxu0 0.0
        %2414 = vmatprep.mubr.f32.mxu0 0.0
        %2415 = vmatmul.mubr.f32.gmra.mxu0 %v2348
        %v2416 = vpop.f32.mrf.mxu0
        %v2417 = vadd.f32 0.0, %v2416
        %v2418 = vpop.f32.mrf.mxu0
        %2419 = vdwg.mxu0
        %v2421 = vsel %vm878, %v1682, 0
        %v2424 = vsel %vm910, %v2341, 0
        %2426 = vmatprep.subr.mxu0 0.0
        %2427 = vmatpush1.msra.mxu0 0.0
        %2428 = vmatprep.subr.mxu0 0.0
        %2429 = vmatpush1.msra.mxu0 0.0
        %2430 = vmatprep.subr.mxu0 0.0
        %2431 = vmatpush1.msra.mxu0 0.0
        %2432 = vmatprep.subr.mxu0 0.0
        %2433 = vmatpush1.msra.mxu0 0.0
        %2434 = vmatprep.subr.mxu0 0.0
        %2435 = vmatpush1.msra.mxu0 0.0
        %2436 = vmatprep.subr.mxu0 0.0
        %2437 = vmatpush1.msra.mxu0 0.0
        %2438 = vmatprep.subr.mxu0 0.0
        %2439 = vmatpush1.msra.mxu0 0.0
        %2440 = vmatprep.subr.mxu0 0.0
        %2441 = vmatpush1.msra.mxu0 0.0
        %2442 = vmatprep.subr.mxu0 0.0
        %2443 = vmatpush1.msra.mxu0 0.0
        %2444 = vmatprep.subr.mxu0 0.0
        %2445 = vmatpush1.msra.mxu0 0.0
        %2446 = vmatprep.subr.mxu0 0.0
        %2447 = vmatpush1.msra.mxu0 0.0
        %2448 = vmatprep.subr.mxu0 0.0
        %2449 = vmatpush1.msra.mxu0 0.0
        %2450 = vmatprep.subr.mxu0 0.0
        %2451 = vmatpush1.msra.mxu0 0.0
        %2452 = vmatprep.subr.mxu0 0.0
        %2453 = vmatpush1.msra.mxu0 0.0
        %2454 = vmatprep.subr.mxu0 0.0
        %2455 = vmatpush1.msra.mxu0 %v2424
        %2456 = vmatprep.subr.mxu0 0.0
        %2457 = vmatpush1.msra.mxu0 %v2340
        %2458 = vmatprep.subr.mxu0 0.0
        %2459 = vmatpush2.msra.mxu0 0.0
        %2460 = vmatprep.subr.mxu0 0.0
        %2461 = vmatpush2.msra.mxu0 0.0
        %2462 = vmatprep.subr.mxu0 0.0
        %2463 = vmatpush2.msra.mxu0 0.0
        %2464 = vmatprep.subr.mxu0 0.0
        %2465 = vmatpush2.msra.mxu0 0.0
        %2466 = vmatprep.subr.mxu0 0.0
        %2467 = vmatpush2.msra.mxu0 0.0
        %2468 = vmatprep.subr.mxu0 0.0
        %2469 = vmatpush2.msra.mxu0 0.0
        %2470 = vmatprep.subr.mxu0 0.0
        %2471 = vmatpush2.msra.mxu0 0.0
        %2472 = vmatprep.subr.mxu0 0.0
        %2473 = vmatpush2.msra.mxu0 0.0
        %2474 = vmatprep.subr.mxu0 0.0
        %2475 = vmatpush2.msra.mxu0 0.0
        %2476 = vmatprep.subr.mxu0 0.0
        %2477 = vmatpush2.msra.mxu0 0.0
        %2478 = vmatprep.subr.mxu0 0.0
        %2479 = vmatpush2.msra.mxu0 0.0
        %2480 = vmatprep.subr.mxu0 0.0
        %2481 = vmatpush2.msra.mxu0 0.0
        %2482 = vmatprep.subr.mxu0 0.0
        %2483 = vmatpush2.msra.mxu0 0.0
        %2484 = vmatprep.subr.mxu0 0.0
        %2485 = vmatpush2.msra.mxu0 0.0
        %2486 = vmatprep.subr.mxu0 0.0
        %2487 = vmatpush2.msra.mxu0 0.0
        %2488 = vmatprep.subr.mxu0 0.0
        %2489 = vmatpush2.msra.mxu0 0.0
        %2490 = vmatprep.mubr.f32.mxu0 0.0
        %2491 = vmatmul.mubr.f32.gmra.mxu0 %v2421
        %v2492 = vpop.f32.mrf.mxu0
        %v2493 = vadd.f32 %v2417, %v2492
        %v2494 = vpop.f32.mrf.mxu0
        %2495 = vdwg.mxu0
        %s2496 = scalar_lea.vmem [#allocation15], 64
        %v2497 = vld [vmem:[%s2496] sm:$0xff]
        %v2498 = vld [vmem:[%s2496 + $0x8] sm:$0xf]
        %s2499 = scalar_lea.vmem %s16, 128
        %v2500 = vld [vmem:[%s2499] sm:$0xff]
        %v2501 = vld [vmem:[%s2499 + $0x8] sm:$0xff]
        %v2502 = vld [vmem:[%s2499 + $0x10] sm:$0xff]
        %v2503 = vld [vmem:[%s2499 + $0x18] sm:$0xff]
        %v2505 = vsel %vm800, %v1777, 0
        %2507 = vmatprep.subr.mxu0 0.0
        %2508 = vmatpush1.msra.mxu0 0.0
        %2509 = vmatprep.subr.mxu0 0.0
        %2510 = vmatpush1.msra.mxu0 0.0
        %2511 = vmatprep.subr.mxu0 0.0
        %2512 = vmatpush1.msra.mxu0 0.0
        %2513 = vmatprep.subr.mxu0 0.0
        %2514 = vmatpush1.msra.mxu0 0.0
        %2515 = vmatprep.subr.mxu0 0.0
        %2516 = vmatpush1.msra.mxu0 0.0
        %2517 = vmatprep.subr.mxu0 0.0
        %2518 = vmatpush1.msra.mxu0 0.0
        %2519 = vmatprep.subr.mxu0 0.0
        %2520 = vmatpush1.msra.mxu0 0.0
        %2521 = vmatprep.subr.mxu0 0.0
        %2522 = vmatpush1.msra.mxu0 0.0
        %2523 = vmatprep.subr.mxu0 0.0
        %2524 = vmatpush1.msra.mxu0 0.0
        %2525 = vmatprep.subr.mxu0 0.0
        %2526 = vmatpush1.msra.mxu0 0.0
        %2527 = vmatprep.subr.mxu0 0.0
        %2528 = vmatpush1.msra.mxu0 0.0
        %2529 = vmatprep.subr.mxu0 0.0
        %2530 = vmatpush1.msra.mxu0 0.0
        %2531 = vmatprep.subr.mxu0 0.0
        %2532 = vmatpush1.msra.mxu0 %v2503
        %2533 = vmatprep.subr.mxu0 0.0
        %2534 = vmatpush1.msra.mxu0 %v2502
        %2535 = vmatprep.subr.mxu0 0.0
        %2536 = vmatpush1.msra.mxu0 %v2501
        %2537 = vmatprep.subr.mxu0 0.0
        %2538 = vmatpush1.msra.mxu0 %v2500
        %2539 = vmatprep.subr.mxu0 0.0
        %2540 = vmatpush2.msra.mxu0 0.0
        %2541 = vmatprep.subr.mxu0 0.0
        %2542 = vmatpush2.msra.mxu0 0.0
        %2543 = vmatprep.subr.mxu0 0.0
        %2544 = vmatpush2.msra.mxu0 0.0
        %2545 = vmatprep.subr.mxu0 0.0
        %2546 = vmatpush2.msra.mxu0 0.0
        %2547 = vmatprep.subr.mxu0 0.0
        %2548 = vmatpush2.msra.mxu0 0.0
        %2549 = vmatprep.subr.mxu0 0.0
        %2550 = vmatpush2.msra.mxu0 0.0
        %2551 = vmatprep.subr.mxu0 0.0
        %2552 = vmatpush2.msra.mxu0 0.0
        %2553 = vmatprep.subr.mxu0 0.0
        %2554 = vmatpush2.msra.mxu0 0.0
        %2555 = vmatprep.subr.mxu0 0.0
        %2556 = vmatpush2.msra.mxu0 0.0
        %2557 = vmatprep.subr.mxu0 0.0
        %2558 = vmatpush2.msra.mxu0 0.0
        %2559 = vmatprep.subr.mxu0 0.0
        %2560 = vmatpush2.msra.mxu0 0.0
        %2561 = vmatprep.subr.mxu0 0.0
        %2562 = vmatpush2.msra.mxu0 0.0
        %2563 = vmatprep.subr.mxu0 0.0
        %2564 = vmatpush2.msra.mxu0 0.0
        %2565 = vmatprep.subr.mxu0 0.0
        %2566 = vmatpush2.msra.mxu0 0.0
        %2567 = vmatprep.subr.mxu0 0.0
        %2568 = vmatpush2.msra.mxu0 0.0
        %2569 = vmatprep.subr.mxu0 0.0
        %2570 = vmatpush2.msra.mxu0 0.0
        %2571 = vmatprep.mubr.f32.mxu0 0.0
        %2572 = vmatmul.mubr.f32.gmra.mxu0 %v2505
        %v2573 = vpop.f32.mrf.mxu0
        %v2574 = vadd.f32 0.0, %v2573
        %v2575 = vpop.f32.mrf.mxu0
        %2576 = vdwg.mxu0
        %v2578 = vsel %vm878, %v1687, 0
        %v2581 = vsel %vm910, %v2498, 0
        %2583 = vmatprep.subr.mxu0 0.0
        %2584 = vmatpush1.msra.mxu0 0.0
        %2585 = vmatprep.subr.mxu0 0.0
        %2586 = vmatpush1.msra.mxu0 0.0
        %2587 = vmatprep.subr.mxu0 0.0
        %2588 = vmatpush1.msra.mxu0 0.0
        %2589 = vmatprep.subr.mxu0 0.0
        %2590 = vmatpush1.msra.mxu0 0.0
        %2591 = vmatprep.subr.mxu0 0.0
        %2592 = vmatpush1.msra.mxu0 0.0
        %2593 = vmatprep.subr.mxu0 0.0
        %2594 = vmatpush1.msra.mxu0 0.0
        %2595 = vmatprep.subr.mxu0 0.0
        %2596 = vmatpush1.msra.mxu0 0.0
        %2597 = vmatprep.subr.mxu0 0.0
        %2598 = vmatpush1.msra.mxu0 0.0
        %2599 = vmatprep.subr.mxu0 0.0
        %2600 = vmatpush1.msra.mxu0 0.0
        %2601 = vmatprep.subr.mxu0 0.0
        %2602 = vmatpush1.msra.mxu0 0.0
        %2603 = vmatprep.subr.mxu0 0.0
        %2604 = vmatpush1.msra.mxu0 0.0
        %2605 = vmatprep.subr.mxu0 0.0
        %2606 = vmatpush1.msra.mxu0 0.0
        %2607 = vmatprep.subr.mxu0 0.0
        %2608 = vmatpush1.msra.mxu0 0.0
        %2609 = vmatprep.subr.mxu0 0.0
        %2610 = vmatpush1.msra.mxu0 0.0
        %2611 = vmatprep.subr.mxu0 0.0
        %2612 = vmatpush1.msra.mxu0 %v2581
        %2613 = vmatprep.subr.mxu0 0.0
        %2614 = vmatpush1.msra.mxu0 %v2497
        %2615 = vmatprep.subr.mxu0 0.0
        %2616 = vmatpush2.msra.mxu0 0.0
        %2617 = vmatprep.subr.mxu0 0.0
        %2618 = vmatpush2.msra.mxu0 0.0
        %2619 = vmatprep.subr.mxu0 0.0
        %2620 = vmatpush2.msra.mxu0 0.0
        %2621 = vmatprep.subr.mxu0 0.0
        %2622 = vmatpush2.msra.mxu0 0.0
        %2623 = vmatprep.subr.mxu0 0.0
        %2624 = vmatpush2.msra.mxu0 0.0
        %2625 = vmatprep.subr.mxu0 0.0
        %2626 = vmatpush2.msra.mxu0 0.0
        %2627 = vmatprep.subr.mxu0 0.0
        %2628 = vmatpush2.msra.mxu0 0.0
        %2629 = vmatprep.subr.mxu0 0.0
        %2630 = vmatpush2.msra.mxu0 0.0
        %2631 = vmatprep.subr.mxu0 0.0
        %2632 = vmatpush2.msra.mxu0 0.0
        %2633 = vmatprep.subr.mxu0 0.0
        %2634 = vmatpush2.msra.mxu0 0.0
        %2635 = vmatprep.subr.mxu0 0.0
        %2636 = vmatpush2.msra.mxu0 0.0
        %2637 = vmatprep.subr.mxu0 0.0
        %2638 = vmatpush2.msra.mxu0 0.0
        %2639 = vmatprep.subr.mxu0 0.0
        %2640 = vmatpush2.msra.mxu0 0.0
        %2641 = vmatprep.subr.mxu0 0.0
        %2642 = vmatpush2.msra.mxu0 0.0
        %2643 = vmatprep.subr.mxu0 0.0
        %2644 = vmatpush2.msra.mxu0 0.0
        %2645 = vmatprep.subr.mxu0 0.0
        %2646 = vmatpush2.msra.mxu0 0.0
        %2647 = vmatprep.mubr.f32.mxu0 0.0
        %2648 = vmatmul.mubr.f32.gmra.mxu0 %v2578
        %v2649 = vpop.f32.mrf.mxu0
        %v2650 = vadd.f32 %v2574, %v2649
        %v2651 = vpop.f32.mrf.mxu0
        %2652 = vdwg.mxu0
        %v2653 = vadd.f32 %v2022, %v2179
        %v2654 = vadd.f32 %v2336, %v2493
        %v2655 = vadd.f32 %v2653, %v2654
        %v2656 = vadd.f32 %v2655, %v2650
        %v2657 = vld [vmem:[%s19] sm:$0x1]
        %v2659 = vlaneseq
        %v2660 = vshrl.u32 %v2659, 7
        %v2661 = vsub.s32 0, %v2660
        %v2662 = vrot.slane %v2657, %v2661
        %v2664 = vadd.f32 %v2656, %v2662
        %v2665 = vld [vmem:[%s17] sm:$0xff]
        %v2666 = vld [vmem:[%s17 + $0x8] sm:$0xff]
        %v2667 = vld [vmem:[%s17 + $0x10] sm:$0xff]
        %v2668 = vld [vmem:[%s17 + $0x18] sm:$0xff]
        %s2669 = scalar_lea.vmem %s17, 32
        %v2670 = vld [vmem:[%s2669] sm:$0xff]
        %v2671 = vld [vmem:[%s2669 + $0x8] sm:$0xff]
        %v2672 = vld [vmem:[%s2669 + $0x10] sm:$0xff]
        %v2673 = vld [vmem:[%s2669 + $0x18] sm:$0xff]
        %v2675 = vsel %vm800, %v1852, 0
        %2677 = vmatprep.subr.mxu0 0.0
        %2678 = vmatpush1.msra.mxu0 0.0
        %2679 = vmatprep.subr.mxu0 0.0
        %2680 = vmatpush1.msra.mxu0 0.0
        %2681 = vmatprep.subr.mxu0 0.0
        %2682 = vmatpush1.msra.mxu0 0.0
        %2683 = vmatprep.subr.mxu0 0.0
        %2684 = vmatpush1.msra.mxu0 0.0
        %2685 = vmatprep.subr.mxu0 0.0
        %2686 = vmatpush1.msra.mxu0 0.0
        %2687 = vmatprep.subr.mxu0 0.0
        %2688 = vmatpush1.msra.mxu0 0.0
        %2689 = vmatprep.subr.mxu0 0.0
        %2690 = vmatpush1.msra.mxu0 0.0
        %2691 = vmatprep.subr.mxu0 0.0
        %2692 = vmatpush1.msra.mxu0 0.0
        %2693 = vmatprep.subr.mxu0 0.0
        %2694 = vmatpush1.msra.mxu0 0.0
        %2695 = vmatprep.subr.mxu0 0.0
        %2696 = vmatpush1.msra.mxu0 0.0
        %2697 = vmatprep.subr.mxu0 0.0
        %2698 = vmatpush1.msra.mxu0 0.0
        %2699 = vmatprep.subr.mxu0 0.0
        %2700 = vmatpush1.msra.mxu0 0.0
        %2701 = vmatprep.subr.mxu0 0.0
        %2702 = vmatpush1.msra.mxu0 %v2673
        %2703 = vmatprep.subr.mxu0 0.0
        %2704 = vmatpush1.msra.mxu0 %v2672
        %2705 = vmatprep.subr.mxu0 0.0
        %2706 = vmatpush1.msra.mxu0 %v2671
        %2707 = vmatprep.subr.mxu0 0.0
        %2708 = vmatpush1.msra.mxu0 %v2670
        %2709 = vmatprep.subr.mxu0 0.0
        %2710 = vmatpush2.msra.mxu0 0.0
        %2711 = vmatprep.subr.mxu0 0.0
        %2712 = vmatpush2.msra.mxu0 0.0
        %2713 = vmatprep.subr.mxu0 0.0
        %2714 = vmatpush2.msra.mxu0 0.0
        %2715 = vmatprep.subr.mxu0 0.0
        %2716 = vmatpush2.msra.mxu0 0.0
        %2717 = vmatprep.subr.mxu0 0.0
        %2718 = vmatpush2.msra.mxu0 0.0
        %2719 = vmatprep.subr.mxu0 0.0
        %2720 = vmatpush2.msra.mxu0 0.0
        %2721 = vmatprep.subr.mxu0 0.0
        %2722 = vmatpush2.msra.mxu0 0.0
        %2723 = vmatprep.subr.mxu0 0.0
        %2724 = vmatpush2.msra.mxu0 0.0
        %2725 = vmatprep.subr.mxu0 0.0
        %2726 = vmatpush2.msra.mxu0 0.0
        %2727 = vmatprep.subr.mxu0 0.0
        %2728 = vmatpush2.msra.mxu0 0.0
        %2729 = vmatprep.subr.mxu0 0.0
        %2730 = vmatpush2.msra.mxu0 0.0
        %2731 = vmatprep.subr.mxu0 0.0
        %2732 = vmatpush2.msra.mxu0 0.0
        %2733 = vmatprep.subr.mxu0 0.0
        %2734 = vmatpush2.msra.mxu0 0.0
        %2735 = vmatprep.subr.mxu0 0.0
        %2736 = vmatpush2.msra.mxu0 0.0
        %2737 = vmatprep.subr.mxu0 0.0
        %2738 = vmatpush2.msra.mxu0 0.0
        %2739 = vmatprep.subr.mxu0 0.0
        %2740 = vmatpush2.msra.mxu0 0.0
        %2741 = vmatprep.mubr.f32.mxu0 0.0
        %2742 = vmatmul.mubr.f32.gmra.mxu0 %v2675
        %v2743 = vpop.f32.mrf.mxu0
        %v2744 = vadd.f32 0.0, %v2743
        %v2745 = vpop.f32.mrf.mxu0
        %2746 = vdwg.mxu0
        %s2747 = scalar_lea.vmem %s17, 64
        %v2748 = vld [vmem:[%s2747] sm:$0xff]
        %v2749 = vld [vmem:[%s2747 + $0x8] sm:$0xff]
        %v2750 = vld [vmem:[%s2747 + $0x10] sm:$0xff]
        %v2751 = vld [vmem:[%s2747 + $0x18] sm:$0xff]
        %s2752 = scalar_lea.vmem %s17, 96
        %v2753 = vld [vmem:[%s2752] sm:$0xff]
        %v2754 = vld [vmem:[%s2752 + $0x8] sm:$0xff]
        %v2755 = vld [vmem:[%s2752 + $0x10] sm:$0xff]
        %v2756 = vld [vmem:[%s2752 + $0x18] sm:$0xff]
        %v2758 = vsel %vm800, %v1862, 0
        %2760 = vmatprep.subr.mxu0 0.0
        %2761 = vmatpush1.msra.mxu0 0.0
        %2762 = vmatprep.subr.mxu0 0.0
        %2763 = vmatpush1.msra.mxu0 0.0
        %2764 = vmatprep.subr.mxu0 0.0
        %2765 = vmatpush1.msra.mxu0 0.0
        %2766 = vmatprep.subr.mxu0 0.0
        %2767 = vmatpush1.msra.mxu0 0.0
        %2768 = vmatprep.subr.mxu0 0.0
        %2769 = vmatpush1.msra.mxu0 0.0
        %2770 = vmatprep.subr.mxu0 0.0
        %2771 = vmatpush1.msra.mxu0 0.0
        %2772 = vmatprep.subr.mxu0 0.0
        %2773 = vmatpush1.msra.mxu0 0.0
        %2774 = vmatprep.subr.mxu0 0.0
        %2775 = vmatpush1.msra.mxu0 0.0
        %2776 = vmatprep.subr.mxu0 0.0
        %2777 = vmatpush1.msra.mxu0 0.0
        %2778 = vmatprep.subr.mxu0 0.0
        %2779 = vmatpush1.msra.mxu0 0.0
        %2780 = vmatprep.subr.mxu0 0.0
        %2781 = vmatpush1.msra.mxu0 0.0
        %2782 = vmatprep.subr.mxu0 0.0
        %2783 = vmatpush1.msra.mxu0 0.0
        %2784 = vmatprep.subr.mxu0 0.0
        %2785 = vmatpush1.msra.mxu0 %v2756
        %2786 = vmatprep.subr.mxu0 0.0
        %2787 = vmatpush1.msra.mxu0 %v2755
        %2788 = vmatprep.subr.mxu0 0.0
        %2789 = vmatpush1.msra.mxu0 %v2754
        %2790 = vmatprep.subr.mxu0 0.0
        %2791 = vmatpush1.msra.mxu0 %v2753
        %2792 = vmatprep.subr.mxu0 0.0
        %2793 = vmatpush2.msra.mxu0 0.0
        %2794 = vmatprep.subr.mxu0 0.0
        %2795 = vmatpush2.msra.mxu0 0.0
        %2796 = vmatprep.subr.mxu0 0.0
        %2797 = vmatpush2.msra.mxu0 0.0
        %2798 = vmatprep.subr.mxu0 0.0
        %2799 = vmatpush2.msra.mxu0 0.0
        %2800 = vmatprep.subr.mxu0 0.0
        %2801 = vmatpush2.msra.mxu0 0.0
        %2802 = vmatprep.subr.mxu0 0.0
        %2803 = vmatpush2.msra.mxu0 0.0
        %2804 = vmatprep.subr.mxu0 0.0
        %2805 = vmatpush2.msra.mxu0 0.0
        %2806 = vmatprep.subr.mxu0 0.0
        %2807 = vmatpush2.msra.mxu0 0.0
        %2808 = vmatprep.subr.mxu0 0.0
        %2809 = vmatpush2.msra.mxu0 0.0
        %2810 = vmatprep.subr.mxu0 0.0
        %2811 = vmatpush2.msra.mxu0 0.0
        %2812 = vmatprep.subr.mxu0 0.0
        %2813 = vmatpush2.msra.mxu0 0.0
        %2814 = vmatprep.subr.mxu0 0.0
        %2815 = vmatpush2.msra.mxu0 0.0
        %2816 = vmatprep.subr.mxu0 0.0
        %2817 = vmatpush2.msra.mxu0 0.0
        %2818 = vmatprep.subr.mxu0 0.0
        %2819 = vmatpush2.msra.mxu0 0.0
        %2820 = vmatprep.subr.mxu0 0.0
        %2821 = vmatpush2.msra.mxu0 0.0
        %2822 = vmatprep.subr.mxu0 0.0
        %2823 = vmatpush2.msra.mxu0 0.0
        %2824 = vmatprep.mubr.f32.mxu0 0.0
        %2825 = vmatmul.mubr.f32.gmra.mxu0 %v2758
        %v2826 = vpop.f32.mrf.mxu0
        %v2827 = vadd.f32 0.0, %v2826
        %v2828 = vpop.f32.mrf.mxu0
        %2829 = vdwg.mxu0
        %s2830 = scalar_lea.vmem %s17, 128
        %v2831 = vld [vmem:[%s2830] sm:$0xff]
        %v2832 = vld [vmem:[%s2830 + $0x8] sm:$0xff]
        %v2833 = vld [vmem:[%s2830 + $0x10] sm:$0xff]
        %v2834 = vld [vmem:[%s2830 + $0x18] sm:$0xff]
        %v2836 = vsel %vm800, %v1867, 0
        %2838 = vmatprep.subr.mxu0 0.0
        %2839 = vmatpush1.msra.mxu0 0.0
        %2840 = vmatprep.subr.mxu0 0.0
        %2841 = vmatpush1.msra.mxu0 0.0
        %2842 = vmatprep.subr.mxu0 0.0
        %2843 = vmatpush1.msra.mxu0 0.0
        %2844 = vmatprep.subr.mxu0 0.0
        %2845 = vmatpush1.msra.mxu0 0.0
        %2846 = vmatprep.subr.mxu0 0.0
        %2847 = vmatpush1.msra.mxu0 0.0
        %2848 = vmatprep.subr.mxu0 0.0
        %2849 = vmatpush1.msra.mxu0 0.0
        %2850 = vmatprep.subr.mxu0 0.0
        %2851 = vmatpush1.msra.mxu0 0.0
        %2852 = vmatprep.subr.mxu0 0.0
        %2853 = vmatpush1.msra.mxu0 0.0
        %2854 = vmatprep.subr.mxu0 0.0
        %2855 = vmatpush1.msra.mxu0 0.0
        %2856 = vmatprep.subr.mxu0 0.0
        %2857 = vmatpush1.msra.mxu0 0.0
        %2858 = vmatprep.subr.mxu0 0.0
        %2859 = vmatpush1.msra.mxu0 0.0
        %2860 = vmatprep.subr.mxu0 0.0
        %2861 = vmatpush1.msra.mxu0 0.0
        %2862 = vmatprep.subr.mxu0 0.0
        %2863 = vmatpush1.msra.mxu0 %v2834
        %2864 = vmatprep.subr.mxu0 0.0
        %2865 = vmatpush1.msra.mxu0 %v2833
        %2866 = vmatprep.subr.mxu0 0.0
        %2867 = vmatpush1.msra.mxu0 %v2832
        %2868 = vmatprep.subr.mxu0 0.0
        %2869 = vmatpush1.msra.mxu0 %v2831
        %2870 = vmatprep.subr.mxu0 0.0
        %2871 = vmatpush2.msra.mxu0 0.0
        %2872 = vmatprep.subr.mxu0 0.0
        %2873 = vmatpush2.msra.mxu0 0.0
        %2874 = vmatprep.subr.mxu0 0.0
        %2875 = vmatpush2.msra.mxu0 0.0
        %2876 = vmatprep.subr.mxu0 0.0
        %2877 = vmatpush2.msra.mxu0 0.0
        %2878 = vmatprep.subr.mxu0 0.0
        %2879 = vmatpush2.msra.mxu0 0.0
        %2880 = vmatprep.subr.mxu0 0.0
        %2881 = vmatpush2.msra.mxu0 0.0
        %2882 = vmatprep.subr.mxu0 0.0
        %2883 = vmatpush2.msra.mxu0 0.0
        %2884 = vmatprep.subr.mxu0 0.0
        %2885 = vmatpush2.msra.mxu0 0.0
        %2886 = vmatprep.subr.mxu0 0.0
        %2887 = vmatpush2.msra.mxu0 0.0
        %2888 = vmatprep.subr.mxu0 0.0
        %2889 = vmatpush2.msra.mxu0 0.0
        %2890 = vmatprep.subr.mxu0 0.0
        %2891 = vmatpush2.msra.mxu0 0.0
        %2892 = vmatprep.subr.mxu0 0.0
        %2893 = vmatpush2.msra.mxu0 0.0
        %2894 = vmatprep.subr.mxu0 0.0
        %2895 = vmatpush2.msra.mxu0 0.0
        %2896 = vmatprep.subr.mxu0 0.0
        %2897 = vmatpush2.msra.mxu0 0.0
        %2898 = vmatprep.subr.mxu0 0.0
        %2899 = vmatpush2.msra.mxu0 0.0
        %2900 = vmatprep.subr.mxu0 0.0
        %2901 = vmatpush2.msra.mxu0 0.0
        %2902 = vmatprep.mubr.f32.mxu0 0.0
        %2903 = vmatmul.mubr.f32.gmra.mxu0 %v2836
        %v2904 = vpop.f32.mrf.mxu0
        %v2905 = vadd.f32 0.0, %v2904
        %v2906 = vpop.f32.mrf.mxu0
        %2907 = vdwg.mxu0
        %v2909 = vsel %vm800, %v1847, 0
        %2911 = vmatprep.subr.mxu0 0.0
        %2912 = vmatpush1.msra.mxu0 0.0
        %2913 = vmatprep.subr.mxu0 0.0
        %2914 = vmatpush1.msra.mxu0 0.0
        %2915 = vmatprep.subr.mxu0 0.0
        %2916 = vmatpush1.msra.mxu0 0.0
        %2917 = vmatprep.subr.mxu0 0.0
        %2918 = vmatpush1.msra.mxu0 0.0
        %2919 = vmatprep.subr.mxu0 0.0
        %2920 = vmatpush1.msra.mxu0 0.0
        %2921 = vmatprep.subr.mxu0 0.0
        %2922 = vmatpush1.msra.mxu0 0.0
        %2923 = vmatprep.subr.mxu0 0.0
        %2924 = vmatpush1.msra.mxu0 0.0
        %2925 = vmatprep.subr.mxu0 0.0
        %2926 = vmatpush1.msra.mxu0 0.0
        %2927 = vmatprep.subr.mxu0 0.0
        %2928 = vmatpush1.msra.mxu0 0.0
        %2929 = vmatprep.subr.mxu0 0.0
        %2930 = vmatpush1.msra.mxu0 0.0
        %2931 = vmatprep.subr.mxu0 0.0
        %2932 = vmatpush1.msra.mxu0 0.0
        %2933 = vmatprep.subr.mxu0 0.0
        %2934 = vmatpush1.msra.mxu0 0.0
        %2935 = vmatprep.subr.mxu0 0.0
        %2936 = vmatpush1.msra.mxu0 %v2668
        %2937 = vmatprep.subr.mxu0 0.0
        %2938 = vmatpush1.msra.mxu0 %v2667
        %2939 = vmatprep.subr.mxu0 0.0
        %2940 = vmatpush1.msra.mxu0 %v2666
        %2941 = vmatprep.subr.mxu0 0.0
        %2942 = vmatpush1.msra.mxu0 %v2665
        %2943 = vmatprep.subr.mxu0 0.0
        %2944 = vmatpush2.msra.mxu0 0.0
        %2945 = vmatprep.subr.mxu0 0.0
        %2946 = vmatpush2.msra.mxu0 0.0
        %2947 = vmatprep.subr.mxu0 0.0
        %2948 = vmatpush2.msra.mxu0 0.0
        %2949 = vmatprep.subr.mxu0 0.0
        %2950 = vmatpush2.msra.mxu0 0.0
        %2951 = vmatprep.subr.mxu0 0.0
        %2952 = vmatpush2.msra.mxu0 0.0
        %2953 = vmatprep.subr.mxu0 0.0
        %2954 = vmatpush2.msra.mxu0 0.0
        %2955 = vmatprep.subr.mxu0 0.0
        %2956 = vmatpush2.msra.mxu0 0.0
        %2957 = vmatprep.subr.mxu0 0.0
        %2958 = vmatpush2.msra.mxu0 0.0
        %2959 = vmatprep.subr.mxu0 0.0
        %2960 = vmatpush2.msra.mxu0 0.0
        %2961 = vmatprep.subr.mxu0 0.0
        %2962 = vmatpush2.msra.mxu0 0.0
        %2963 = vmatprep.subr.mxu0 0.0
        %2964 = vmatpush2.msra.mxu0 0.0
        %2965 = vmatprep.subr.mxu0 0.0
        %2966 = vmatpush2.msra.mxu0 0.0
        %2967 = vmatprep.subr.mxu0 0.0
        %2968 = vmatpush2.msra.mxu0 0.0
        %2969 = vmatprep.subr.mxu0 0.0
        %2970 = vmatpush2.msra.mxu0 0.0
        %2971 = vmatprep.subr.mxu0 0.0
        %2972 = vmatpush2.msra.mxu0 0.0
        %2973 = vmatprep.subr.mxu0 0.0
        %2974 = vmatpush2.msra.mxu0 0.0
        %2975 = vmatprep.mubr.f32.mxu0 0.0
        %2976 = vmatmul.mubr.f32.gmra.mxu0 %v2909
        %v2977 = vpop.f32.mrf.mxu0
        %v2978 = vadd.f32 %v2744, %v2977
        %v2979 = vpop.f32.mrf.mxu0
        %2980 = vdwg.mxu0
        %v2982 = vsel %vm800, %v1857, 0
        %2984 = vmatprep.subr.mxu0 0.0
        %2985 = vmatpush1.msra.mxu0 0.0
        %2986 = vmatprep.subr.mxu0 0.0
        %2987 = vmatpush1.msra.mxu0 0.0
        %2988 = vmatprep.subr.mxu0 0.0
        %2989 = vmatpush1.msra.mxu0 0.0
        %2990 = vmatprep.subr.mxu0 0.0
        %2991 = vmatpush1.msra.mxu0 0.0
        %2992 = vmatprep.subr.mxu0 0.0
        %2993 = vmatpush1.msra.mxu0 0.0
        %2994 = vmatprep.subr.mxu0 0.0
        %2995 = vmatpush1.msra.mxu0 0.0
        %2996 = vmatprep.subr.mxu0 0.0
        %2997 = vmatpush1.msra.mxu0 0.0
        %2998 = vmatprep.subr.mxu0 0.0
        %2999 = vmatpush1.msra.mxu0 0.0
        %3000 = vmatprep.subr.mxu0 0.0
        %3001 = vmatpush1.msra.mxu0 0.0
        %3002 = vmatprep.subr.mxu0 0.0
        %3003 = vmatpush1.msra.mxu0 0.0
        %3004 = vmatprep.subr.mxu0 0.0
        %3005 = vmatpush1.msra.mxu0 0.0
        %3006 = vmatprep.subr.mxu0 0.0
        %3007 = vmatpush1.msra.mxu0 0.0
        %3008 = vmatprep.subr.mxu0 0.0
        %3009 = vmatpush1.msra.mxu0 %v2751
        %3010 = vmatprep.subr.mxu0 0.0
        %3011 = vmatpush1.msra.mxu0 %v2750
        %3012 = vmatprep.subr.mxu0 0.0
        %3013 = vmatpush1.msra.mxu0 %v2749
        %3014 = vmatprep.subr.mxu0 0.0
        %3015 = vmatpush1.msra.mxu0 %v2748
        %3016 = vmatprep.subr.mxu0 0.0
        %3017 = vmatpush2.msra.mxu0 0.0
        %3018 = vmatprep.subr.mxu0 0.0
        %3019 = vmatpush2.msra.mxu0 0.0
        %3020 = vmatprep.subr.mxu0 0.0
        %3021 = vmatpush2.msra.mxu0 0.0
        %3022 = vmatprep.subr.mxu0 0.0
        %3023 = vmatpush2.msra.mxu0 0.0
        %3024 = vmatprep.subr.mxu0 0.0
        %3025 = vmatpush2.msra.mxu0 0.0
        %3026 = vmatprep.subr.mxu0 0.0
        %3027 = vmatpush2.msra.mxu0 0.0
        %3028 = vmatprep.subr.mxu0 0.0
        %3029 = vmatpush2.msra.mxu0 0.0
        %3030 = vmatprep.subr.mxu0 0.0
        %3031 = vmatpush2.msra.mxu0 0.0
        %3032 = vmatprep.subr.mxu0 0.0
        %3033 = vmatpush2.msra.mxu0 0.0
        %3034 = vmatprep.subr.mxu0 0.0
        %3035 = vmatpush2.msra.mxu0 0.0
        %3036 = vmatprep.subr.mxu0 0.0
        %3037 = vmatpush2.msra.mxu0 0.0
        %3038 = vmatprep.subr.mxu0 0.0
        %3039 = vmatpush2.msra.mxu0 0.0
        %3040 = vmatprep.subr.mxu0 0.0
        %3041 = vmatpush2.msra.mxu0 0.0
        %3042 = vmatprep.subr.mxu0 0.0
        %3043 = vmatpush2.msra.mxu0 0.0
        %3044 = vmatprep.subr.mxu0 0.0
        %3045 = vmatpush2.msra.mxu0 0.0
        %3046 = vmatprep.subr.mxu0 0.0
        %3047 = vmatpush2.msra.mxu0 0.0
        %3048 = vmatprep.mubr.f32.mxu0 0.0
        %3049 = vmatmul.mubr.f32.gmra.mxu0 %v2982
        %v3050 = vpop.f32.mrf.mxu0
        %v3051 = vadd.f32 %v2827, %v3050
        %v3052 = vpop.f32.mrf.mxu0
        %3053 = vdwg.mxu0
        %v3054 = vadd.f32 %v2978, %v3051
        %v3055 = vadd.f32 %v3054, %v2905
        %v3056 = vadd.f32 %v2664, %v3055
        %v3057 = vxor.u32 %v3056, 2147483648
        %v3058 = vmul.f32 %v3057, 1.442695
        %v3059 = vpow.pop %v3058
        %v3060 = vadd.f32 %v3059, 1.0
        %v3061 = vrcp.pop %v3060
        %v3062 = vmul.f32 1.0, %v3061
        %v3063 = vmul.f32 %v3062, %v781
        %3064 = vmatprep.subr.mxu0 0.0
        %3065 = vmatpush1.msra.mxu0 0.0
        %3066 = vmatprep.subr.mxu0 0.0
        %3067 = vmatpush1.msra.mxu0 0.0
        %3068 = vmatprep.subr.mxu0 0.0
        %3069 = vmatpush1.msra.mxu0 0.0
        %3070 = vmatprep.subr.mxu0 0.0
        %3071 = vmatpush1.msra.mxu0 0.0
        %3072 = vmatprep.subr.mxu0 0.0
        %3073 = vmatpush1.msra.mxu0 0.0
        %3074 = vmatprep.subr.mxu0 0.0
        %3075 = vmatpush1.msra.mxu0 0.0
        %3076 = vmatprep.subr.mxu0 0.0
        %3077 = vmatpush1.msra.mxu0 0.0
        %3078 = vmatprep.subr.mxu0 0.0
        %3079 = vmatpush1.msra.mxu0 0.0
        %3080 = vmatprep.subr.mxu0 0.0
        %3081 = vmatpush1.msra.mxu0 0.0
        %3082 = vmatprep.subr.mxu0 0.0
        %3083 = vmatpush1.msra.mxu0 0.0
        %3084 = vmatprep.subr.mxu0 0.0
        %3085 = vmatpush1.msra.mxu0 0.0
        %3086 = vmatprep.subr.mxu0 0.0
        %3087 = vmatpush1.msra.mxu0 0.0
        %3088 = vmatprep.subr.mxu0 0.0
        %3089 = vmatpush1.msra.mxu0 0.0
        %3090 = vmatprep.subr.mxu0 0.0
        %3091 = vmatpush1.msra.mxu0 0.0
        %3092 = vmatprep.subr.mxu0 0.0
        %3093 = vmatpush1.msra.mxu0 0.0
        %3094 = vmatprep.subr.mxu0 0.0
        %3095 = vmatpush1.msra.mxu0 %v3063
        %3096 = vmatprep.subr.mxu0 0.0
        %3097 = vmatpush2.msra.mxu0 0.0
        %3098 = vmatprep.subr.mxu0 0.0
        %3099 = vmatpush2.msra.mxu0 0.0
        %3100 = vmatprep.subr.mxu0 0.0
        %3101 = vmatpush2.msra.mxu0 0.0
        %3102 = vmatprep.subr.mxu0 0.0
        %3103 = vmatpush2.msra.mxu0 0.0
        %3104 = vmatprep.subr.mxu0 0.0
        %3105 = vmatpush2.msra.mxu0 0.0
        %3106 = vmatprep.subr.mxu0 0.0
        %3107 = vmatpush2.msra.mxu0 0.0
        %3108 = vmatprep.subr.mxu0 0.0
        %3109 = vmatpush2.msra.mxu0 0.0
        %3110 = vmatprep.subr.mxu0 0.0
        %3111 = vmatpush2.msra.mxu0 0.0
        %3112 = vmatprep.subr.mxu0 0.0
        %3113 = vmatpush2.msra.mxu0 0.0
        %3114 = vmatprep.subr.mxu0 0.0
        %3115 = vmatpush2.msra.mxu0 0.0
        %3116 = vmatprep.subr.mxu0 0.0
        %3117 = vmatpush2.msra.mxu0 0.0
        %3118 = vmatprep.subr.mxu0 0.0
        %3119 = vmatpush2.msra.mxu0 0.0
        %3120 = vmatprep.subr.mxu0 0.0
        %3121 = vmatpush2.msra.mxu0 0.0
        %3122 = vmatprep.subr.mxu0 0.0
        %3123 = vmatpush2.msra.mxu0 0.0
        %3124 = vmatprep.subr.mxu0 0.0
        %3125 = vmatpush2.msra.mxu0 0.0
        %3126 = vmatprep.subr.mxu0 0.0
        %3127 = vmatpush2.msra.mxu0 0.0
        %3128 = vmatprep.mubr.f32.mxu0 0.0
        %3129 = vmatmul.mubr.f32.gmra.mxu0 %v1586
        %v3130 = vpop.f32.mrf.mxu0
        %v3131 = vadd.f32 0.0, %v3130
        %v3132 = vpop.f32.mrf.mxu0
        %3133 = vmatprep.mubr.f32.mxu0 0.0
        %3134 = vmatmul.mubr.f32.gmra.mxu0 %v1589
        %v3135 = vpop.f32.mrf.mxu0
        %v3136 = vadd.f32 0.0, %v3135
        %v3137 = vpop.f32.mrf.mxu0
        %3138 = vmatprep.mubr.f32.mxu0 0.0
        %3139 = vmatmul.mubr.f32.gmra.mxu0 %v1592
        %v3140 = vpop.f32.mrf.mxu0
        %v3141 = vadd.f32 0.0, %v3140
        %v3142 = vpop.f32.mrf.mxu0
        %3143 = vmatprep.mubr.f32.mxu0 0.0
        %3144 = vmatmul.mubr.f32.gmra.mxu0 %v1595
        %v3145 = vpop.f32.mrf.mxu0
        %v3146 = vadd.f32 0.0, %v3145
        %v3147 = vpop.f32.mrf.mxu0
        %3148 = vmatprep.mubr.f32.mxu0 0.0
        %3149 = vmatmul.mubr.f32.gmra.mxu0 %v1598
        %v3150 = vpop.f32.mrf.mxu0
        %v3151 = vadd.f32 0.0, %v3150
        %v3152 = vpop.f32.mrf.mxu0
        %3153 = vdwg.mxu0
        %v3154 = vld [vmem:[#allocation17] sm:$0xff]
        %v3155 = vld [vmem:[#allocation17 + $0x8] sm:$0xff]
        %v3156 = vld [vmem:[#allocation17 + $0x10] sm:$0xff]
        %v3157 = vld [vmem:[#allocation17 + $0x18] sm:$0xff]
        %s3158 = scalar_lea.vmem [#allocation17], 32
        %v3159 = vld [vmem:[%s3158] sm:$0xff]
        %v3160 = vld [vmem:[%s3158 + $0x8] sm:$0xff]
        %v3161 = vld [vmem:[%s3158 + $0x10] sm:$0xff]
        %v3162 = vld [vmem:[%s3158 + $0x18] sm:$0xff]
        %v3164 = vsel %vm800, %v3136, 0
        %3166 = vmatprep.subr.mxu0 0.0
        %3167 = vmatpush1.msra.mxu0 0.0
        %3168 = vmatprep.subr.mxu0 0.0
        %3169 = vmatpush1.msra.mxu0 0.0
        %3170 = vmatprep.subr.mxu0 0.0
        %3171 = vmatpush1.msra.mxu0 0.0
        %3172 = vmatprep.subr.mxu0 0.0
        %3173 = vmatpush1.msra.mxu0 0.0
        %3174 = vmatprep.subr.mxu0 0.0
        %3175 = vmatpush1.msra.mxu0 0.0
        %3176 = vmatprep.subr.mxu0 0.0
        %3177 = vmatpush1.msra.mxu0 0.0
        %3178 = vmatprep.subr.mxu0 0.0
        %3179 = vmatpush1.msra.mxu0 0.0
        %3180 = vmatprep.subr.mxu0 0.0
        %3181 = vmatpush1.msra.mxu0 0.0
        %3182 = vmatprep.subr.mxu0 0.0
        %3183 = vmatpush1.msra.mxu0 0.0
        %3184 = vmatprep.subr.mxu0 0.0
        %3185 = vmatpush1.msra.mxu0 0.0
        %3186 = vmatprep.subr.mxu0 0.0
        %3187 = vmatpush1.msra.mxu0 0.0
        %3188 = vmatprep.subr.mxu0 0.0
        %3189 = vmatpush1.msra.mxu0 0.0
        %3190 = vmatprep.subr.mxu0 0.0
        %3191 = vmatpush1.msra.mxu0 %v3162
        %3192 = vmatprep.subr.mxu0 0.0
        %3193 = vmatpush1.msra.mxu0 %v3161
        %3194 = vmatprep.subr.mxu0 0.0
        %3195 = vmatpush1.msra.mxu0 %v3160
        %3196 = vmatprep.subr.mxu0 0.0
        %3197 = vmatpush1.msra.mxu0 %v3159
        %3198 = vmatprep.subr.mxu0 0.0
        %3199 = vmatpush2.msra.mxu0 0.0
        %3200 = vmatprep.subr.mxu0 0.0
        %3201 = vmatpush2.msra.mxu0 0.0
        %3202 = vmatprep.subr.mxu0 0.0
        %3203 = vmatpush2.msra.mxu0 0.0
        %3204 = vmatprep.subr.mxu0 0.0
        %3205 = vmatpush2.msra.mxu0 0.0
        %3206 = vmatprep.subr.mxu0 0.0
        %3207 = vmatpush2.msra.mxu0 0.0
        %3208 = vmatprep.subr.mxu0 0.0
        %3209 = vmatpush2.msra.mxu0 0.0
        %3210 = vmatprep.subr.mxu0 0.0
        %3211 = vmatpush2.msra.mxu0 0.0
        %3212 = vmatprep.subr.mxu0 0.0
        %3213 = vmatpush2.msra.mxu0 0.0
        %3214 = vmatprep.subr.mxu0 0.0
        %3215 = vmatpush2.msra.mxu0 0.0
        %3216 = vmatprep.subr.mxu0 0.0
        %3217 = vmatpush2.msra.mxu0 0.0
        %3218 = vmatprep.subr.mxu0 0.0
        %3219 = vmatpush2.msra.mxu0 0.0
        %3220 = vmatprep.subr.mxu0 0.0
        %3221 = vmatpush2.msra.mxu0 0.0
        %3222 = vmatprep.subr.mxu0 0.0
        %3223 = vmatpush2.msra.mxu0 0.0
        %3224 = vmatprep.subr.mxu0 0.0
        %3225 = vmatpush2.msra.mxu0 0.0
        %3226 = vmatprep.subr.mxu0 0.0
        %3227 = vmatpush2.msra.mxu0 0.0
        %3228 = vmatprep.subr.mxu0 0.0
        %3229 = vmatpush2.msra.mxu0 0.0
        %3230 = vmatprep.mubr.f32.mxu0 0.0
        %3231 = vmatmul.mubr.f32.gmra.mxu0 %v3164
        %v3232 = vpop.f32.mrf.mxu0
        %v3233 = vadd.f32 0.0, %v3232
        %v3234 = vpop.f32.mrf.mxu0
        %3235 = vdwg.mxu0
        %s3236 = scalar_lea.vmem [#allocation17], 64
        %v3237 = vld [vmem:[%s3236] sm:$0xff]
        %v3238 = vld [vmem:[%s3236 + $0x8] sm:$0xff]
        %v3239 = vld [vmem:[%s3236 + $0x10] sm:$0xff]
        %v3240 = vld [vmem:[%s3236 + $0x18] sm:$0xff]
        %s3241 = scalar_lea.vmem [#allocation17], 96
        %v3242 = vld [vmem:[%s3241] sm:$0xff]
        %v3243 = vld [vmem:[%s3241 + $0x8] sm:$0xff]
        %v3244 = vld [vmem:[%s3241 + $0x10] sm:$0xff]
        %v3245 = vld [vmem:[%s3241 + $0x18] sm:$0xff]
        %v3247 = vsel %vm800, %v3146, 0
        %3249 = vmatprep.subr.mxu0 0.0
        %3250 = vmatpush1.msra.mxu0 0.0
        %3251 = vmatprep.subr.mxu0 0.0
        %3252 = vmatpush1.msra.mxu0 0.0
        %3253 = vmatprep.subr.mxu0 0.0
        %3254 = vmatpush1.msra.mxu0 0.0
        %3255 = vmatprep.subr.mxu0 0.0
        %3256 = vmatpush1.msra.mxu0 0.0
        %3257 = vmatprep.subr.mxu0 0.0
        %3258 = vmatpush1.msra.mxu0 0.0
        %3259 = vmatprep.subr.mxu0 0.0
        %3260 = vmatpush1.msra.mxu0 0.0
        %3261 = vmatprep.subr.mxu0 0.0
        %3262 = vmatpush1.msra.mxu0 0.0
        %3263 = vmatprep.subr.mxu0 0.0
        %3264 = vmatpush1.msra.mxu0 0.0
        %3265 = vmatprep.subr.mxu0 0.0
        %3266 = vmatpush1.msra.mxu0 0.0
        %3267 = vmatprep.subr.mxu0 0.0
        %3268 = vmatpush1.msra.mxu0 0.0
        %3269 = vmatprep.subr.mxu0 0.0
        %3270 = vmatpush1.msra.mxu0 0.0
        %3271 = vmatprep.subr.mxu0 0.0
        %3272 = vmatpush1.msra.mxu0 0.0
        %3273 = vmatprep.subr.mxu0 0.0
        %3274 = vmatpush1.msra.mxu0 %v3245
        %3275 = vmatprep.subr.mxu0 0.0
        %3276 = vmatpush1.msra.mxu0 %v3244
        %3277 = vmatprep.subr.mxu0 0.0
        %3278 = vmatpush1.msra.mxu0 %v3243
        %3279 = vmatprep.subr.mxu0 0.0
        %3280 = vmatpush1.msra.mxu0 %v3242
        %3281 = vmatprep.subr.mxu0 0.0
        %3282 = vmatpush2.msra.mxu0 0.0
        %3283 = vmatprep.subr.mxu0 0.0
        %3284 = vmatpush2.msra.mxu0 0.0
        %3285 = vmatprep.subr.mxu0 0.0
        %3286 = vmatpush2.msra.mxu0 0.0
        %3287 = vmatprep.subr.mxu0 0.0
        %3288 = vmatpush2.msra.mxu0 0.0
        %3289 = vmatprep.subr.mxu0 0.0
        %3290 = vmatpush2.msra.mxu0 0.0
        %3291 = vmatprep.subr.mxu0 0.0
        %3292 = vmatpush2.msra.mxu0 0.0
        %3293 = vmatprep.subr.mxu0 0.0
        %3294 = vmatpush2.msra.mxu0 0.0
        %3295 = vmatprep.subr.mxu0 0.0
        %3296 = vmatpush2.msra.mxu0 0.0
        %3297 = vmatprep.subr.mxu0 0.0
        %3298 = vmatpush2.msra.mxu0 0.0
        %3299 = vmatprep.subr.mxu0 0.0
        %3300 = vmatpush2.msra.mxu0 0.0
        %3301 = vmatprep.subr.mxu0 0.0
        %3302 = vmatpush2.msra.mxu0 0.0
        %3303 = vmatprep.subr.mxu0 0.0
        %3304 = vmatpush2.msra.mxu0 0.0
        %3305 = vmatprep.subr.mxu0 0.0
        %3306 = vmatpush2.msra.mxu0 0.0
        %3307 = vmatprep.subr.mxu0 0.0
        %3308 = vmatpush2.msra.mxu0 0.0
        %3309 = vmatprep.subr.mxu0 0.0
        %3310 = vmatpush2.msra.mxu0 0.0
        %3311 = vmatprep.subr.mxu0 0.0
        %3312 = vmatpush2.msra.mxu0 0.0
        %3313 = vmatprep.mubr.f32.mxu0 0.0
        %3314 = vmatmul.mubr.f32.gmra.mxu0 %v3247
        %v3315 = vpop.f32.mrf.mxu0
        %v3316 = vadd.f32 0.0, %v3315
        %v3317 = vpop.f32.mrf.mxu0
        %3318 = vdwg.mxu0
        %s3319 = scalar_lea.vmem [#allocation17], 128
        %v3320 = vld [vmem:[%s3319] sm:$0xff]
        %v3321 = vld [vmem:[%s3319 + $0x8] sm:$0xff]
        %v3322 = vld [vmem:[%s3319 + $0x10] sm:$0xff]
        %v3323 = vld [vmem:[%s3319 + $0x18] sm:$0xff]
        %v3325 = vsel %vm800, %v3151, 0
        %3327 = vmatprep.subr.mxu0 0.0
        %3328 = vmatpush1.msra.mxu0 0.0
        %3329 = vmatprep.subr.mxu0 0.0
        %3330 = vmatpush1.msra.mxu0 0.0
        %3331 = vmatprep.subr.mxu0 0.0
        %3332 = vmatpush1.msra.mxu0 0.0
        %3333 = vmatprep.subr.mxu0 0.0
        %3334 = vmatpush1.msra.mxu0 0.0
        %3335 = vmatprep.subr.mxu0 0.0
        %3336 = vmatpush1.msra.mxu0 0.0
        %3337 = vmatprep.subr.mxu0 0.0
        %3338 = vmatpush1.msra.mxu0 0.0
        %3339 = vmatprep.subr.mxu0 0.0
        %3340 = vmatpush1.msra.mxu0 0.0
        %3341 = vmatprep.subr.mxu0 0.0
        %3342 = vmatpush1.msra.mxu0 0.0
        %3343 = vmatprep.subr.mxu0 0.0
        %3344 = vmatpush1.msra.mxu0 0.0
        %3345 = vmatprep.subr.mxu0 0.0
        %3346 = vmatpush1.msra.mxu0 0.0
        %3347 = vmatprep.subr.mxu0 0.0
        %3348 = vmatpush1.msra.mxu0 0.0
        %3349 = vmatprep.subr.mxu0 0.0
        %3350 = vmatpush1.msra.mxu0 0.0
        %3351 = vmatprep.subr.mxu0 0.0
        %3352 = vmatpush1.msra.mxu0 %v3323
        %3353 = vmatprep.subr.mxu0 0.0
        %3354 = vmatpush1.msra.mxu0 %v3322
        %3355 = vmatprep.subr.mxu0 0.0
        %3356 = vmatpush1.msra.mxu0 %v3321
        %3357 = vmatprep.subr.mxu0 0.0
        %3358 = vmatpush1.msra.mxu0 %v3320
        %3359 = vmatprep.subr.mxu0 0.0
        %3360 = vmatpush2.msra.mxu0 0.0
        %3361 = vmatprep.subr.mxu0 0.0
        %3362 = vmatpush2.msra.mxu0 0.0
        %3363 = vmatprep.subr.mxu0 0.0
        %3364 = vmatpush2.msra.mxu0 0.0
        %3365 = vmatprep.subr.mxu0 0.0
        %3366 = vmatpush2.msra.mxu0 0.0
        %3367 = vmatprep.subr.mxu0 0.0
        %3368 = vmatpush2.msra.mxu0 0.0
        %3369 = vmatprep.subr.mxu0 0.0
        %3370 = vmatpush2.msra.mxu0 0.0
        %3371 = vmatprep.subr.mxu0 0.0
        %3372 = vmatpush2.msra.mxu0 0.0
        %3373 = vmatprep.subr.mxu0 0.0
        %3374 = vmatpush2.msra.mxu0 0.0
        %3375 = vmatprep.subr.mxu0 0.0
        %3376 = vmatpush2.msra.mxu0 0.0
        %3377 = vmatprep.subr.mxu0 0.0
        %3378 = vmatpush2.msra.mxu0 0.0
        %3379 = vmatprep.subr.mxu0 0.0
        %3380 = vmatpush2.msra.mxu0 0.0
        %3381 = vmatprep.subr.mxu0 0.0
        %3382 = vmatpush2.msra.mxu0 0.0
        %3383 = vmatprep.subr.mxu0 0.0
        %3384 = vmatpush2.msra.mxu0 0.0
        %3385 = vmatprep.subr.mxu0 0.0
        %3386 = vmatpush2.msra.mxu0 0.0
        %3387 = vmatprep.subr.mxu0 0.0
        %3388 = vmatpush2.msra.mxu0 0.0
        %3389 = vmatprep.subr.mxu0 0.0
        %3390 = vmatpush2.msra.mxu0 0.0
        %3391 = vmatprep.mubr.f32.mxu0 0.0
        %3392 = vmatmul.mubr.f32.gmra.mxu0 %v3325
        %v3393 = vpop.f32.mrf.mxu0
        %v3394 = vadd.f32 0.0, %v3393
        %v3395 = vpop.f32.mrf.mxu0
        %3396 = vdwg.mxu0
        %v3398 = vsel %vm800, %v3131, 0
        %3400 = vmatprep.subr.mxu0 0.0
        %3401 = vmatpush1.msra.mxu0 0.0
        %3402 = vmatprep.subr.mxu0 0.0
        %3403 = vmatpush1.msra.mxu0 0.0
        %3404 = vmatprep.subr.mxu0 0.0
        %3405 = vmatpush1.msra.mxu0 0.0
        %3406 = vmatprep.subr.mxu0 0.0
        %3407 = vmatpush1.msra.mxu0 0.0
        %3408 = vmatprep.subr.mxu0 0.0
        %3409 = vmatpush1.msra.mxu0 0.0
        %3410 = vmatprep.subr.mxu0 0.0
        %3411 = vmatpush1.msra.mxu0 0.0
        %3412 = vmatprep.subr.mxu0 0.0
        %3413 = vmatpush1.msra.mxu0 0.0
        %3414 = vmatprep.subr.mxu0 0.0
        %3415 = vmatpush1.msra.mxu0 0.0
        %3416 = vmatprep.subr.mxu0 0.0
        %3417 = vmatpush1.msra.mxu0 0.0
        %3418 = vmatprep.subr.mxu0 0.0
        %3419 = vmatpush1.msra.mxu0 0.0
        %3420 = vmatprep.subr.mxu0 0.0
        %3421 = vmatpush1.msra.mxu0 0.0
        %3422 = vmatprep.subr.mxu0 0.0
        %3423 = vmatpush1.msra.mxu0 0.0
        %3424 = vmatprep.subr.mxu0 0.0
        %3425 = vmatpush1.msra.mxu0 %v3157
        %3426 = vmatprep.subr.mxu0 0.0
        %3427 = vmatpush1.msra.mxu0 %v3156
        %3428 = vmatprep.subr.mxu0 0.0
        %3429 = vmatpush1.msra.mxu0 %v3155
        %3430 = vmatprep.subr.mxu0 0.0
        %3431 = vmatpush1.msra.mxu0 %v3154
        %3432 = vmatprep.subr.mxu0 0.0
        %3433 = vmatpush2.msra.mxu0 0.0
        %3434 = vmatprep.subr.mxu0 0.0
        %3435 = vmatpush2.msra.mxu0 0.0
        %3436 = vmatprep.subr.mxu0 0.0
        %3437 = vmatpush2.msra.mxu0 0.0
        %3438 = vmatprep.subr.mxu0 0.0
        %3439 = vmatpush2.msra.mxu0 0.0
        %3440 = vmatprep.subr.mxu0 0.0
        %3441 = vmatpush2.msra.mxu0 0.0
        %3442 = vmatprep.subr.mxu0 0.0
        %3443 = vmatpush2.msra.mxu0 0.0
        %3444 = vmatprep.subr.mxu0 0.0
        %3445 = vmatpush2.msra.mxu0 0.0
        %3446 = vmatprep.subr.mxu0 0.0
        %3447 = vmatpush2.msra.mxu0 0.0
        %3448 = vmatprep.subr.mxu0 0.0
        %3449 = vmatpush2.msra.mxu0 0.0
        %3450 = vmatprep.subr.mxu0 0.0
        %3451 = vmatpush2.msra.mxu0 0.0
        %3452 = vmatprep.subr.mxu0 0.0
        %3453 = vmatpush2.msra.mxu0 0.0
        %3454 = vmatprep.subr.mxu0 0.0
        %3455 = vmatpush2.msra.mxu0 0.0
        %3456 = vmatprep.subr.mxu0 0.0
        %3457 = vmatpush2.msra.mxu0 0.0
        %3458 = vmatprep.subr.mxu0 0.0
        %3459 = vmatpush2.msra.mxu0 0.0
        %3460 = vmatprep.subr.mxu0 0.0
        %3461 = vmatpush2.msra.mxu0 0.0
        %3462 = vmatprep.subr.mxu0 0.0
        %3463 = vmatpush2.msra.mxu0 0.0
        %3464 = vmatprep.mubr.f32.mxu0 0.0
        %3465 = vmatmul.mubr.f32.gmra.mxu0 %v3398
        %v3466 = vpop.f32.mrf.mxu0
        %v3467 = vadd.f32 %v3233, %v3466
        %v3468 = vpop.f32.mrf.mxu0
        %3469 = vdwg.mxu0
        %v3471 = vsel %vm800, %v3141, 0
        %3473 = vmatprep.subr.mxu0 0.0
        %3474 = vmatpush1.msra.mxu0 0.0
        %3475 = vmatprep.subr.mxu0 0.0
        %3476 = vmatpush1.msra.mxu0 0.0
        %3477 = vmatprep.subr.mxu0 0.0
        %3478 = vmatpush1.msra.mxu0 0.0
        %3479 = vmatprep.subr.mxu0 0.0
        %3480 = vmatpush1.msra.mxu0 0.0
        %3481 = vmatprep.subr.mxu0 0.0
        %3482 = vmatpush1.msra.mxu0 0.0
        %3483 = vmatprep.subr.mxu0 0.0
        %3484 = vmatpush1.msra.mxu0 0.0
        %3485 = vmatprep.subr.mxu0 0.0
        %3486 = vmatpush1.msra.mxu0 0.0
        %3487 = vmatprep.subr.mxu0 0.0
        %3488 = vmatpush1.msra.mxu0 0.0
        %3489 = vmatprep.subr.mxu0 0.0
        %3490 = vmatpush1.msra.mxu0 0.0
        %3491 = vmatprep.subr.mxu0 0.0
        %3492 = vmatpush1.msra.mxu0 0.0
        %3493 = vmatprep.subr.mxu0 0.0
        %3494 = vmatpush1.msra.mxu0 0.0
        %3495 = vmatprep.subr.mxu0 0.0
        %3496 = vmatpush1.msra.mxu0 0.0
        %3497 = vmatprep.subr.mxu0 0.0
        %3498 = vmatpush1.msra.mxu0 %v3240
        %3499 = vmatprep.subr.mxu0 0.0
        %3500 = vmatpush1.msra.mxu0 %v3239
        %3501 = vmatprep.subr.mxu0 0.0
        %3502 = vmatpush1.msra.mxu0 %v3238
        %3503 = vmatprep.subr.mxu0 0.0
        %3504 = vmatpush1.msra.mxu0 %v3237
        %3505 = vmatprep.subr.mxu0 0.0
        %3506 = vmatpush2.msra.mxu0 0.0
        %3507 = vmatprep.subr.mxu0 0.0
        %3508 = vmatpush2.msra.mxu0 0.0
        %3509 = vmatprep.subr.mxu0 0.0
        %3510 = vmatpush2.msra.mxu0 0.0
        %3511 = vmatprep.subr.mxu0 0.0
        %3512 = vmatpush2.msra.mxu0 0.0
        %3513 = vmatprep.subr.mxu0 0.0
        %3514 = vmatpush2.msra.mxu0 0.0
        %3515 = vmatprep.subr.mxu0 0.0
        %3516 = vmatpush2.msra.mxu0 0.0
        %3517 = vmatprep.subr.mxu0 0.0
        %3518 = vmatpush2.msra.mxu0 0.0
        %3519 = vmatprep.subr.mxu0 0.0
        %3520 = vmatpush2.msra.mxu0 0.0
        %3521 = vmatprep.subr.mxu0 0.0
        %3522 = vmatpush2.msra.mxu0 0.0
        %3523 = vmatprep.subr.mxu0 0.0
        %3524 = vmatpush2.msra.mxu0 0.0
        %3525 = vmatprep.subr.mxu0 0.0
        %3526 = vmatpush2.msra.mxu0 0.0
        %3527 = vmatprep.subr.mxu0 0.0
        %3528 = vmatpush2.msra.mxu0 0.0
        %3529 = vmatprep.subr.mxu0 0.0
        %3530 = vmatpush2.msra.mxu0 0.0
        %3531 = vmatprep.subr.mxu0 0.0
        %3532 = vmatpush2.msra.mxu0 0.0
        %3533 = vmatprep.subr.mxu0 0.0
        %3534 = vmatpush2.msra.mxu0 0.0
        %3535 = vmatprep.subr.mxu0 0.0
        %3536 = vmatpush2.msra.mxu0 0.0
        %3537 = vmatprep.mubr.f32.mxu0 0.0
        %3538 = vmatmul.mubr.f32.gmra.mxu0 %v3471
        %v3539 = vpop.f32.mrf.mxu0
        %v3540 = vadd.f32 %v3316, %v3539
        %v3541 = vpop.f32.mrf.mxu0
        %3542 = vdwg.mxu0
        %v3543 = vadd.f32 %v3467, %v3540
        %v3544 = vadd.f32 %v3543, %v3394
        %3546 = vrot.lane.b32.xlu0 %v3544, 64
        %v3547 = vpop.permute.xlu0 %3546
        %v3549 = vadd.f32 %v2664, %v3547
        %v3550 = vtanh.pop %v3549
        %3551 = vrot.lane.b32.xlu0 %v781, 32
        %v3552 = vpop.permute.xlu0 %3551
        %v3554 = vmul.f32 %v3062, %v3552
        %v3555 = vsub.f32 1.0, %v3062
        %3557 = vrot.lane.b32.xlu0 %v3550, 96
        %v3558 = vpop.permute.xlu0 %3557
        %v3560 = vmul.f32 %v3555, %v3558
        %v3561 = vadd.f32 %v3554, %v3560
        %3563 = vrot.lane.b32.xlu0 %v3561, 96
        %v3564 = vpop.permute.xlu0 %3563
        %3566 = vst.msk [vmem:[#allocation2] sm:$0xff] %vm800, %v3564
        %3567 = vrot.lane.b32.xlu0 %v3561, 32
        %v3568 = vpop.permute.xlu0 %3567
        %3570 = vrot.lane.b32.xlu0 %v891, 96
        %v3571 = vpop.permute.xlu0 %3570
        %3574 = vrot.lane.b32.xlu0 %v1579, 108
        %v3575 = vpop.permute.xlu0 %3574
        %v3577 = vsel %vm800, %v1403, %v3552
        %vm3578 = vcmask 523264
        %v3579 = vsel %vm3578, %v3577, %v3568
        %vm3580 = vcmask 785408
        %v3581 = vsel %vm3580, %v3579, %v3571
        %vm3582 = vcmask 883712
        %v3583 = vsel %vm3582, %v3581, %v3575
        %vm3584 = vcmask 982016
        %v3585 = vsel %vm3584, %v3583, 0.0
        %3586 = vst [vmem:[%s765] sm:$0xff] %v3585
        %s3587 = sand.u32 %s488, 1
        %s3588 = scalar_lea.sflag [#allocation5], %s3587
        %s3589 = sand.u32 %s488, 1
        %s3590 = smul.addr %s3589, 8
        %s3591 = scalar_lea.vmem [#allocation18], %s3590
        // Predicated region
        $region141: #{tpu_custom_call.1} parent=99 // pred_check
          %p3592 = pneg %p498
        $region142: #{tpu_custom_call.1} parent=99 // pred_check_branch
          %3594 = sbr.rel (%p3592) target = $region144
        $region143: #{tpu_custom_call.1} parent=99 // pred_region
          %s3596 = ssub.s32 128, 128
          %3597 = vsyncadd %s3588, %s3596
          %s3598 = smul.addr %s43, 8
          %s3599 = sadd.s32 %s44, %s3598
          %s3600 = smul.addr %s3599, 128
          %s3601 = scalar_lea.hbm %s20, %s3600
          %s3603 = sshll.u32 %s3591, 4
          %s3604 = int_to_ptr.vmem [resolvable:$true] %s3603
          %3606 = dma.vmem_to_hbm [thread:$0]  %s3604, 128, %s3601, %s3588
        $region144: #{tpu_custom_call.1} parent=99 // pred_fallthru
          _
      $region100: #{tpu_custom_call.1} parent=5 // pred_fallthru
        _
      %p3607 = scmp.le.s32.totalorder 2, %s34
      // Predicated region
      $region145: #{tpu_custom_call.1} parent=5 // pred_check
        %p3608 = pneg %p3607
      $region146: #{tpu_custom_call.1} parent=5 // pred_check_branch
        %3610 = sbr.rel (%p3608) target = $region148
      $region147: #{tpu_custom_call.1} parent=5 // pred_region
        %s3611 = ssub.s32 %s34, 2
        // Predicated region
        $region149: #{tpu_custom_call.1} parent=147 // pred_check
          %p3612 = pneg %p504
        $region150: #{tpu_custom_call.1} parent=147 // pred_check_branch
          %3614 = sbr.rel (%p3612) target = $region152
        $region151: #{tpu_custom_call.1} parent=147 // pred_region
          %s3615 = sand.u32 %s489, 1
          %s3616 = scalar_lea.sflag [#allocation5], %s3615
          %s3617 = sand.u32 %s489, 1
          %s3618 = smul.addr %s3617, 8
          %s3619 = scalar_lea.vmem [#allocation18], %s3618
          %3620 = dma.done %s3616, 128
        $region152: #{tpu_custom_call.1} parent=147 // pred_fallthru
          _
      $region148: #{tpu_custom_call.1} parent=5 // pred_fallthru
        _
    $region6: #{tpu_custom_call.1} parent=1 // loop_footer
      %s38 = sadd.s32 1, %s34
    $region7: #{tpu_custom_call.1} parent=1 // loop_footer_branch
      %33 = sbr.rel target = $region3
    $region8: #{tpu_custom_call.1} parent=1 // loop_exit
      _
    %3621 = vsyncpa [#allocation4], 1
    %s3622 = scalar_lea.sflag [#allocation4], 1
    %3623 = vsyncpa %s3622, 1
    %3624 = vsyncpa [#allocation7], 1
    %3625 = vsyncpa [#allocation10], 1
    %3626 = vsyncpa [#allocation13], 1
    %3627 = vsyncpa [#allocation16], 1
    %3628 = vsyncpa [#allocation5], 1
    %s3629 = scalar_lea.sflag [#allocation5], 1
    %3630 = vsyncpa %s3629, 1

</llo_original>
